<compile_context>
chip_gen: v7x
topology: tpu7x:2x2x1
jax: 0.10.0
libtpu: 0.0.40
codegen_flags: <defaults>
</compile_context>

<pallas_src>
import functools

import numpy as np
import jax
import jax.numpy as jnp
from jax import lax
from jax.experimental import pallas as pl
from jax.experimental.pallas import tpu as pltpu


# ------------------------------------------------------------------ fused kernel
def _block_kernel(x_ref, tap_ref, brow_ref, bcol_ref,
                  wqkv_ref, bqkv_ref, dww_ref, dwb_ref, pww_ref, pwb_ref,
                  prq_ref, prk_ref, pcq_ref, pck_ref,
                  prw_ref, prb_ref, pcw_ref, pcb_ref, pjw_ref, pjb_ref,
                  f1w_ref, f1b_ref, mdw_ref, mdb_ref, f2w_ref, f2b_ref,
                  o_ref, xs_qkv_ref, xs_mlp_ref, *, H, W, nh, kd, d, scale):
    f32 = jnp.float32
    bf16 = jnp.bfloat16
    S = H * W
    nh_kd = nh * kd
    dh = nh * d

    def mm(a, b):      # NN matmul, bf16 MXU operands, f32 accumulate
        return jnp.dot(a.astype(bf16), b.astype(bf16), preferred_element_type=f32)

    def mm_nt(a, b):   # contract the last (lane) dim of both operands
        return lax.dot_general(a.astype(bf16), b.astype(bf16),
                               (((1,), (1,)), ((), ())), preferred_element_type=f32)

    x = x_ref[0]            # (dim, S) f32, spatial on lanes
    tap = tap_ref[...]      # (9*S, S) bf16 constant 0/1 tap matrix (zero pad baked in)
    brow = brow_ref[...]    # (H, S)   bf16 0/1 row membership
    bcol = bcol_ref[...]    # (W, S)   bf16 0/1 column membership

    # 3x3 depthwise conv (zero padding, folded BN / bias) + ReLU as ONE deep-K matmul.
    def dwconv3x3(xin, w9_ref, b_ref, xs_ref):
        for t in range(9):
            # per-tap, per-channel scaled copy of the activation -> (C, 9*S) scratch
            xs_ref[:, t * S:(t + 1) * S] = (xin * w9_ref[t]).astype(bf16)
        acc = jnp.dot(xs_ref[...], tap, preferred_element_type=f32)        # (C, S)
        return jnp.maximum(acc + b_ref[...], 0.0)                          # conv -> ReLU

    # ---------------- Sea_Attention ----------------
    qkv_lin = mm(wqkv_ref[...], x) + bqkv_ref[...]        # fused q/k/v 1x1 convs, (cqkv, S)
    q = qkv_lin[:nh_kd]
    k = qkv_lin[nh_kd:2 * nh_kd]
    v = qkv_lin[2 * nh_kd:]                               # (dh, S)

    # detail branch: dwconv3x3 + BN + ReLU, then 1x1 pwconv + BN
    qkv = dwconv3x3(qkv_lin, dww_ref, dwb_ref, xs_qkv_ref)
    qkv = mm(pww_ref[...], qkv) + pwb_ref[...]            # (dim, S)

    # axial mean pooling (0/1 selectors, scalar 1/W and 1/H) + positional embeddings
    inv_w = 1.0 / W
    inv_h = 1.0 / H
    q_row = mm_nt(brow, q) * inv_w + prq_ref[...]         # (H, nh_kd)
    k_row = mm_nt(brow, k) * inv_w + prk_ref[...]
    v_row = mm_nt(v, brow) * inv_w                        # (dh, H)
    q_col = mm_nt(bcol, q) * inv_h + pcq_ref[...]         # (W, nh_kd)
    k_col = mm_nt(bcol, k) * inv_h + pck_ref[...]
    v_col = mm_nt(v, bcol) * inv_h                        # (dh, W)

    # per-head axial attention fused with proj_encode_{row,col} (ReLU -> 1x1 conv + BN)
    def axial(qp, kp, vp, pw_ref, pb_ref):
        outs = []
        for h in range(nh):
            qh = qp[:, h * kd:(h + 1) * kd]               # (L, kd)
            kh = kp[:, h * kd:(h + 1) * kd]               # (L, kd)
            vh = vp[h * d:(h + 1) * d, :]                 # (d, L)
            s = mm_nt(qh, kh) * scale                     # (L, L)
            s = s - jnp.max(s, axis=-1, keepdims=True)
            e = jnp.exp(s)
            prob = e * pl.reciprocal(jnp.sum(e, axis=-1, keepdims=True), approx=True)
            outs.append(jnp.maximum(mm_nt(vh, prob), 0.0))  # (d, L), ReLU before conv
        o_all = jnp.concatenate(outs, axis=0)             # (dh, L), head-major channels
        return mm(pw_ref[...], o_all) + pb_ref[...]       # (dh, L)

    xr = axial(q_row, k_row, v_row, prw_ref, prb_ref)     # (dh, H)
    xc = axial(q_col, k_col, v_col, pcw_ref, pcb_ref)     # (dh, W)

    # v + row broadcast + col broadcast, proj (ReLU -> 1x1 conv + BN), h_sigmoid gate
    xx = v + mm(xr, brow) + mm(xc, bcol)                  # (dh, S)
    xx = mm(pjw_ref[...], jnp.maximum(xx, 0.0)) + pjb_ref[...]    # (dim, S)
    hs = jnp.clip(xx + 3.0, 0.0, 6.0) * (1.0 / 6.0)       # h_sigmoid
    x1 = x + hs * qkv                                     # Block residual #1

    # ---------------- Mlp + residual ----------------
    h1 = mm(f1w_ref[...], x1) + f1b_ref[...]              # (hidden, S)
    h1 = dwconv3x3(h1, mdw_ref, mdb_ref, xs_mlp_ref)      # dwconv(+bias) -> ReLU
    out = x1 + mm(f2w_ref[...], h1) + f2b_ref[...]        # Block residual #2

    o_ref[0] = out


# ------------------------------------------------------------------ constants (host side)
def _spatial_constants(H, W):
    S = H * W
    hh = np.arange(S) // W
    ww = np.arange(S) % W
    brow = (np.arange(H)[:, None] == hh[None, :]).astype(np.float32)     # (H, S)
    bcol = (np.arange(W)[:, None] == ww[None, :]).astype(np.float32)     # (W, S)
    tap = np.zeros((9, S, S), np.float32)                                # tap[t, src, dst]
    for t in range(9):
        di, dj = t // 3 - 1, t % 3 - 1
        sh, sw = hh + di, ww + dj
        valid = (sh >= 0) & (sh < H) & (sw >= 0) & (sw < W)
        src = np.clip(sh, 0, H - 1) * W + np.clip(sw, 0, W - 1)
        dst = np.arange(S)[valid]
        tap[t, src[valid], dst] = 1.0
    return brow, bcol, tap.reshape(9 * S, S)


def _interp_matrix(S_src, N):
    # F.interpolate(mode='linear', align_corners=False), length S_src -> N, as (S_src, N).
    M = np.zeros((S_src, N), np.float32)
    for n in range(N):
        src = max((n + 0.5) * (S_src / N) - 0.5, 0.0)
        i0 = min(int(np.floor(src)), S_src - 1)
        i1 = min(i0 + 1, S_src - 1)
        lam = src - i0
        M[i0, n] += 1.0 - lam
        M[i1, n] += lam
    return M


# ------------------------------------------------------------------ params
def init_params(key, dim, key_dim, num_heads, attn_ratio, mlp_ratio):
    # All BN folded into (out, in) weights + per-out-channel bias (eval mode).
    nh_kd = key_dim * num_heads
    d = int(attn_ratio * key_dim)
    dh = d * num_heads
    cqkv = dh + 2 * nh_kd
    hidden = int(dim * mlp_ratio)
    names_shapes = [
        ("to_q_w", (nh_kd, dim)), ("to_q_b", (nh_kd,)),
        ("to_k_w", (nh_kd, dim)), ("to_k_b", (nh_kd,)),
        ("to_v_w", (dh, dim)), ("to_v_b", (dh,)),
        ("dw_w", (9, cqkv)), ("dw_b", (cqkv,)),          # dw_w[t, c] = w[c,0,t//3,t%3]*bn
        ("pw_w", (dim, cqkv)), ("pw_b", (dim,)),
        ("pos_rowq", (nh_kd, 16)), ("pos_rowk", (nh_kd, 16)),
        ("pos_colq", (nh_kd, 16)), ("pos_colk", (nh_kd, 16)),
        ("proj_row_w", (dh, dh)), ("proj_row_b", (dh,)),
        ("proj_col_w", (dh, dh)), ("proj_col_b", (dh,)),
        ("proj_w", (dim, dh)), ("proj_b", (dim,)),
        ("fc1_w", (hidden, dim)), ("fc1_b", (hidden,)),
        ("mlp_dw_w", (9, hidden)), ("mlp_dw_b", (hidden,)),
        ("fc2_w", (dim, hidden)), ("fc2_b", (dim,)),
    ]
    keys = jax.random.split(key, len(names_shapes))
    params = {}
    for (name, shape), kk in zip(names_shapes, keys):
        sc = 1.0 if name.startswith("pos_") else (0.05 if name.endswith("_b") else 0.2)
        params[name] = sc * jax.random.normal(kk, shape, dtype=jnp.float32)
    return params


# ------------------------------------------------------------------ forward
def block_forward(x_nchw, p, *, key_dim, num_heads, attn_ratio, mlp_ratio):
    B, dim, H, W = x_nchw.shape
    nh, kd = num_heads, key_dim
    d = int(attn_ratio * key_dim)
    dh = d * nh
    nh_kd = kd * nh
    cqkv = dh + 2 * nh_kd
    hidden = int(dim * mlp_ratio)
    S = H * W
    scale = key_dim ** -0.5
    f32, bf16 = jnp.float32, jnp.bfloat16

    # NCHW -> (B, C, HW): FREE reshape (no transpose); spatial stays on lanes in-kernel.
    x = x_nchw.reshape(B, dim, S).astype(f32)

    # constant spatial selector / tap matrices (exact 0/1, stored bf16 for the MXU)
    brow_np, bcol_np, tap_np = _spatial_constants(H, W)
    brow = jnp.asarray(brow_np, dtype=bf16)
    bcol = jnp.asarray(bcol_np, dtype=bf16)
    big_tap = jnp.asarray(tap_np, dtype=bf16)

    # squeeze-axial positional embeddings, pre-interpolated to H / W
    m_row = _interp_matrix(p["pos_rowq"].shape[1], H)
    m_col = _interp_matrix(p["pos_colq"].shape[1], W)
    pos_rq = (p["pos_rowq"] @ m_row).T.astype(f32)    # (H, nh_kd)
    pos_rk = (p["pos_rowk"] @ m_row).T.astype(f32)
    pos_cq = (p["pos_colq"] @ m_col).T.astype(f32)    # (W, nh_kd)
    pos_ck = (p["pos_colk"] @ m_col).T.astype(f32)

    # fuse q/k/v 1x1 convs into one matmul
    wqkv = jnp.concatenate([p["to_q_w"], p["to_k_w"], p["to_v_w"]], axis=0).astype(bf16)
    bqkv = jnp.concatenate([p["to_q_b"], p["to_k_b"], p["to_v_b"]]).reshape(cqkv, 1).astype(f32)

    const_inputs = [
        big_tap, brow, bcol,
        wqkv, bqkv,
        p["dw_w"].reshape(9, cqkv, 1).astype(f32), p["dw_b"].reshape(cqkv, 1).astype(f32),
        p["pw_w"].astype(bf16), p["pw_b"].reshape(dim, 1).astype(f32),
        pos_rq, pos_rk, pos_cq, pos_ck,
        p["proj_row_w"].astype(bf16), p["proj_row_b"].reshape(dh, 1).astype(f32),
        p["proj_col_w"].astype(bf16), p["proj_col_b"].reshape(dh, 1).astype(f32),
        p["proj_w"].astype(bf16), p["proj_b"].reshape(dim, 1).astype(f32),
        p["fc1_w"].astype(bf16), p["fc1_b"].reshape(hidden, 1).astype(f32),
        p["mlp_dw_w"].reshape(9, hidden, 1).astype(f32), p["mlp_dw_b"].reshape(hidden, 1).astype(f32),
        p["fc2_w"].astype(bf16), p["fc2_b"].reshape(dim, 1).astype(f32),
    ]

    def cspec(a):
        nd = a.ndim
        return pl.BlockSpec(a.shape, lambda b, _nd=nd: (0,) * _nd)

    in_specs = [pl.BlockSpec((1, dim, S), lambda b: (b, 0, 0))] + [cspec(a) for a in const_inputs]

    kern = functools.partial(_block_kernel, H=H, W=W, nh=nh, kd=kd, d=d, scale=scale)

    out = pl.pallas_call(
        kern,
        grid=(B,),
        in_specs=in_specs,
        out_specs=pl.BlockSpec((1, dim, S), lambda b: (b, 0, 0)),
        out_shape=jax.ShapeDtypeStruct((B, dim, S), f32),
        scratch_shapes=[pltpu.VMEM((cqkv, 9 * S), bf16),      # deep-K dwconv operand (attn)
                        pltpu.VMEM((hidden, 9 * S), bf16)],    # deep-K dwconv operand (mlp)
        compiler_params=pltpu.CompilerParams(
            dimension_semantics=("parallel",),
            vmem_limit_bytes=32 * 1024 * 1024),
    )(x, *const_inputs)

    return out.reshape(B, dim, H, W)   # free reshape back to NCHW


# ------------------------------------------------------------------ main
if __name__ == "__main__":
    # Block(dim=16, key_dim=8, num_heads=2, mlp_ratio=2.0, attn_ratio=2.0)
    B, dim, H, W = 2, 16, 8, 8
    key_dim, num_heads, attn_ratio, mlp_ratio = 8, 2, 2.0, 2.0

    root = jax.random.PRNGKey(0)
    k_x, k_p = jax.random.split(root)
    x = jax.random.normal(k_x, (B, dim, H, W), dtype=jnp.float32)
    params = init_params(k_p, dim, key_dim, num_heads, attn_ratio, mlp_ratio)

    fwd = jax.jit(functools.partial(block_forward, key_dim=key_dim,
                                    num_heads=num_heads, attn_ratio=attn_ratio,
                                    mlp_ratio=mlp_ratio))
    y = fwd(x, params)
    jax.block_until_ready(y)
    assert y.shape == (B, dim, H, W)
    assert bool(jnp.all(jnp.isfinite(y)))
    print("KERNEL_OK")
</pallas_src>

<mosaic_0001>
module attributes {stable_mosaic.version = 11 : i64} {
  func.func @_block_kernel(%arg0: i32, %arg1: memref<1x16x64xf32, #tpu.memory_space<vmem>>, %arg2: memref<576x64xbf16, #tpu.memory_space<vmem>>, %arg3: memref<8x64xbf16, #tpu.memory_space<vmem>>, %arg4: memref<8x64xbf16, #tpu.memory_space<vmem>>, %arg5: memref<64x16xbf16, #tpu.memory_space<vmem>>, %arg6: memref<64x1xf32, #tpu.memory_space<vmem>>, %arg7: memref<9x64x1xf32, #tpu.memory_space<vmem>>, %arg8: memref<64x1xf32, #tpu.memory_space<vmem>>, %arg9: memref<16x64xbf16, #tpu.memory_space<vmem>>, %arg10: memref<16x1xf32, #tpu.memory_space<vmem>>, %arg11: memref<8x16xf32, #tpu.memory_space<vmem>>, %arg12: memref<8x16xf32, #tpu.memory_space<vmem>>, %arg13: memref<8x16xf32, #tpu.memory_space<vmem>>, %arg14: memref<8x16xf32, #tpu.memory_space<vmem>>, %arg15: memref<32x32xbf16, #tpu.memory_space<vmem>>, %arg16: memref<32x1xf32, #tpu.memory_space<vmem>>, %arg17: memref<32x32xbf16, #tpu.memory_space<vmem>>, %arg18: memref<32x1xf32, #tpu.memory_space<vmem>>, %arg19: memref<16x32xbf16, #tpu.memory_space<vmem>>, %arg20: memref<16x1xf32, #tpu.memory_space<vmem>>, %arg21: memref<32x16xbf16, #tpu.memory_space<vmem>>, %arg22: memref<32x1xf32, #tpu.memory_space<vmem>>, %arg23: memref<9x32x1xf32, #tpu.memory_space<vmem>>, %arg24: memref<32x1xf32, #tpu.memory_space<vmem>>, %arg25: memref<16x32xbf16, #tpu.memory_space<vmem>>, %arg26: memref<16x1xf32, #tpu.memory_space<vmem>>, %arg27: memref<1x16x64xf32, #tpu.memory_space<vmem>>, %arg28: memref<64x576xbf16, #tpu.memory_space<vmem>>, %arg29: memref<32x576xbf16, #tpu.memory_space<vmem>>) attributes {dimension_semantics = [#tpu.dimension_semantics<parallel>], iteration_bounds = array<i64: 2>, scalar_prefetch = 0 : i64, scratch_operands = 2 : i64, tpu.core_type = #tpu.core_type<tc>, window_params = [{transform_indices = @transform_0, window_bounds = array<i64: 1, 16, 64>}, {pipeline_mode = #tpu.pipeline_mode<synchronous>, transform_indices = @transform_1, window_bounds = array<i64: 576, 64>}, {pipeline_mode = #tpu.pipeline_mode<synchronous>, transform_indices = @transform_2, window_bounds = array<i64: 8, 64>}, {pipeline_mode = #tpu.pipeline_mode<synchronous>, transform_indices = @transform_3, window_bounds = array<i64: 8, 64>}, {pipeline_mode = #tpu.pipeline_mode<synchronous>, transform_indices = @transform_4, window_bounds = array<i64: 64, 16>}, {pipeline_mode = #tpu.pipeline_mode<synchronous>, transform_indices = @transform_5, window_bounds = array<i64: 64, 1>}, {pipeline_mode = #tpu.pipeline_mode<synchronous>, transform_indices = @transform_6, window_bounds = array<i64: 9, 64, 1>}, {pipeline_mode = #tpu.pipeline_mode<synchronous>, transform_indices = @transform_7, window_bounds = array<i64: 64, 1>}, {pipeline_mode = #tpu.pipeline_mode<synchronous>, transform_indices = @transform_8, window_bounds = array<i64: 16, 64>}, {pipeline_mode = #tpu.pipeline_mode<synchronous>, transform_indices = @transform_9, window_bounds = array<i64: 16, 1>}, {pipeline_mode = #tpu.pipeline_mode<synchronous>, transform_indices = @transform_10, window_bounds = array<i64: 8, 16>}, {pipeline_mode = #tpu.pipeline_mode<synchronous>, transform_indices = @transform_11, window_bounds = array<i64: 8, 16>}, {pipeline_mode = #tpu.pipeline_mode<synchronous>, transform_indices = @transform_12, window_bounds = array<i64: 8, 16>}, {pipeline_mode = #tpu.pipeline_mode<synchronous>, transform_indices = @transform_13, window_bounds = array<i64: 8, 16>}, {pipeline_mode = #tpu.pipeline_mode<synchronous>, transform_indices = @transform_14, window_bounds = array<i64: 32, 32>}, {pipeline_mode = #tpu.pipeline_mode<synchronous>, transform_indices = @transform_15, window_bounds = array<i64: 32, 1>}, {pipeline_mode = #tpu.pipeline_mode<synchronous>, transform_indices = @transform_16, window_bounds = array<i64: 32, 32>}, {pipeline_mode = #tpu.pipeline_mode<synchronous>, transform_indices = @transform_17, window_bounds = array<i64: 32, 1>}, {pipeline_mode = #tpu.pipeline_mode<synchronous>, transform_indices = @transform_18, window_bounds = array<i64: 16, 32>}, {pipeline_mode = #tpu.pipeline_mode<synchronous>, transform_indices = @transform_19, window_bounds = array<i64: 16, 1>}, {pipeline_mode = #tpu.pipeline_mode<synchronous>, transform_indices = @transform_20, window_bounds = array<i64: 32, 16>}, {pipeline_mode = #tpu.pipeline_mode<synchronous>, transform_indices = @transform_21, window_bounds = array<i64: 32, 1>}, {pipeline_mode = #tpu.pipeline_mode<synchronous>, transform_indices = @transform_22, window_bounds = array<i64: 9, 32, 1>}, {pipeline_mode = #tpu.pipeline_mode<synchronous>, transform_indices = @transform_23, window_bounds = array<i64: 32, 1>}, {pipeline_mode = #tpu.pipeline_mode<synchronous>, transform_indices = @transform_24, window_bounds = array<i64: 16, 32>}, {pipeline_mode = #tpu.pipeline_mode<synchronous>, transform_indices = @transform_25, window_bounds = array<i64: 16, 1>}, {transform_indices = @transform_26, window_bounds = array<i64: 1, 16, 64>}]} {
    %c0 = arith.constant 0 : index
    %c0_0 = arith.constant 0 : index
    %c0_1 = arith.constant 0 : index
    %0 = vector.load %arg1[%c0, %c0_0, %c0_1] : memref<1x16x64xf32, #tpu.memory_space<vmem>>, vector<1x16x64xf32>
    %1 = vector.shape_cast %0 : vector<1x16x64xf32> to vector<16x64xf32>
    %c0_2 = arith.constant 0 : index
    %c0_3 = arith.constant 0 : index
    %2 = vector.load %arg2[%c0_2, %c0_3] : memref<576x64xbf16, #tpu.memory_space<vmem>>, vector<576x64xbf16>
    %c0_4 = arith.constant 0 : index
    %c0_5 = arith.constant 0 : index
    %3 = vector.load %arg3[%c0_4, %c0_5] : memref<8x64xbf16, #tpu.memory_space<vmem>>, vector<8x64xbf16>
    %c0_6 = arith.constant 0 : index
    %c0_7 = arith.constant 0 : index
    %4 = vector.load %arg4[%c0_6, %c0_7] : memref<8x64xbf16, #tpu.memory_space<vmem>>, vector<8x64xbf16>
    %c0_8 = arith.constant 0 : index
    %c0_9 = arith.constant 0 : index
    %5 = vector.load %arg5[%c0_8, %c0_9] : memref<64x16xbf16, #tpu.memory_space<vmem>>, vector<64x16xbf16>
    %6 = arith.truncf %1 : vector<16x64xf32> to vector<16x64xbf16>
    %cst = arith.constant dense<0.000000e+00> : vector<64x64xf32>
    %7 = tpu.matmul %5, %6, %cst {dimension_numbers = #tpu.dot_dimension_numbers<[1], [0], [0], [1], [0, 0, 1, 1], [], []>} : vector<64x16xbf16>, vector<16x64xbf16>, vector<64x64xf32> -> vector<64x64xf32>
    %c0_10 = arith.constant 0 : index
    %c0_11 = arith.constant 0 : index
    %8 = vector.load %arg6[%c0_10, %c0_11] : memref<64x1xf32, #tpu.memory_space<vmem>>, vector<64x1xf32>
    %9 = vector.broadcast %8 : vector<64x1xf32> to vector<64x64xf32>
    %10 = arith.addf %7, %9 : vector<64x64xf32>
    %11 = vector.extract_strided_slice %10 {offsets = [0, 0], sizes = [16, 64], strides = [1, 1]} : vector<64x64xf32> to vector<16x64xf32>
    %12 = vector.extract_strided_slice %10 {offsets = [16, 0], sizes = [16, 64], strides = [1, 1]} : vector<64x64xf32> to vector<16x64xf32>
    %13 = vector.extract_strided_slice %10 {offsets = [32, 0], sizes = [32, 64], strides = [1, 1]} : vector<64x64xf32> to vector<32x64xf32>
    %c0_12 = arith.constant 0 : index
    %c0_13 = arith.constant 0 : index
    %c0_14 = arith.constant 0 : index
    %14 = vector.load %arg7[%c0_12, %c0_13, %c0_14] : memref<9x64x1xf32, #tpu.memory_space<vmem>>, vector<1x64x1xf32>
    %15 = vector.shape_cast %14 : vector<1x64x1xf32> to vector<64x1xf32>
    %16 = vector.broadcast %15 : vector<64x1xf32> to vector<64x64xf32>
    %17 = arith.mulf %10, %16 : vector<64x64xf32>
    %18 = arith.truncf %17 : vector<64x64xf32> to vector<64x64xbf16>
    %c0_15 = arith.constant 0 : index
    %c0_16 = arith.constant 0 : index
    %19 = vector.load %arg28[%c0_15, %c0_16] : memref<64x576xbf16, #tpu.memory_space<vmem>>, vector<64x64xbf16>
    tpu.vector_store %arg28[%c0_15, %c0_16], %18 {strides = array<i32>} : memref<64x576xbf16, #tpu.memory_space<vmem>>, vector<64x64xbf16>,
    %c1 = arith.constant 1 : index
    %c0_17 = arith.constant 0 : index
    %c0_18 = arith.constant 0 : index
    %20 = vector.load %arg7[%c1, %c0_17, %c0_18] : memref<9x64x1xf32, #tpu.memory_space<vmem>>, vector<1x64x1xf32>
    %21 = vector.shape_cast %20 : vector<1x64x1xf32> to vector<64x1xf32>
    %22 = vector.broadcast %21 : vector<64x1xf32> to vector<64x64xf32>
    %23 = arith.mulf %10, %22 : vector<64x64xf32>
    %24 = arith.truncf %23 : vector<64x64xf32> to vector<64x64xbf16>
    %c0_19 = arith.constant 0 : index
    %c64 = arith.constant 64 : index
    %25 = vector.load %arg28[%c0_19, %c64] : memref<64x576xbf16, #tpu.memory_space<vmem>>, vector<64x64xbf16>
    tpu.vector_store %arg28[%c0_19, %c64], %24 {strides = array<i32>} : memref<64x576xbf16, #tpu.memory_space<vmem>>, vector<64x64xbf16>,
    %c2 = arith.constant 2 : index
    %c0_20 = arith.constant 0 : index
    %c0_21 = arith.constant 0 : index
    %26 = vector.load %arg7[%c2, %c0_20, %c0_21] : memref<9x64x1xf32, #tpu.memory_space<vmem>>, vector<1x64x1xf32>
    %27 = vector.shape_cast %26 : vector<1x64x1xf32> to vector<64x1xf32>
    %28 = vector.broadcast %27 : vector<64x1xf32> to vector<64x64xf32>
    %29 = arith.mulf %10, %28 : vector<64x64xf32>
    %30 = arith.truncf %29 : vector<64x64xf32> to vector<64x64xbf16>
    %c0_22 = arith.constant 0 : index
    %c128 = arith.constant 128 : index
    %31 = vector.load %arg28[%c0_22, %c128] : memref<64x576xbf16, #tpu.memory_space<vmem>>, vector<64x64xbf16>
    tpu.vector_store %arg28[%c0_22, %c128], %30 {strides = array<i32>} : memref<64x576xbf16, #tpu.memory_space<vmem>>, vector<64x64xbf16>,
    %c3 = arith.constant 3 : index
    %c0_23 = arith.constant 0 : index
    %c0_24 = arith.constant 0 : index
    %32 = vector.load %arg7[%c3, %c0_23, %c0_24] : memref<9x64x1xf32, #tpu.memory_space<vmem>>, vector<1x64x1xf32>
    %33 = vector.shape_cast %32 : vector<1x64x1xf32> to vector<64x1xf32>
    %34 = vector.broadcast %33 : vector<64x1xf32> to vector<64x64xf32>
    %35 = arith.mulf %10, %34 : vector<64x64xf32>
    %36 = arith.truncf %35 : vector<64x64xf32> to vector<64x64xbf16>
    %c0_25 = arith.constant 0 : index
    %c192 = arith.constant 192 : index
    %37 = vector.load %arg28[%c0_25, %c192] : memref<64x576xbf16, #tpu.memory_space<vmem>>, vector<64x64xbf16>
    tpu.vector_store %arg28[%c0_25, %c192], %36 {strides = array<i32>} : memref<64x576xbf16, #tpu.memory_space<vmem>>, vector<64x64xbf16>,
    %c4 = arith.constant 4 : index
    %c0_26 = arith.constant 0 : index
    %c0_27 = arith.constant 0 : index
    %38 = vector.load %arg7[%c4, %c0_26, %c0_27] : memref<9x64x1xf32, #tpu.memory_space<vmem>>, vector<1x64x1xf32>
    %39 = vector.shape_cast %38 : vector<1x64x1xf32> to vector<64x1xf32>
    %40 = vector.broadcast %39 : vector<64x1xf32> to vector<64x64xf32>
    %41 = arith.mulf %10, %40 : vector<64x64xf32>
    %42 = arith.truncf %41 : vector<64x64xf32> to vector<64x64xbf16>
    %c0_28 = arith.constant 0 : index
    %c256 = arith.constant 256 : index
    %43 = vector.load %arg28[%c0_28, %c256] : memref<64x576xbf16, #tpu.memory_space<vmem>>, vector<64x64xbf16>
    tpu.vector_store %arg28[%c0_28, %c256], %42 {strides = array<i32>} : memref<64x576xbf16, #tpu.memory_space<vmem>>, vector<64x64xbf16>,
    %c5 = arith.constant 5 : index
    %c0_29 = arith.constant 0 : index
    %c0_30 = arith.constant 0 : index
    %44 = vector.load %arg7[%c5, %c0_29, %c0_30] : memref<9x64x1xf32, #tpu.memory_space<vmem>>, vector<1x64x1xf32>
    %45 = vector.shape_cast %44 : vector<1x64x1xf32> to vector<64x1xf32>
    %46 = vector.broadcast %45 : vector<64x1xf32> to vector<64x64xf32>
    %47 = arith.mulf %10, %46 : vector<64x64xf32>
    %48 = arith.truncf %47 : vector<64x64xf32> to vector<64x64xbf16>
    %c0_31 = arith.constant 0 : index
    %c320 = arith.constant 320 : index
    %49 = vector.load %arg28[%c0_31, %c320] : memref<64x576xbf16, #tpu.memory_space<vmem>>, vector<64x64xbf16>
    tpu.vector_store %arg28[%c0_31, %c320], %48 {strides = array<i32>} : memref<64x576xbf16, #tpu.memory_space<vmem>>, vector<64x64xbf16>,
    %c6 = arith.constant 6 : index
    %c0_32 = arith.constant 0 : index
    %c0_33 = arith.constant 0 : index
    %50 = vector.load %arg7[%c6, %c0_32, %c0_33] : memref<9x64x1xf32, #tpu.memory_space<vmem>>, vector<1x64x1xf32>
    %51 = vector.shape_cast %50 : vector<1x64x1xf32> to vector<64x1xf32>
    %52 = vector.broadcast %51 : vector<64x1xf32> to vector<64x64xf32>
    %53 = arith.mulf %10, %52 : vector<64x64xf32>
    %54 = arith.truncf %53 : vector<64x64xf32> to vector<64x64xbf16>
    %c0_34 = arith.constant 0 : index
    %c384 = arith.constant 384 : index
    %55 = vector.load %arg28[%c0_34, %c384] : memref<64x576xbf16, #tpu.memory_space<vmem>>, vector<64x64xbf16>
    tpu.vector_store %arg28[%c0_34, %c384], %54 {strides = array<i32>} : memref<64x576xbf16, #tpu.memory_space<vmem>>, vector<64x64xbf16>,
    %c7 = arith.constant 7 : index
    %c0_35 = arith.constant 0 : index
    %c0_36 = arith.constant 0 : index
    %56 = vector.load %arg7[%c7, %c0_35, %c0_36] : memref<9x64x1xf32, #tpu.memory_space<vmem>>, vector<1x64x1xf32>
    %57 = vector.shape_cast %56 : vector<1x64x1xf32> to vector<64x1xf32>
    %58 = vector.broadcast %57 : vector<64x1xf32> to vector<64x64xf32>
    %59 = arith.mulf %10, %58 : vector<64x64xf32>
    %60 = arith.truncf %59 : vector<64x64xf32> to vector<64x64xbf16>
    %c0_37 = arith.constant 0 : index
    %c448 = arith.constant 448 : index
    %61 = vector.load %arg28[%c0_37, %c448] : memref<64x576xbf16, #tpu.memory_space<vmem>>, vector<64x64xbf16>
    tpu.vector_store %arg28[%c0_37, %c448], %60 {strides = array<i32>} : memref<64x576xbf16, #tpu.memory_space<vmem>>, vector<64x64xbf16>,
    %c8 = arith.constant 8 : index
    %c0_38 = arith.constant 0 : index
    %c0_39 = arith.constant 0 : index
    %62 = vector.load %arg7[%c8, %c0_38, %c0_39] : memref<9x64x1xf32, #tpu.memory_space<vmem>>, vector<1x64x1xf32>
    %63 = vector.shape_cast %62 : vector<1x64x1xf32> to vector<64x1xf32>
    %64 = vector.broadcast %63 : vector<64x1xf32> to vector<64x64xf32>
    %65 = arith.mulf %10, %64 : vector<64x64xf32>
    %66 = arith.truncf %65 : vector<64x64xf32> to vector<64x64xbf16>
    %c0_40 = arith.constant 0 : index
    %c512 = arith.constant 512 : index
    %67 = vector.load %arg28[%c0_40, %c512] : memref<64x576xbf16, #tpu.memory_space<vmem>>, vector<64x64xbf16>
    tpu.vector_store %arg28[%c0_40, %c512], %66 {strides = array<i32>} : memref<64x576xbf16, #tpu.memory_space<vmem>>, vector<64x64xbf16>,
    %c0_41 = arith.constant 0 : index
    %c0_42 = arith.constant 0 : index
    %68 = vector.load %arg28[%c0_41, %c0_42] : memref<64x576xbf16, #tpu.memory_space<vmem>>, vector<64x576xbf16>
    %cst_43 = arith.constant dense<0.000000e+00> : vector<64x64xf32>
    %69 = tpu.matmul %68, %2, %cst_43 {dimension_numbers = #tpu.dot_dimension_numbers<[1], [0], [0], [1], [0, 0, 1, 1], [], []>} : vector<64x576xbf16>, vector<576x64xbf16>, vector<64x64xf32> -> vector<64x64xf32>
    %c0_44 = arith.constant 0 : index
    %c0_45 = arith.constant 0 : index
    %70 = vector.load %arg8[%c0_44, %c0_45] : memref<64x1xf32, #tpu.memory_space<vmem>>, vector<64x1xf32>
    %71 = vector.broadcast %70 : vector<64x1xf32> to vector<64x64xf32>
    %72 = arith.addf %69, %71 : vector<64x64xf32>
    %cst_46 = arith.constant 0.000000e+00 : f32
    %73 = vector.broadcast %cst_46 : f32 to vector<64x64xf32>
    %74 = arith.maximumf %72, %73 : vector<64x64xf32>
    %c0_47 = arith.constant 0 : index
    %c0_48 = arith.constant 0 : index
    %75 = vector.load %arg9[%c0_47, %c0_48] : memref<16x64xbf16, #tpu.memory_space<vmem>>, vector<16x64xbf16>
    %76 = arith.truncf %74 : vector<64x64xf32> to vector<64x64xbf16>
    %cst_49 = arith.constant dense<0.000000e+00> : vector<16x64xf32>
    %77 = tpu.matmul %75, %76, %cst_49 {dimension_numbers = #tpu.dot_dimension_numbers<[1], [0], [0], [1], [0, 0, 1, 1], [], []>} : vector<16x64xbf16>, vector<64x64xbf16>, vector<16x64xf32> -> vector<16x64xf32>
    %c0_50 = arith.constant 0 : index
    %c0_51 = arith.constant 0 : index
    %78 = vector.load %arg10[%c0_50, %c0_51] : memref<16x1xf32, #tpu.memory_space<vmem>>, vector<16x1xf32>
    %79 = vector.broadcast %78 : vector<16x1xf32> to vector<16x64xf32>
    %80 = arith.addf %77, %79 : vector<16x64xf32>
    %81 = arith.truncf %11 : vector<16x64xf32> to vector<16x64xbf16>
    %cst_52 = arith.constant dense<0.000000e+00> : vector<8x16xf32>
    %82 = tpu.matmul %3, %81, %cst_52 {dimension_numbers = #tpu.dot_dimension_numbers<[1], [1], [0], [0], [0, 0, 1, 0], [], []>} : vector<8x64xbf16>, vector<16x64xbf16>, vector<8x16xf32> -> vector<8x16xf32>
    %cst_53 = arith.constant 1.250000e-01 : f32
    %83 = vector.broadcast %cst_53 : f32 to vector<8x16xf32>
    %84 = arith.mulf %82, %83 : vector<8x16xf32>
    %c0_54 = arith.constant 0 : index
    %c0_55 = arith.constant 0 : index
    %85 = vector.load %arg11[%c0_54, %c0_55] : memref<8x16xf32, #tpu.memory_space<vmem>>, vector<8x16xf32>
    %86 = arith.addf %84, %85 : vector<8x16xf32>
    %87 = arith.truncf %12 : vector<16x64xf32> to vector<16x64xbf16>
    %cst_56 = arith.constant dense<0.000000e+00> : vector<8x16xf32>
    %88 = tpu.matmul %3, %87, %cst_56 {dimension_numbers = #tpu.dot_dimension_numbers<[1], [1], [0], [0], [0, 0, 1, 0], [], []>} : vector<8x64xbf16>, vector<16x64xbf16>, vector<8x16xf32> -> vector<8x16xf32>
    %cst_57 = arith.constant 1.250000e-01 : f32
    %89 = vector.broadcast %cst_57 : f32 to vector<8x16xf32>
    %90 = arith.mulf %88, %89 : vector<8x16xf32>
    %c0_58 = arith.constant 0 : index
    %c0_59 = arith.constant 0 : index
    %91 = vector.load %arg12[%c0_58, %c0_59] : memref<8x16xf32, #tpu.memory_space<vmem>>, vector<8x16xf32>
    %92 = arith.addf %90, %91 : vector<8x16xf32>
    %93 = arith.truncf %13 : vector<32x64xf32> to vector<32x64xbf16>
    %cst_60 = arith.constant dense<0.000000e+00> : vector<32x8xf32>
    %94 = tpu.matmul %93, %3, %cst_60 {dimension_numbers = #tpu.dot_dimension_numbers<[1], [1], [0], [0], [0, 0, 1, 0], [], []>} : vector<32x64xbf16>, vector<8x64xbf16>, vector<32x8xf32> -> vector<32x8xf32>
    %cst_61 = arith.constant 1.250000e-01 : f32
    %95 = vector.broadcast %cst_61 : f32 to vector<32x8xf32>
    %96 = arith.mulf %94, %95 : vector<32x8xf32>
    %97 = arith.truncf %11 : vector<16x64xf32> to vector<16x64xbf16>
    %cst_62 = arith.constant dense<0.000000e+00> : vector<8x16xf32>
    %98 = tpu.matmul %4, %97, %cst_62 {dimension_numbers = #tpu.dot_dimension_numbers<[1], [1], [0], [0], [0, 0, 1, 0], [], []>} : vector<8x64xbf16>, vector<16x64xbf16>, vector<8x16xf32> -> vector<8x16xf32>
    %cst_63 = arith.constant 1.250000e-01 : f32
    %99 = vector.broadcast %cst_63 : f32 to vector<8x16xf32>
    %100 = arith.mulf %98, %99 : vector<8x16xf32>
    %c0_64 = arith.constant 0 : index
    %c0_65 = arith.constant 0 : index
    %101 = vector.load %arg13[%c0_64, %c0_65] : memref<8x16xf32, #tpu.memory_space<vmem>>, vector<8x16xf32>
    %102 = arith.addf %100, %101 : vector<8x16xf32>
    %103 = arith.truncf %12 : vector<16x64xf32> to vector<16x64xbf16>
    %cst_66 = arith.constant dense<0.000000e+00> : vector<8x16xf32>
    %104 = tpu.matmul %4, %103, %cst_66 {dimension_numbers = #tpu.dot_dimension_numbers<[1], [1], [0], [0], [0, 0, 1, 0], [], []>} : vector<8x64xbf16>, vector<16x64xbf16>, vector<8x16xf32> -> vector<8x16xf32>
    %cst_67 = arith.constant 1.250000e-01 : f32
    %105 = vector.broadcast %cst_67 : f32 to vector<8x16xf32>
    %106 = arith.mulf %104, %105 : vector<8x16xf32>
    %c0_68 = arith.constant 0 : index
    %c0_69 = arith.constant 0 : index
    %107 = vector.load %arg14[%c0_68, %c0_69] : memref<8x16xf32, #tpu.memory_space<vmem>>, vector<8x16xf32>
    %108 = arith.addf %106, %107 : vector<8x16xf32>
    %109 = arith.truncf %13 : vector<32x64xf32> to vector<32x64xbf16>
    %cst_70 = arith.constant dense<0.000000e+00> : vector<32x8xf32>
    %110 = tpu.matmul %109, %4, %cst_70 {dimension_numbers = #tpu.dot_dimension_numbers<[1], [1], [0], [0], [0, 0, 1, 0], [], []>} : vector<32x64xbf16>, vector<8x64xbf16>, vector<32x8xf32> -> vector<32x8xf32>
    %cst_71 = arith.constant 1.250000e-01 : f32
    %111 = vector.broadcast %cst_71 : f32 to vector<32x8xf32>
    %112 = arith.mulf %110, %111 : vector<32x8xf32>
    %113 = vector.extract_strided_slice %86 {offsets = [0, 0], sizes = [8, 8], strides = [1, 1]} : vector<8x16xf32> to vector<8x8xf32>
    %114 = vector.extract_strided_slice %92 {offsets = [0, 0], sizes = [8, 8], strides = [1, 1]} : vector<8x16xf32> to vector<8x8xf32>
    %115 = vector.extract_strided_slice %96 {offsets = [0, 0], sizes = [16, 8], strides = [1, 1]} : vector<32x8xf32> to vector<16x8xf32>
    %116 = arith.truncf %113 : vector<8x8xf32> to vector<8x8xbf16>
    %117 = arith.truncf %114 : vector<8x8xf32> to vector<8x8xbf16>
    %cst_72 = arith.constant dense<0.000000e+00> : vector<8x8xf32>
    %118 = tpu.matmul %116, %117, %cst_72 {dimension_numbers = #tpu.dot_dimension_numbers<[1], [1], [0], [0], [0, 0, 1, 0], [], []>} : vector<8x8xbf16>, vector<8x8xbf16>, vector<8x8xf32> -> vector<8x8xf32>
    %cst_73 = arith.constant 0.353553385 : f32
    %119 = vector.broadcast %cst_73 : f32 to vector<8x8xf32>
    %120 = arith.mulf %118, %119 : vector<8x8xf32>
    %cst_74 = arith.constant dense<0xFF800000> : vector<8xf32>
    %121 = vector.multi_reduction <maximumf>, %120, %cst_74 [1] : vector<8x8xf32> to vector<8xf32>
    %122 = vector.shape_cast %121 : vector<8xf32> to vector<8x1xf32>
    %123 = vector.broadcast %122 : vector<8x1xf32> to vector<8x8xf32>
    %124 = arith.subf %120, %123 : vector<8x8xf32>
    %125 = math.exp %124 : vector<8x8xf32>
    %cst_75 = arith.constant dense<0.000000e+00> : vector<8xf32>
    %126 = vector.multi_reduction <add>, %125, %cst_75 [1] : vector<8x8xf32> to vector<8xf32>
    %127 = vector.shape_cast %126 : vector<8xf32> to vector<8x1xf32>
    %128 = tpu.reciprocal %127 {approx = true} : vector<8x1xf32> -> vector<8x1xf32>
    %129 = vector.broadcast %128 : vector<8x1xf32> to vector<8x8xf32>
    %130 = arith.mulf %125, %129 : vector<8x8xf32>
    %131 = arith.truncf %115 : vector<16x8xf32> to vector<16x8xbf16>
    %132 = arith.truncf %130 : vector<8x8xf32> to vector<8x8xbf16>
    %cst_76 = arith.constant dense<0.000000e+00> : vector<16x8xf32>
    %133 = tpu.matmul %131, %132, %cst_76 {dimension_numbers = #tpu.dot_dimension_numbers<[1], [1], [0], [0], [0, 0, 1, 0], [], []>} : vector<16x8xbf16>, vector<8x8xbf16>, vector<16x8xf32> -> vector<16x8xf32>
    %cst_77 = arith.constant 0.000000e+00 : f32
    %134 = vector.broadcast %cst_77 : f32 to vector<16x8xf32>
    %135 = arith.maximumf %133, %134 : vector<16x8xf32>
    %136 = vector.extract_strided_slice %86 {offsets = [0, 8], sizes = [8, 8], strides = [1, 1]} : vector<8x16xf32> to vector<8x8xf32>
    %137 = vector.extract_strided_slice %92 {offsets = [0, 8], sizes = [8, 8], strides = [1, 1]} : vector<8x16xf32> to vector<8x8xf32>
    %138 = vector.extract_strided_slice %96 {offsets = [16, 0], sizes = [16, 8], strides = [1, 1]} : vector<32x8xf32> to vector<16x8xf32>
    %139 = arith.truncf %136 : vector<8x8xf32> to vector<8x8xbf16>
    %140 = arith.truncf %137 : vector<8x8xf32> to vector<8x8xbf16>
    %cst_78 = arith.constant dense<0.000000e+00> : vector<8x8xf32>
    %141 = tpu.matmul %139, %140, %cst_78 {dimension_numbers = #tpu.dot_dimension_numbers<[1], [1], [0], [0], [0, 0, 1, 0], [], []>} : vector<8x8xbf16>, vector<8x8xbf16>, vector<8x8xf32> -> vector<8x8xf32>
    %cst_79 = arith.constant 0.353553385 : f32
    %142 = vector.broadcast %cst_79 : f32 to vector<8x8xf32>
    %143 = arith.mulf %141, %142 : vector<8x8xf32>
    %cst_80 = arith.constant dense<0xFF800000> : vector<8xf32>
    %144 = vector.multi_reduction <maximumf>, %143, %cst_80 [1] : vector<8x8xf32> to vector<8xf32>
    %145 = vector.shape_cast %144 : vector<8xf32> to vector<8x1xf32>
    %146 = vector.broadcast %145 : vector<8x1xf32> to vector<8x8xf32>
    %147 = arith.subf %143, %146 : vector<8x8xf32>
    %148 = math.exp %147 : vector<8x8xf32>
    %cst_81 = arith.constant dense<0.000000e+00> : vector<8xf32>
    %149 = vector.multi_reduction <add>, %148, %cst_81 [1] : vector<8x8xf32> to vector<8xf32>
    %150 = vector.shape_cast %149 : vector<8xf32> to vector<8x1xf32>
    %151 = tpu.reciprocal %150 {approx = true} : vector<8x1xf32> -> vector<8x1xf32>
    %152 = vector.broadcast %151 : vector<8x1xf32> to vector<8x8xf32>
    %153 = arith.mulf %148, %152 : vector<8x8xf32>
    %154 = arith.truncf %138 : vector<16x8xf32> to vector<16x8xbf16>
    %155 = arith.truncf %153 : vector<8x8xf32> to vector<8x8xbf16>
    %cst_82 = arith.constant dense<0.000000e+00> : vector<16x8xf32>
    %156 = tpu.matmul %154, %155, %cst_82 {dimension_numbers = #tpu.dot_dimension_numbers<[1], [1], [0], [0], [0, 0, 1, 0], [], []>} : vector<16x8xbf16>, vector<8x8xbf16>, vector<16x8xf32> -> vector<16x8xf32>
    %cst_83 = arith.constant 0.000000e+00 : f32
    %157 = vector.broadcast %cst_83 : f32 to vector<16x8xf32>
    %158 = arith.maximumf %156, %157 : vector<16x8xf32>
    %159 = tpu.concatenate %135, %158 in 0 : vector<16x8xf32>, vector<16x8xf32> -> vector<32x8xf32>
    %c0_84 = arith.constant 0 : index
    %c0_85 = arith.constant 0 : index
    %160 = vector.load %arg15[%c0_84, %c0_85] : memref<32x32xbf16, #tpu.memory_space<vmem>>, vector<32x32xbf16>
    %161 = arith.truncf %159 : vector<32x8xf32> to vector<32x8xbf16>
    %cst_86 = arith.constant dense<0.000000e+00> : vector<32x8xf32>
    %162 = tpu.matmul %160, %161, %cst_86 {dimension_numbers = #tpu.dot_dimension_numbers<[1], [0], [0], [1], [0, 0, 1, 1], [], []>} : vector<32x32xbf16>, vector<32x8xbf16>, vector<32x8xf32> -> vector<32x8xf32>
    %c0_87 = arith.constant 0 : index
    %c0_88 = arith.constant 0 : index
    %163 = vector.load %arg16[%c0_87, %c0_88] : memref<32x1xf32, #tpu.memory_space<vmem>>, vector<32x1xf32>
    %164 = vector.broadcast %163 : vector<32x1xf32> to vector<32x8xf32>
    %165 = arith.addf %162, %164 : vector<32x8xf32>
    %166 = vector.extract_strided_slice %102 {offsets = [0, 0], sizes = [8, 8], strides = [1, 1]} : vector<8x16xf32> to vector<8x8xf32>
    %167 = vector.extract_strided_slice %108 {offsets = [0, 0], sizes = [8, 8], strides = [1, 1]} : vector<8x16xf32> to vector<8x8xf32>
    %168 = vector.extract_strided_slice %112 {offsets = [0, 0], sizes = [16, 8], strides = [1, 1]} : vector<32x8xf32> to vector<16x8xf32>
    %169 = arith.truncf %166 : vector<8x8xf32> to vector<8x8xbf16>
    %170 = arith.truncf %167 : vector<8x8xf32> to vector<8x8xbf16>
    %cst_89 = arith.constant dense<0.000000e+00> : vector<8x8xf32>
    %171 = tpu.matmul %169, %170, %cst_89 {dimension_numbers = #tpu.dot_dimension_numbers<[1], [1], [0], [0], [0, 0, 1, 0], [], []>} : vector<8x8xbf16>, vector<8x8xbf16>, vector<8x8xf32> -> vector<8x8xf32>
    %cst_90 = arith.constant 0.353553385 : f32
    %172 = vector.broadcast %cst_90 : f32 to vector<8x8xf32>
    %173 = arith.mulf %171, %172 : vector<8x8xf32>
    %cst_91 = arith.constant dense<0xFF800000> : vector<8xf32>
    %174 = vector.multi_reduction <maximumf>, %173, %cst_91 [1] : vector<8x8xf32> to vector<8xf32>
    %175 = vector.shape_cast %174 : vector<8xf32> to vector<8x1xf32>
    %176 = vector.broadcast %175 : vector<8x1xf32> to vector<8x8xf32>
    %177 = arith.subf %173, %176 : vector<8x8xf32>
    %178 = math.exp %177 : vector<8x8xf32>
    %cst_92 = arith.constant dense<0.000000e+00> : vector<8xf32>
    %179 = vector.multi_reduction <add>, %178, %cst_92 [1] : vector<8x8xf32> to vector<8xf32>
    %180 = vector.shape_cast %179 : vector<8xf32> to vector<8x1xf32>
    %181 = tpu.reciprocal %180 {approx = true} : vector<8x1xf32> -> vector<8x1xf32>
    %182 = vector.broadcast %181 : vector<8x1xf32> to vector<8x8xf32>
    %183 = arith.mulf %178, %182 : vector<8x8xf32>
    %184 = arith.truncf %168 : vector<16x8xf32> to vector<16x8xbf16>
    %185 = arith.truncf %183 : vector<8x8xf32> to vector<8x8xbf16>
    %cst_93 = arith.constant dense<0.000000e+00> : vector<16x8xf32>
    %186 = tpu.matmul %184, %185, %cst_93 {dimension_numbers = #tpu.dot_dimension_numbers<[1], [1], [0], [0], [0, 0, 1, 0], [], []>} : vector<16x8xbf16>, vector<8x8xbf16>, vector<16x8xf32> -> vector<16x8xf32>
    %cst_94 = arith.constant 0.000000e+00 : f32
    %187 = vector.broadcast %cst_94 : f32 to vector<16x8xf32>
    %188 = arith.maximumf %186, %187 : vector<16x8xf32>
    %189 = vector.extract_strided_slice %102 {offsets = [0, 8], sizes = [8, 8], strides = [1, 1]} : vector<8x16xf32> to vector<8x8xf32>
    %190 = vector.extract_strided_slice %108 {offsets = [0, 8], sizes = [8, 8], strides = [1, 1]} : vector<8x16xf32> to vector<8x8xf32>
    %191 = vector.extract_strided_slice %112 {offsets = [16, 0], sizes = [16, 8], strides = [1, 1]} : vector<32x8xf32> to vector<16x8xf32>
    %192 = arith.truncf %189 : vector<8x8xf32> to vector<8x8xbf16>
    %193 = arith.truncf %190 : vector<8x8xf32> to vector<8x8xbf16>
    %cst_95 = arith.constant dense<0.000000e+00> : vector<8x8xf32>
    %194 = tpu.matmul %192, %193, %cst_95 {dimension_numbers = #tpu.dot_dimension_numbers<[1], [1], [0], [0], [0, 0, 1, 0], [], []>} : vector<8x8xbf16>, vector<8x8xbf16>, vector<8x8xf32> -> vector<8x8xf32>
    %cst_96 = arith.constant 0.353553385 : f32
    %195 = vector.broadcast %cst_96 : f32 to vector<8x8xf32>
    %196 = arith.mulf %194, %195 : vector<8x8xf32>
    %cst_97 = arith.constant dense<0xFF800000> : vector<8xf32>
    %197 = vector.multi_reduction <maximumf>, %196, %cst_97 [1] : vector<8x8xf32> to vector<8xf32>
    %198 = vector.shape_cast %197 : vector<8xf32> to vector<8x1xf32>
    %199 = vector.broadcast %198 : vector<8x1xf32> to vector<8x8xf32>
    %200 = arith.subf %196, %199 : vector<8x8xf32>
    %201 = math.exp %200 : vector<8x8xf32>
    %cst_98 = arith.constant dense<0.000000e+00> : vector<8xf32>
    %202 = vector.multi_reduction <add>, %201, %cst_98 [1] : vector<8x8xf32> to vector<8xf32>
    %203 = vector.shape_cast %202 : vector<8xf32> to vector<8x1xf32>
    %204 = tpu.reciprocal %203 {approx = true} : vector<8x1xf32> -> vector<8x1xf32>
    %205 = vector.broadcast %204 : vector<8x1xf32> to vector<8x8xf32>
    %206 = arith.mulf %201, %205 : vector<8x8xf32>
    %207 = arith.truncf %191 : vector<16x8xf32> to vector<16x8xbf16>
    %208 = arith.truncf %206 : vector<8x8xf32> to vector<8x8xbf16>
    %cst_99 = arith.constant dense<0.000000e+00> : vector<16x8xf32>
    %209 = tpu.matmul %207, %208, %cst_99 {dimension_numbers = #tpu.dot_dimension_numbers<[1], [1], [0], [0], [0, 0, 1, 0], [], []>} : vector<16x8xbf16>, vector<8x8xbf16>, vector<16x8xf32> -> vector<16x8xf32>
    %cst_100 = arith.constant 0.000000e+00 : f32
    %210 = vector.broadcast %cst_100 : f32 to vector<16x8xf32>
    %211 = arith.maximumf %209, %210 : vector<16x8xf32>
    %212 = tpu.concatenate %188, %211 in 0 : vector<16x8xf32>, vector<16x8xf32> -> vector<32x8xf32>
    %c0_101 = arith.constant 0 : index
    %c0_102 = arith.constant 0 : index
    %213 = vector.load %arg17[%c0_101, %c0_102] : memref<32x32xbf16, #tpu.memory_space<vmem>>, vector<32x32xbf16>
    %214 = arith.truncf %212 : vector<32x8xf32> to vector<32x8xbf16>
    %cst_103 = arith.constant dense<0.000000e+00> : vector<32x8xf32>
    %215 = tpu.matmul %213, %214, %cst_103 {dimension_numbers = #tpu.dot_dimension_numbers<[1], [0], [0], [1], [0, 0, 1, 1], [], []>} : vector<32x32xbf16>, vector<32x8xbf16>, vector<32x8xf32> -> vector<32x8xf32>
    %c0_104 = arith.constant 0 : index
    %c0_105 = arith.constant 0 : index
    %216 = vector.load %arg18[%c0_104, %c0_105] : memref<32x1xf32, #tpu.memory_space<vmem>>, vector<32x1xf32>
    %217 = vector.broadcast %216 : vector<32x1xf32> to vector<32x8xf32>
    %218 = arith.addf %215, %217 : vector<32x8xf32>
    %219 = arith.truncf %165 : vector<32x8xf32> to vector<32x8xbf16>
    %cst_106 = arith.constant dense<0.000000e+00> : vector<32x64xf32>
    %220 = tpu.matmul %219, %3, %cst_106 {dimension_numbers = #tpu.dot_dimension_numbers<[1], [0], [0], [1], [0, 0, 1, 1], [], []>} : vector<32x8xbf16>, vector<8x64xbf16>, vector<32x64xf32> -> vector<32x64xf32>
    %221 = arith.addf %13, %220 : vector<32x64xf32>
    %222 = arith.truncf %218 : vector<32x8xf32> to vector<32x8xbf16>
    %cst_107 = arith.constant dense<0.000000e+00> : vector<32x64xf32>
    %223 = tpu.matmul %222, %4, %cst_107 {dimension_numbers = #tpu.dot_dimension_numbers<[1], [0], [0], [1], [0, 0, 1, 1], [], []>} : vector<32x8xbf16>, vector<8x64xbf16>, vector<32x64xf32> -> vector<32x64xf32>
    %224 = arith.addf %221, %223 : vector<32x64xf32>
    %c0_108 = arith.constant 0 : index
    %c0_109 = arith.constant 0 : index
    %225 = vector.load %arg19[%c0_108, %c0_109] : memref<16x32xbf16, #tpu.memory_space<vmem>>, vector<16x32xbf16>
    %cst_110 = arith.constant 0.000000e+00 : f32
    %226 = vector.broadcast %cst_110 : f32 to vector<32x64xf32>
    %227 = arith.maximumf %224, %226 : vector<32x64xf32>
    %228 = arith.truncf %227 : vector<32x64xf32> to vector<32x64xbf16>
    %cst_111 = arith.constant dense<0.000000e+00> : vector<16x64xf32>
    %229 = tpu.matmul %225, %228, %cst_111 {dimension_numbers = #tpu.dot_dimension_numbers<[1], [0], [0], [1], [0, 0, 1, 1], [], []>} : vector<16x32xbf16>, vector<32x64xbf16>, vector<16x64xf32> -> vector<16x64xf32>
    %c0_112 = arith.constant 0 : index
    %c0_113 = arith.constant 0 : index
    %230 = vector.load %arg20[%c0_112, %c0_113] : memref<16x1xf32, #tpu.memory_space<vmem>>, vector<16x1xf32>
    %231 = vector.broadcast %230 : vector<16x1xf32> to vector<16x64xf32>
    %232 = arith.addf %229, %231 : vector<16x64xf32>
    %cst_114 = arith.constant 3.000000e+00 : f32
    %233 = vector.broadcast %cst_114 : f32 to vector<16x64xf32>
    %234 = arith.addf %232, %233 : vector<16x64xf32>
    %cst_115 = arith.constant 0.000000e+00 : f32
    %cst_116 = arith.constant 6.000000e+00 : f32
    %235 = vector.broadcast %cst_115 : f32 to vector<16x64xf32>
    %236 = arith.maximumf %235, %234 : vector<16x64xf32>
    %237 = vector.broadcast %cst_116 : f32 to vector<16x64xf32>
    %238 = arith.minimumf %237, %236 : vector<16x64xf32>
    %cst_117 = arith.constant 0.166666672 : f32
    %239 = vector.broadcast %cst_117 : f32 to vector<16x64xf32>
    %240 = arith.mulf %238, %239 : vector<16x64xf32>
    %241 = arith.mulf %240, %80 : vector<16x64xf32>
    %242 = arith.addf %1, %241 : vector<16x64xf32>
    %c0_118 = arith.constant 0 : index
    %c0_119 = arith.constant 0 : index
    %243 = vector.load %arg21[%c0_118, %c0_119] : memref<32x16xbf16, #tpu.memory_space<vmem>>, vector<32x16xbf16>
    %244 = arith.truncf %242 : vector<16x64xf32> to vector<16x64xbf16>
    %cst_120 = arith.constant dense<0.000000e+00> : vector<32x64xf32>
    %245 = tpu.matmul %243, %244, %cst_120 {dimension_numbers = #tpu.dot_dimension_numbers<[1], [0], [0], [1], [0, 0, 1, 1], [], []>} : vector<32x16xbf16>, vector<16x64xbf16>, vector<32x64xf32> -> vector<32x64xf32>
    %c0_121 = arith.constant 0 : index
    %c0_122 = arith.constant 0 : index
    %246 = vector.load %arg22[%c0_121, %c0_122] : memref<32x1xf32, #tpu.memory_space<vmem>>, vector<32x1xf32>
    %247 = vector.broadcast %246 : vector<32x1xf32> to vector<32x64xf32>
    %248 = arith.addf %245, %247 : vector<32x64xf32>
    %c0_123 = arith.constant 0 : index
    %c0_124 = arith.constant 0 : index
    %c0_125 = arith.constant 0 : index
    %249 = vector.load %arg23[%c0_123, %c0_124, %c0_125] : memref<9x32x1xf32, #tpu.memory_space<vmem>>, vector<1x32x1xf32>
    %250 = vector.shape_cast %249 : vector<1x32x1xf32> to vector<32x1xf32>
    %251 = vector.broadcast %250 : vector<32x1xf32> to vector<32x64xf32>
    %252 = arith.mulf %248, %251 : vector<32x64xf32>
    %253 = arith.truncf %252 : vector<32x64xf32> to vector<32x64xbf16>
    %c0_126 = arith.constant 0 : index
    %c0_127 = arith.constant 0 : index
    %254 = vector.load %arg29[%c0_126, %c0_127] : memref<32x576xbf16, #tpu.memory_space<vmem>>, vector<32x64xbf16>
    tpu.vector_store %arg29[%c0_126, %c0_127], %253 {strides = array<i32>} : memref<32x576xbf16, #tpu.memory_space<vmem>>, vector<32x64xbf16>,
    %c1_128 = arith.constant 1 : index
    %c0_129 = arith.constant 0 : index
    %c0_130 = arith.constant 0 : index
    %255 = vector.load %arg23[%c1_128, %c0_129, %c0_130] : memref<9x32x1xf32, #tpu.memory_space<vmem>>, vector<1x32x1xf32>
    %256 = vector.shape_cast %255 : vector<1x32x1xf32> to vector<32x1xf32>
    %257 = vector.broadcast %256 : vector<32x1xf32> to vector<32x64xf32>
    %258 = arith.mulf %248, %257 : vector<32x64xf32>
    %259 = arith.truncf %258 : vector<32x64xf32> to vector<32x64xbf16>
    %c0_131 = arith.constant 0 : index
    %c64_132 = arith.constant 64 : index
    %260 = vector.load %arg29[%c0_131, %c64_132] : memref<32x576xbf16, #tpu.memory_space<vmem>>, vector<32x64xbf16>
    tpu.vector_store %arg29[%c0_131, %c64_132], %259 {strides = array<i32>} : memref<32x576xbf16, #tpu.memory_space<vmem>>, vector<32x64xbf16>,
    %c2_133 = arith.constant 2 : index
    %c0_134 = arith.constant 0 : index
    %c0_135 = arith.constant 0 : index
    %261 = vector.load %arg23[%c2_133, %c0_134, %c0_135] : memref<9x32x1xf32, #tpu.memory_space<vmem>>, vector<1x32x1xf32>
    %262 = vector.shape_cast %261 : vector<1x32x1xf32> to vector<32x1xf32>
    %263 = vector.broadcast %262 : vector<32x1xf32> to vector<32x64xf32>
    %264 = arith.mulf %248, %263 : vector<32x64xf32>
    %265 = arith.truncf %264 : vector<32x64xf32> to vector<32x64xbf16>
    %c0_136 = arith.constant 0 : index
    %c128_137 = arith.constant 128 : index
    %266 = vector.load %arg29[%c0_136, %c128_137] : memref<32x576xbf16, #tpu.memory_space<vmem>>, vector<32x64xbf16>
    tpu.vector_store %arg29[%c0_136, %c128_137], %265 {strides = array<i32>} : memref<32x576xbf16, #tpu.memory_space<vmem>>, vector<32x64xbf16>,
    %c3_138 = arith.constant 3 : index
    %c0_139 = arith.constant 0 : index
    %c0_140 = arith.constant 0 : index
    %267 = vector.load %arg23[%c3_138, %c0_139, %c0_140] : memref<9x32x1xf32, #tpu.memory_space<vmem>>, vector<1x32x1xf32>
    %268 = vector.shape_cast %267 : vector<1x32x1xf32> to vector<32x1xf32>
    %269 = vector.broadcast %268 : vector<32x1xf32> to vector<32x64xf32>
    %270 = arith.mulf %248, %269 : vector<32x64xf32>
    %271 = arith.truncf %270 : vector<32x64xf32> to vector<32x64xbf16>
    %c0_141 = arith.constant 0 : index
    %c192_142 = arith.constant 192 : index
    %272 = vector.load %arg29[%c0_141, %c192_142] : memref<32x576xbf16, #tpu.memory_space<vmem>>, vector<32x64xbf16>
    tpu.vector_store %arg29[%c0_141, %c192_142], %271 {strides = array<i32>} : memref<32x576xbf16, #tpu.memory_space<vmem>>, vector<32x64xbf16>,
    %c4_143 = arith.constant 4 : index
    %c0_144 = arith.constant 0 : index
    %c0_145 = arith.constant 0 : index
    %273 = vector.load %arg23[%c4_143, %c0_144, %c0_145] : memref<9x32x1xf32, #tpu.memory_space<vmem>>, vector<1x32x1xf32>
    %274 = vector.shape_cast %273 : vector<1x32x1xf32> to vector<32x1xf32>
    %275 = vector.broadcast %274 : vector<32x1xf32> to vector<32x64xf32>
    %276 = arith.mulf %248, %275 : vector<32x64xf32>
    %277 = arith.truncf %276 : vector<32x64xf32> to vector<32x64xbf16>
    %c0_146 = arith.constant 0 : index
    %c256_147 = arith.constant 256 : index
    %278 = vector.load %arg29[%c0_146, %c256_147] : memref<32x576xbf16, #tpu.memory_space<vmem>>, vector<32x64xbf16>
    tpu.vector_store %arg29[%c0_146, %c256_147], %277 {strides = array<i32>} : memref<32x576xbf16, #tpu.memory_space<vmem>>, vector<32x64xbf16>,
    %c5_148 = arith.constant 5 : index
    %c0_149 = arith.constant 0 : index
    %c0_150 = arith.constant 0 : index
    %279 = vector.load %arg23[%c5_148, %c0_149, %c0_150] : memref<9x32x1xf32, #tpu.memory_space<vmem>>, vector<1x32x1xf32>
    %280 = vector.shape_cast %279 : vector<1x32x1xf32> to vector<32x1xf32>
    %281 = vector.broadcast %280 : vector<32x1xf32> to vector<32x64xf32>
    %282 = arith.mulf %248, %281 : vector<32x64xf32>
    %283 = arith.truncf %282 : vector<32x64xf32> to vector<32x64xbf16>
    %c0_151 = arith.constant 0 : index
    %c320_152 = arith.constant 320 : index
    %284 = vector.load %arg29[%c0_151, %c320_152] : memref<32x576xbf16, #tpu.memory_space<vmem>>, vector<32x64xbf16>
    tpu.vector_store %arg29[%c0_151, %c320_152], %283 {strides = array<i32>} : memref<32x576xbf16, #tpu.memory_space<vmem>>, vector<32x64xbf16>,
    %c6_153 = arith.constant 6 : index
    %c0_154 = arith.constant 0 : index
    %c0_155 = arith.constant 0 : index
    %285 = vector.load %arg23[%c6_153, %c0_154, %c0_155] : memref<9x32x1xf32, #tpu.memory_space<vmem>>, vector<1x32x1xf32>
    %286 = vector.shape_cast %285 : vector<1x32x1xf32> to vector<32x1xf32>
    %287 = vector.broadcast %286 : vector<32x1xf32> to vector<32x64xf32>
    %288 = arith.mulf %248, %287 : vector<32x64xf32>
    %289 = arith.truncf %288 : vector<32x64xf32> to vector<32x64xbf16>
    %c0_156 = arith.constant 0 : index
    %c384_157 = arith.constant 384 : index
    %290 = vector.load %arg29[%c0_156, %c384_157] : memref<32x576xbf16, #tpu.memory_space<vmem>>, vector<32x64xbf16>
    tpu.vector_store %arg29[%c0_156, %c384_157], %289 {strides = array<i32>} : memref<32x576xbf16, #tpu.memory_space<vmem>>, vector<32x64xbf16>,
    %c7_158 = arith.constant 7 : index
    %c0_159 = arith.constant 0 : index
    %c0_160 = arith.constant 0 : index
    %291 = vector.load %arg23[%c7_158, %c0_159, %c0_160] : memref<9x32x1xf32, #tpu.memory_space<vmem>>, vector<1x32x1xf32>
    %292 = vector.shape_cast %291 : vector<1x32x1xf32> to vector<32x1xf32>
    %293 = vector.broadcast %292 : vector<32x1xf32> to vector<32x64xf32>
    %294 = arith.mulf %248, %293 : vector<32x64xf32>
    %295 = arith.truncf %294 : vector<32x64xf32> to vector<32x64xbf16>
    %c0_161 = arith.constant 0 : index
    %c448_162 = arith.constant 448 : index
    %296 = vector.load %arg29[%c0_161, %c448_162] : memref<32x576xbf16, #tpu.memory_space<vmem>>, vector<32x64xbf16>
    tpu.vector_store %arg29[%c0_161, %c448_162], %295 {strides = array<i32>} : memref<32x576xbf16, #tpu.memory_space<vmem>>, vector<32x64xbf16>,
    %c8_163 = arith.constant 8 : index
    %c0_164 = arith.constant 0 : index
    %c0_165 = arith.constant 0 : index
    %297 = vector.load %arg23[%c8_163, %c0_164, %c0_165] : memref<9x32x1xf32, #tpu.memory_space<vmem>>, vector<1x32x1xf32>
    %298 = vector.shape_cast %297 : vector<1x32x1xf32> to vector<32x1xf32>
    %299 = vector.broadcast %298 : vector<32x1xf32> to vector<32x64xf32>
    %300 = arith.mulf %248, %299 : vector<32x64xf32>
    %301 = arith.truncf %300 : vector<32x64xf32> to vector<32x64xbf16>
    %c0_166 = arith.constant 0 : index
    %c512_167 = arith.constant 512 : index
    %302 = vector.load %arg29[%c0_166, %c512_167] : memref<32x576xbf16, #tpu.memory_space<vmem>>, vector<32x64xbf16>
    tpu.vector_store %arg29[%c0_166, %c512_167], %301 {strides = array<i32>} : memref<32x576xbf16, #tpu.memory_space<vmem>>, vector<32x64xbf16>,
    %c0_168 = arith.constant 0 : index
    %c0_169 = arith.constant 0 : index
    %303 = vector.load %arg29[%c0_168, %c0_169] : memref<32x576xbf16, #tpu.memory_space<vmem>>, vector<32x576xbf16>
    %cst_170 = arith.constant dense<0.000000e+00> : vector<32x64xf32>
    %304 = tpu.matmul %303, %2, %cst_170 {dimension_numbers = #tpu.dot_dimension_numbers<[1], [0], [0], [1], [0, 0, 1, 1], [], []>} : vector<32x576xbf16>, vector<576x64xbf16>, vector<32x64xf32> -> vector<32x64xf32>
    %c0_171 = arith.constant 0 : index
    %c0_172 = arith.constant 0 : index
    %305 = vector.load %arg24[%c0_171, %c0_172] : memref<32x1xf32, #tpu.memory_space<vmem>>, vector<32x1xf32>
    %306 = vector.broadcast %305 : vector<32x1xf32> to vector<32x64xf32>
    %307 = arith.addf %304, %306 : vector<32x64xf32>
    %cst_173 = arith.constant 0.000000e+00 : f32
    %308 = vector.broadcast %cst_173 : f32 to vector<32x64xf32>
    %309 = arith.maximumf %307, %308 : vector<32x64xf32>
    %c0_174 = arith.constant 0 : index
    %c0_175 = arith.constant 0 : index
    %310 = vector.load %arg25[%c0_174, %c0_175] : memref<16x32xbf16, #tpu.memory_space<vmem>>, vector<16x32xbf16>
    %311 = arith.truncf %309 : vector<32x64xf32> to vector<32x64xbf16>
    %cst_176 = arith.constant dense<0.000000e+00> : vector<16x64xf32>
    %312 = tpu.matmul %310, %311, %cst_176 {dimension_numbers = #tpu.dot_dimension_numbers<[1], [0], [0], [1], [0, 0, 1, 1], [], []>} : vector<16x32xbf16>, vector<32x64xbf16>, vector<16x64xf32> -> vector<16x64xf32>
    %313 = arith.addf %242, %312 : vector<16x64xf32>
    %c0_177 = arith.constant 0 : index
    %c0_178 = arith.constant 0 : index
    %314 = vector.load %arg26[%c0_177, %c0_178] : memref<16x1xf32, #tpu.memory_space<vmem>>, vector<16x1xf32>
    %315 = vector.broadcast %314 : vector<16x1xf32> to vector<16x64xf32>
    %316 = arith.addf %313, %315 : vector<16x64xf32>
    %c0_179 = arith.constant 0 : index
    %c0_180 = arith.constant 0 : index
    %c0_181 = arith.constant 0 : index
    %317 = vector.load %arg27[%c0_179, %c0_180, %c0_181] : memref<1x16x64xf32, #tpu.memory_space<vmem>>, vector<1x16x64xf32>
    %318 = vector.shape_cast %317 : vector<1x16x64xf32> to vector<16x64xf32>
    %319 = vector.shape_cast %316 : vector<16x64xf32> to vector<1x16x64xf32>
    tpu.vector_store %arg27[%c0_179, %c0_180, %c0_181], %319 {strides = array<i32>} : memref<1x16x64xf32, #tpu.memory_space<vmem>>, vector<1x16x64xf32>,
    return
  }
  func.func @transform_0(%arg0: i32) -> (i32, i32, i32) {
    %c0_i32 = arith.constant 0 : i32
    %c0_i32_0 = arith.constant 0 : i32
    %c0_i32_1 = arith.constant 0 : i32
    return %arg0, %c0_i32, %c0_i32_0 : i32, i32, i32
  }
  func.func @transform_1(%arg0: i32) -> (i32, i32) {
    %c0_i32 = arith.constant 0 : i32
    %c0_i32_0 = arith.constant 0 : i32
    %c0_i32_1 = arith.constant 0 : i32
    return %c0_i32, %c0_i32_0 : i32, i32
  }
  func.func @transform_2(%arg0: i32) -> (i32, i32) {
    %c0_i32 = arith.constant 0 : i32
    %c0_i32_0 = arith.constant 0 : i32
    %c0_i32_1 = arith.constant 0 : i32
    return %c0_i32, %c0_i32_0 : i32, i32
  }
  func.func @transform_3(%arg0: i32) -> (i32, i32) {
    %c0_i32 = arith.constant 0 : i32
    %c0_i32_0 = arith.constant 0 : i32
    %c0_i32_1 = arith.constant 0 : i32
    return %c0_i32, %c0_i32_0 : i32, i32
  }
  func.func @transform_4(%arg0: i32) -> (i32, i32) {
    %c0_i32 = arith.constant 0 : i32
    %c0_i32_0 = arith.constant 0 : i32
    %c0_i32_1 = arith.constant 0 : i32
    return %c0_i32, %c0_i32_0 : i32, i32
  }
  func.func @transform_5(%arg0: i32) -> (i32, i32) {
    %c0_i32 = arith.constant 0 : i32
    %c0_i32_0 = arith.constant 0 : i32
    %c0_i32_1 = arith.constant 0 : i32
    return %c0_i32, %c0_i32_0 : i32, i32
  }
  func.func @transform_6(%arg0: i32) -> (i32, i32, i32) {
    %c0_i32 = arith.constant 0 : i32
    %c0_i32_0 = arith.constant 0 : i32
    %c0_i32_1 = arith.constant 0 : i32
    %c0_i32_2 = arith.constant 0 : i32
    return %c0_i32, %c0_i32_0, %c0_i32_1 : i32, i32, i32
  }
  func.func @transform_7(%arg0: i32) -> (i32, i32) {
    %c0_i32 = arith.constant 0 : i32
    %c0_i32_0 = arith.constant 0 : i32
    %c0_i32_1 = arith.constant 0 : i32
    return %c0_i32, %c0_i32_0 : i32, i32
  }
  func.func @transform_8(%arg0: i32) -> (i32, i32) {
    %c0_i32 = arith.constant 0 : i32
    %c0_i32_0 = arith.constant 0 : i32
    %c0_i32_1 = arith.constant 0 : i32
    return %c0_i32, %c0_i32_0 : i32, i32
  }
  func.func @transform_9(%arg0: i32) -> (i32, i32) {
    %c0_i32 = arith.constant 0 : i32
    %c0_i32_0 = arith.constant 0 : i32
    %c0_i32_1 = arith.constant 0 : i32
    return %c0_i32, %c0_i32_0 : i32, i32
  }
  func.func @transform_10(%arg0: i32) -> (i32, i32) {
    %c0_i32 = arith.constant 0 : i32
    %c0_i32_0 = arith.constant 0 : i32
    %c0_i32_1 = arith.constant 0 : i32
    return %c0_i32, %c0_i32_0 : i32, i32
  }
  func.func @transform_11(%arg0: i32) -> (i32, i32) {
    %c0_i32 = arith.constant 0 : i32
    %c0_i32_0 = arith.constant 0 : i32
    %c0_i32_1 = arith.constant 0 : i32
    return %c0_i32, %c0_i32_0 : i32, i32
  }
  func.func @transform_12(%arg0: i32) -> (i32, i32) {
    %c0_i32 = arith.constant 0 : i32
    %c0_i32_0 = arith.constant 0 : i32
    %c0_i32_1 = arith.constant 0 : i32
    return %c0_i32, %c0_i32_0 : i32, i32
  }
  func.func @transform_13(%arg0: i32) -> (i32, i32) {
    %c0_i32 = arith.constant 0 : i32
    %c0_i32_0 = arith.constant 0 : i32
    %c0_i32_1 = arith.constant 0 : i32
    return %c0_i32, %c0_i32_0 : i32, i32
  }
  func.func @transform_14(%arg0: i32) -> (i32, i32) {
    %c0_i32 = arith.constant 0 : i32
    %c0_i32_0 = arith.constant 0 : i32
    %c0_i32_1 = arith.constant 0 : i32
    return %c0_i32, %c0_i32_0 : i32, i32
  }
  func.func @transform_15(%arg0: i32) -> (i32, i32) {
    %c0_i32 = arith.constant 0 : i32
    %c0_i32_0 = arith.constant 0 : i32
    %c0_i32_1 = arith.constant 0 : i32
    return %c0_i32, %c0_i32_0 : i32, i32
  }
  func.func @transform_16(%arg0: i32) -> (i32, i32) {
    %c0_i32 = arith.constant 0 : i32
    %c0_i32_0 = arith.constant 0 : i32
    %c0_i32_1 = arith.constant 0 : i32
    return %c0_i32, %c0_i32_0 : i32, i32
  }
  func.func @transform_17(%arg0: i32) -> (i32, i32) {
    %c0_i32 = arith.constant 0 : i32
    %c0_i32_0 = arith.constant 0 : i32
    %c0_i32_1 = arith.constant 0 : i32
    return %c0_i32, %c0_i32_0 : i32, i32
  }
  func.func @transform_18(%arg0: i32) -> (i32, i32) {
    %c0_i32 = arith.constant 0 : i32
    %c0_i32_0 = arith.constant 0 : i32
    %c0_i32_1 = arith.constant 0 : i32
    return %c0_i32, %c0_i32_0 : i32, i32
  }
  func.func @transform_19(%arg0: i32) -> (i32, i32) {
    %c0_i32 = arith.constant 0 : i32
    %c0_i32_0 = arith.constant 0 : i32
    %c0_i32_1 = arith.constant 0 : i32
    return %c0_i32, %c0_i32_0 : i32, i32
  }
  func.func @transform_20(%arg0: i32) -> (i32, i32) {
    %c0_i32 = arith.constant 0 : i32
    %c0_i32_0 = arith.constant 0 : i32
    %c0_i32_1 = arith.constant 0 : i32
    return %c0_i32, %c0_i32_0 : i32, i32
  }
  func.func @transform_21(%arg0: i32) -> (i32, i32) {
    %c0_i32 = arith.constant 0 : i32
    %c0_i32_0 = arith.constant 0 : i32
    %c0_i32_1 = arith.constant 0 : i32
    return %c0_i32, %c0_i32_0 : i32, i32
  }
  func.func @transform_22(%arg0: i32) -> (i32, i32, i32) {
    %c0_i32 = arith.constant 0 : i32
    %c0_i32_0 = arith.constant 0 : i32
    %c0_i32_1 = arith.constant 0 : i32
    %c0_i32_2 = arith.constant 0 : i32
    return %c0_i32, %c0_i32_0, %c0_i32_1 : i32, i32, i32
  }
  func.func @transform_23(%arg0: i32) -> (i32, i32) {
    %c0_i32 = arith.constant 0 : i32
    %c0_i32_0 = arith.constant 0 : i32
    %c0_i32_1 = arith.constant 0 : i32
    return %c0_i32, %c0_i32_0 : i32, i32
  }
  func.func @transform_24(%arg0: i32) -> (i32, i32) {
    %c0_i32 = arith.constant 0 : i32
    %c0_i32_0 = arith.constant 0 : i32
    %c0_i32_1 = arith.constant 0 : i32
    return %c0_i32, %c0_i32_0 : i32, i32
  }
  func.func @transform_25(%arg0: i32) -> (i32, i32) {
    %c0_i32 = arith.constant 0 : i32
    %c0_i32_0 = arith.constant 0 : i32
    %c0_i32_1 = arith.constant 0 : i32
    return %c0_i32, %c0_i32_0 : i32, i32
  }
  func.func @transform_26(%arg0: i32) -> (i32, i32, i32) {
    %c0_i32 = arith.constant 0 : i32
    %c0_i32_0 = arith.constant 0 : i32
    %c0_i32_1 = arith.constant 0 : i32
    return %arg0, %c0_i32, %c0_i32_0 : i32, i32, i32
  }
}

</mosaic_0001>

<llo_original>
// kernel: block_forward.1
$region0: #{block_forward.1}
  #allocation0 [shape = 'u32[]', space=smem, size = 0x4, offset = 0x4, fixed_abs, tag = 'smem constant byte address 0x4 - core index']
  #allocation1 [shape = 'u32[144,128]{1,0:T(1,128)}', space=vmem, size = 0x12000, scoped, tag = 'internal scratch']
  #allocation2 [shape = 'bf16[64,576]{1,0:T(16,128)(2,1)}', space=vmem, size = 0x14000, scoped, tag = 'scratch operand']
  #allocation3 [shape = 'bf16[32,576]{1,0:T(16,128)(2,1)}', space=vmem, size = 0xa000, scoped, tag = 'scratch operand']
  %s0 = inlined_call_operand.vmem [shape: f32[2,16,64], index: 0, kind: input, shape index: {}]
  %s1 = inlined_call_operand.vmem [shape: bf16[576,64], index: 1, kind: input, shape index: {}]
  %s2 = inlined_call_operand.vmem [shape: bf16[8,64], index: 2, kind: input, shape index: {}]
  %s3 = inlined_call_operand.vmem [shape: bf16[8,64], index: 3, kind: input, shape index: {}]
  %s4 = inlined_call_operand.vmem [shape: bf16[64,16], index: 4, kind: input, shape index: {}]
  %s5 = inlined_call_operand.vmem [shape: f32[64,1], index: 5, kind: input, shape index: {}]
  %s6 = inlined_call_operand.vmem [shape: f32[9,64,1], index: 6, kind: input, shape index: {}]
  %s7 = inlined_call_operand.vmem [shape: f32[64,1], index: 7, kind: input, shape index: {}]
  %s8 = inlined_call_operand.vmem [shape: bf16[16,64], index: 8, kind: input, shape index: {}]
  %s9 = inlined_call_operand.vmem [shape: f32[16,1], index: 9, kind: input, shape index: {}]
  %s10 = inlined_call_operand.vmem [shape: f32[8,16], index: 10, kind: input, shape index: {}]
  %s11 = inlined_call_operand.vmem [shape: f32[8,16], index: 11, kind: input, shape index: {}]
  %s12 = inlined_call_operand.vmem [shape: f32[8,16], index: 12, kind: input, shape index: {}]
  %s13 = inlined_call_operand.vmem [shape: f32[8,16], index: 13, kind: input, shape index: {}]
  %s14 = inlined_call_operand.vmem [shape: bf16[32,32], index: 14, kind: input, shape index: {}]
  %s15 = inlined_call_operand.vmem [shape: f32[32,1], index: 15, kind: input, shape index: {}]
  %s16 = inlined_call_operand.vmem [shape: bf16[32,32], index: 16, kind: input, shape index: {}]
  %s17 = inlined_call_operand.vmem [shape: f32[32,1], index: 17, kind: input, shape index: {}]
  %s18 = inlined_call_operand.vmem [shape: bf16[16,32], index: 18, kind: input, shape index: {}]
  %s19 = inlined_call_operand.vmem [shape: f32[16,1], index: 19, kind: input, shape index: {}]
  %s20 = inlined_call_operand.vmem [shape: bf16[32,16], index: 20, kind: input, shape index: {}]
  %s21 = inlined_call_operand.vmem [shape: f32[32,1], index: 21, kind: input, shape index: {}]
  %s22 = inlined_call_operand.vmem [shape: f32[9,32,1], index: 22, kind: input, shape index: {}]
  %s23 = inlined_call_operand.vmem [shape: f32[32,1], index: 23, kind: input, shape index: {}]
  %s24 = inlined_call_operand.vmem [shape: bf16[16,32], index: 24, kind: input, shape index: {}]
  %s25 = inlined_call_operand.vmem [shape: f32[16,1], index: 25, kind: input, shape index: {}]
  %s26 = inlined_call_operand.vmem [shape: f32[2,16,64], index: 26, kind: output, shape index: {}]
  %s27 = sld [smem:[#allocation0]]
  $region137: #{block_forward.1} parent=0
    _
  %s29 = ssub.s32 1, %s27
  %s30 = scalar_select 0, %s29, %s27
  loop: start=0, step=1, limit=4
  $region2: #{block_forward.1} parent=0 // loop_pre_header
    _
  $region3: #{block_forward.1} parent=0 // loop_header
    %s32 = sphi 0, %s36
    %p33 = scmp.ge.s32.totalorder %s32, 4
    %s42 = sphi 0, %s44
    %s45 = sphi 0, %s42
    %s46 = sphi 0, %s45
    %s62 = sphi 0, %s46
    %s66 = sphi 0, %s66
    %s68 = sphi 0, %s66
    %s69 = sphi 0, %s68
    %s83 = sphi 0, %s69
    %s87 = sphi 0, %s87
    %s89 = sphi 0, %s87
    %s90 = sphi 0, %s89
    %s104 = sphi 0, %s90
    %s108 = sphi 0, %s108
    %s110 = sphi 0, %s108
    %s111 = sphi 0, %s110
    %s125 = sphi 0, %s111
    %s129 = sphi 0, %s129
    %s131 = sphi 0, %s129
    %s132 = sphi 0, %s131
    %s146 = sphi 0, %s132
    %s150 = sphi 0, %s150
    %s152 = sphi 0, %s150
    %s153 = sphi 0, %s152
    %s167 = sphi 0, %s153
    %s171 = sphi 0, %s171
    %s173 = sphi 0, %s171
    %s174 = sphi 0, %s173
    %s188 = sphi 0, %s174
    %s192 = sphi 0, %s192
    %s194 = sphi 0, %s192
    %s195 = sphi 0, %s194
    %s209 = sphi 0, %s195
    %s213 = sphi 0, %s213
    %s215 = sphi 0, %s213
    %s216 = sphi 0, %s215
    %s230 = sphi 0, %s216
    %s234 = sphi 0, %s234
    %s236 = sphi 0, %s234
    %s237 = sphi 0, %s236
    %s251 = sphi 0, %s237
    %s255 = sphi 0, %s255
    %s257 = sphi 0, %s255
    %s258 = sphi 0, %s257
    %s272 = sphi 0, %s258
    %s276 = sphi 0, %s276
    %s278 = sphi 0, %s276
    %s279 = sphi 0, %s278
    %s293 = sphi 0, %s279
    %s297 = sphi 0, %s297
    %s299 = sphi 0, %s297
    %s300 = sphi 0, %s299
    %s314 = sphi 0, %s300
    %s318 = sphi 0, %s318
    %s320 = sphi 0, %s318
    %s321 = sphi 0, %s320
    %s335 = sphi 0, %s321
    %s339 = sphi 0, %s339
    %s341 = sphi 0, %s339
    %s342 = sphi 0, %s341
    %s356 = sphi 0, %s342
    %s360 = sphi 0, %s360
    %s362 = sphi 0, %s360
    %s363 = sphi 0, %s362
    %s377 = sphi 0, %s363
    %s381 = sphi 0, %s381
    %s383 = sphi 0, %s381
    %s384 = sphi 0, %s383
    %s398 = sphi 0, %s384
    %s402 = sphi 0, %s402
    %s404 = sphi 0, %s402
    %s405 = sphi 0, %s404
    %s419 = sphi 0, %s405
    %s423 = sphi 0, %s423
    %s425 = sphi 0, %s423
    %s426 = sphi 0, %s425
    %s440 = sphi 0, %s426
    %s444 = sphi 0, %s444
    %s446 = sphi 0, %s444
    %s447 = sphi 0, %s446
    %s461 = sphi 0, %s447
    %s465 = sphi 0, %s465
    %s467 = sphi 0, %s465
    %s468 = sphi 0, %s467
    %s482 = sphi 0, %s468
    %s486 = sphi 0, %s486
    %s488 = sphi 0, %s486
    %s489 = sphi 0, %s488
    %s503 = sphi 0, %s489
    %s507 = sphi 0, %s507
    %s509 = sphi 0, %s507
    %s510 = sphi 0, %s509
    %s524 = sphi 0, %s510
    %s528 = sphi 0, %s528
    %s530 = sphi 0, %s528
    %s531 = sphi 0, %s530
    %s545 = sphi 0, %s531
    %s549 = sphi 0, %s549
    %s551 = sphi 0, %s549
    %s552 = sphi 0, %s551
    %s566 = sphi 0, %s552
    %s570 = sphi 0, %s570
    %s572 = sphi 0, %s570
    %s573 = sphi 0, %s572
    %s587 = sphi 0, %s573
    %s593 = sphi 0, %s595
    %s596 = sphi 0, %s593
    %s597 = sphi 0, %s596
    %s613 = sphi 0, %s597
  $region4: #{block_forward.1} parent=0 // loop_header_branch
    %35 = sbr.rel (%p33) target = $region8
  $region5: #{block_forward.1} parent=0 // loop_body
    %s37 = ssub.s32 %s32, 1
    %s38 = ssub.s32 %s32, 2
    %s39 = sadd.s32 %s32, 1
    %s40 = ssub.s32 %s32, %s39
    %p41 = scmp.eq.s32.totalorder %s40, 0
    %s43 = sadd.s32 %s42, 1
    %s44 = scalar_select %p41, %s42, %s43
    %p47 = pneg %p41
    %p48 = scmp.eq.s32.totalorder %s32, 1
    %p49 = por %p47, %p48
    %p50 = scmp.ne.s32.totalorder %s42, %s45
    %p51 = scmp.eq.s32.totalorder %s32, 0
    %p52 = por %p50, %p51
    %p53 = scmp.ne.s32.totalorder %s42, %s45
    %p54 = scmp.eq.s32.totalorder %s37, 1
    %p55 = por %p53, %p54
    %p56 = scmp.ne.s32.totalorder %s45, %s46
    %p57 = scmp.eq.s32.totalorder %s37, 0
    %p58 = por %p56, %p57
    %p59 = scmp.ne.s32.totalorder %s45, %s46
    %p60 = scmp.eq.s32.totalorder %s38, 1
    %p61 = por %p59, %p60
    %p63 = scmp.ne.s32.totalorder %s46, %s62
    %p64 = scmp.eq.s32.totalorder %s38, 0
    %p65 = por %p63, %p64
    %s67 = sadd.s32 %s66, 1
    %p70 = scmp.eq.s32.totalorder %s32, 1
    %p71 = scmp.ne.s32.totalorder %s66, %s68
    %p72 = scmp.eq.s32.totalorder %s32, 0
    %p73 = por %p71, %p72
    %p74 = scmp.ne.s32.totalorder %s66, %s68
    %p75 = scmp.eq.s32.totalorder %s37, 1
    %p76 = por %p74, %p75
    %p77 = scmp.ne.s32.totalorder %s68, %s69
    %p78 = scmp.eq.s32.totalorder %s37, 0
    %p79 = por %p77, %p78
    %p80 = scmp.ne.s32.totalorder %s68, %s69
    %p81 = scmp.eq.s32.totalorder %s38, 1
    %p82 = por %p80, %p81
    %p84 = scmp.ne.s32.totalorder %s69, %s83
    %p85 = scmp.eq.s32.totalorder %s38, 0
    %p86 = por %p84, %p85
    %s88 = sadd.s32 %s87, 1
    %p91 = scmp.eq.s32.totalorder %s32, 1
    %p92 = scmp.ne.s32.totalorder %s87, %s89
    %p93 = scmp.eq.s32.totalorder %s32, 0
    %p94 = por %p92, %p93
    %p95 = scmp.ne.s32.totalorder %s87, %s89
    %p96 = scmp.eq.s32.totalorder %s37, 1
    %p97 = por %p95, %p96
    %p98 = scmp.ne.s32.totalorder %s89, %s90
    %p99 = scmp.eq.s32.totalorder %s37, 0
    %p100 = por %p98, %p99
    %p101 = scmp.ne.s32.totalorder %s89, %s90
    %p102 = scmp.eq.s32.totalorder %s38, 1
    %p103 = por %p101, %p102
    %p105 = scmp.ne.s32.totalorder %s90, %s104
    %p106 = scmp.eq.s32.totalorder %s38, 0
    %p107 = por %p105, %p106
    %s109 = sadd.s32 %s108, 1
    %p112 = scmp.eq.s32.totalorder %s32, 1
    %p113 = scmp.ne.s32.totalorder %s108, %s110
    %p114 = scmp.eq.s32.totalorder %s32, 0
    %p115 = por %p113, %p114
    %p116 = scmp.ne.s32.totalorder %s108, %s110
    %p117 = scmp.eq.s32.totalorder %s37, 1
    %p118 = por %p116, %p117
    %p119 = scmp.ne.s32.totalorder %s110, %s111
    %p120 = scmp.eq.s32.totalorder %s37, 0
    %p121 = por %p119, %p120
    %p122 = scmp.ne.s32.totalorder %s110, %s111
    %p123 = scmp.eq.s32.totalorder %s38, 1
    %p124 = por %p122, %p123
    %p126 = scmp.ne.s32.totalorder %s111, %s125
    %p127 = scmp.eq.s32.totalorder %s38, 0
    %p128 = por %p126, %p127
    %s130 = sadd.s32 %s129, 1
    %p133 = scmp.eq.s32.totalorder %s32, 1
    %p134 = scmp.ne.s32.totalorder %s129, %s131
    %p135 = scmp.eq.s32.totalorder %s32, 0
    %p136 = por %p134, %p135
    %p137 = scmp.ne.s32.totalorder %s129, %s131
    %p138 = scmp.eq.s32.totalorder %s37, 1
    %p139 = por %p137, %p138
    %p140 = scmp.ne.s32.totalorder %s131, %s132
    %p141 = scmp.eq.s32.totalorder %s37, 0
    %p142 = por %p140, %p141
    %p143 = scmp.ne.s32.totalorder %s131, %s132
    %p144 = scmp.eq.s32.totalorder %s38, 1
    %p145 = por %p143, %p144
    %p147 = scmp.ne.s32.totalorder %s132, %s146
    %p148 = scmp.eq.s32.totalorder %s38, 0
    %p149 = por %p147, %p148
    %s151 = sadd.s32 %s150, 1
    %p154 = scmp.eq.s32.totalorder %s32, 1
    %p155 = scmp.ne.s32.totalorder %s150, %s152
    %p156 = scmp.eq.s32.totalorder %s32, 0
    %p157 = por %p155, %p156
    %p158 = scmp.ne.s32.totalorder %s150, %s152
    %p159 = scmp.eq.s32.totalorder %s37, 1
    %p160 = por %p158, %p159
    %p161 = scmp.ne.s32.totalorder %s152, %s153
    %p162 = scmp.eq.s32.totalorder %s37, 0
    %p163 = por %p161, %p162
    %p164 = scmp.ne.s32.totalorder %s152, %s153
    %p165 = scmp.eq.s32.totalorder %s38, 1
    %p166 = por %p164, %p165
    %p168 = scmp.ne.s32.totalorder %s153, %s167
    %p169 = scmp.eq.s32.totalorder %s38, 0
    %p170 = por %p168, %p169
    %s172 = sadd.s32 %s171, 1
    %p175 = scmp.eq.s32.totalorder %s32, 1
    %p176 = scmp.ne.s32.totalorder %s171, %s173
    %p177 = scmp.eq.s32.totalorder %s32, 0
    %p178 = por %p176, %p177
    %p179 = scmp.ne.s32.totalorder %s171, %s173
    %p180 = scmp.eq.s32.totalorder %s37, 1
    %p181 = por %p179, %p180
    %p182 = scmp.ne.s32.totalorder %s173, %s174
    %p183 = scmp.eq.s32.totalorder %s37, 0
    %p184 = por %p182, %p183
    %p185 = scmp.ne.s32.totalorder %s173, %s174
    %p186 = scmp.eq.s32.totalorder %s38, 1
    %p187 = por %p185, %p186
    %p189 = scmp.ne.s32.totalorder %s174, %s188
    %p190 = scmp.eq.s32.totalorder %s38, 0
    %p191 = por %p189, %p190
    %s193 = sadd.s32 %s192, 1
    %p196 = scmp.eq.s32.totalorder %s32, 1
    %p197 = scmp.ne.s32.totalorder %s192, %s194
    %p198 = scmp.eq.s32.totalorder %s32, 0
    %p199 = por %p197, %p198
    %p200 = scmp.ne.s32.totalorder %s192, %s194
    %p201 = scmp.eq.s32.totalorder %s37, 1
    %p202 = por %p200, %p201
    %p203 = scmp.ne.s32.totalorder %s194, %s195
    %p204 = scmp.eq.s32.totalorder %s37, 0
    %p205 = por %p203, %p204
    %p206 = scmp.ne.s32.totalorder %s194, %s195
    %p207 = scmp.eq.s32.totalorder %s38, 1
    %p208 = por %p206, %p207
    %p210 = scmp.ne.s32.totalorder %s195, %s209
    %p211 = scmp.eq.s32.totalorder %s38, 0
    %p212 = por %p210, %p211
    %s214 = sadd.s32 %s213, 1
    %p217 = scmp.eq.s32.totalorder %s32, 1
    %p218 = scmp.ne.s32.totalorder %s213, %s215
    %p219 = scmp.eq.s32.totalorder %s32, 0
    %p220 = por %p218, %p219
    %p221 = scmp.ne.s32.totalorder %s213, %s215
    %p222 = scmp.eq.s32.totalorder %s37, 1
    %p223 = por %p221, %p222
    %p224 = scmp.ne.s32.totalorder %s215, %s216
    %p225 = scmp.eq.s32.totalorder %s37, 0
    %p226 = por %p224, %p225
    %p227 = scmp.ne.s32.totalorder %s215, %s216
    %p228 = scmp.eq.s32.totalorder %s38, 1
    %p229 = por %p227, %p228
    %p231 = scmp.ne.s32.totalorder %s216, %s230
    %p232 = scmp.eq.s32.totalorder %s38, 0
    %p233 = por %p231, %p232
    %s235 = sadd.s32 %s234, 1
    %p238 = scmp.eq.s32.totalorder %s32, 1
    %p239 = scmp.ne.s32.totalorder %s234, %s236
    %p240 = scmp.eq.s32.totalorder %s32, 0
    %p241 = por %p239, %p240
    %p242 = scmp.ne.s32.totalorder %s234, %s236
    %p243 = scmp.eq.s32.totalorder %s37, 1
    %p244 = por %p242, %p243
    %p245 = scmp.ne.s32.totalorder %s236, %s237
    %p246 = scmp.eq.s32.totalorder %s37, 0
    %p247 = por %p245, %p246
    %p248 = scmp.ne.s32.totalorder %s236, %s237
    %p249 = scmp.eq.s32.totalorder %s38, 1
    %p250 = por %p248, %p249
    %p252 = scmp.ne.s32.totalorder %s237, %s251
    %p253 = scmp.eq.s32.totalorder %s38, 0
    %p254 = por %p252, %p253
    %s256 = sadd.s32 %s255, 1
    %p259 = scmp.eq.s32.totalorder %s32, 1
    %p260 = scmp.ne.s32.totalorder %s255, %s257
    %p261 = scmp.eq.s32.totalorder %s32, 0
    %p262 = por %p260, %p261
    %p263 = scmp.ne.s32.totalorder %s255, %s257
    %p264 = scmp.eq.s32.totalorder %s37, 1
    %p265 = por %p263, %p264
    %p266 = scmp.ne.s32.totalorder %s257, %s258
    %p267 = scmp.eq.s32.totalorder %s37, 0
    %p268 = por %p266, %p267
    %p269 = scmp.ne.s32.totalorder %s257, %s258
    %p270 = scmp.eq.s32.totalorder %s38, 1
    %p271 = por %p269, %p270
    %p273 = scmp.ne.s32.totalorder %s258, %s272
    %p274 = scmp.eq.s32.totalorder %s38, 0
    %p275 = por %p273, %p274
    %s277 = sadd.s32 %s276, 1
    %p280 = scmp.eq.s32.totalorder %s32, 1
    %p281 = scmp.ne.s32.totalorder %s276, %s278
    %p282 = scmp.eq.s32.totalorder %s32, 0
    %p283 = por %p281, %p282
    %p284 = scmp.ne.s32.totalorder %s276, %s278
    %p285 = scmp.eq.s32.totalorder %s37, 1
    %p286 = por %p284, %p285
    %p287 = scmp.ne.s32.totalorder %s278, %s279
    %p288 = scmp.eq.s32.totalorder %s37, 0
    %p289 = por %p287, %p288
    %p290 = scmp.ne.s32.totalorder %s278, %s279
    %p291 = scmp.eq.s32.totalorder %s38, 1
    %p292 = por %p290, %p291
    %p294 = scmp.ne.s32.totalorder %s279, %s293
    %p295 = scmp.eq.s32.totalorder %s38, 0
    %p296 = por %p294, %p295
    %s298 = sadd.s32 %s297, 1
    %p301 = scmp.eq.s32.totalorder %s32, 1
    %p302 = scmp.ne.s32.totalorder %s297, %s299
    %p303 = scmp.eq.s32.totalorder %s32, 0
    %p304 = por %p302, %p303
    %p305 = scmp.ne.s32.totalorder %s297, %s299
    %p306 = scmp.eq.s32.totalorder %s37, 1
    %p307 = por %p305, %p306
    %p308 = scmp.ne.s32.totalorder %s299, %s300
    %p309 = scmp.eq.s32.totalorder %s37, 0
    %p310 = por %p308, %p309
    %p311 = scmp.ne.s32.totalorder %s299, %s300
    %p312 = scmp.eq.s32.totalorder %s38, 1
    %p313 = por %p311, %p312
    %p315 = scmp.ne.s32.totalorder %s300, %s314
    %p316 = scmp.eq.s32.totalorder %s38, 0
    %p317 = por %p315, %p316
    %s319 = sadd.s32 %s318, 1
    %p322 = scmp.eq.s32.totalorder %s32, 1
    %p323 = scmp.ne.s32.totalorder %s318, %s320
    %p324 = scmp.eq.s32.totalorder %s32, 0
    %p325 = por %p323, %p324
    %p326 = scmp.ne.s32.totalorder %s318, %s320
    %p327 = scmp.eq.s32.totalorder %s37, 1
    %p328 = por %p326, %p327
    %p329 = scmp.ne.s32.totalorder %s320, %s321
    %p330 = scmp.eq.s32.totalorder %s37, 0
    %p331 = por %p329, %p330
    %p332 = scmp.ne.s32.totalorder %s320, %s321
    %p333 = scmp.eq.s32.totalorder %s38, 1
    %p334 = por %p332, %p333
    %p336 = scmp.ne.s32.totalorder %s321, %s335
    %p337 = scmp.eq.s32.totalorder %s38, 0
    %p338 = por %p336, %p337
    %s340 = sadd.s32 %s339, 1
    %p343 = scmp.eq.s32.totalorder %s32, 1
    %p344 = scmp.ne.s32.totalorder %s339, %s341
    %p345 = scmp.eq.s32.totalorder %s32, 0
    %p346 = por %p344, %p345
    %p347 = scmp.ne.s32.totalorder %s339, %s341
    %p348 = scmp.eq.s32.totalorder %s37, 1
    %p349 = por %p347, %p348
    %p350 = scmp.ne.s32.totalorder %s341, %s342
    %p351 = scmp.eq.s32.totalorder %s37, 0
    %p352 = por %p350, %p351
    %p353 = scmp.ne.s32.totalorder %s341, %s342
    %p354 = scmp.eq.s32.totalorder %s38, 1
    %p355 = por %p353, %p354
    %p357 = scmp.ne.s32.totalorder %s342, %s356
    %p358 = scmp.eq.s32.totalorder %s38, 0
    %p359 = por %p357, %p358
    %s361 = sadd.s32 %s360, 1
    %p364 = scmp.eq.s32.totalorder %s32, 1
    %p365 = scmp.ne.s32.totalorder %s360, %s362
    %p366 = scmp.eq.s32.totalorder %s32, 0
    %p367 = por %p365, %p366
    %p368 = scmp.ne.s32.totalorder %s360, %s362
    %p369 = scmp.eq.s32.totalorder %s37, 1
    %p370 = por %p368, %p369
    %p371 = scmp.ne.s32.totalorder %s362, %s363
    %p372 = scmp.eq.s32.totalorder %s37, 0
    %p373 = por %p371, %p372
    %p374 = scmp.ne.s32.totalorder %s362, %s363
    %p375 = scmp.eq.s32.totalorder %s38, 1
    %p376 = por %p374, %p375
    %p378 = scmp.ne.s32.totalorder %s363, %s377
    %p379 = scmp.eq.s32.totalorder %s38, 0
    %p380 = por %p378, %p379
    %s382 = sadd.s32 %s381, 1
    %p385 = scmp.eq.s32.totalorder %s32, 1
    %p386 = scmp.ne.s32.totalorder %s381, %s383
    %p387 = scmp.eq.s32.totalorder %s32, 0
    %p388 = por %p386, %p387
    %p389 = scmp.ne.s32.totalorder %s381, %s383
    %p390 = scmp.eq.s32.totalorder %s37, 1
    %p391 = por %p389, %p390
    %p392 = scmp.ne.s32.totalorder %s383, %s384
    %p393 = scmp.eq.s32.totalorder %s37, 0
    %p394 = por %p392, %p393
    %p395 = scmp.ne.s32.totalorder %s383, %s384
    %p396 = scmp.eq.s32.totalorder %s38, 1
    %p397 = por %p395, %p396
    %p399 = scmp.ne.s32.totalorder %s384, %s398
    %p400 = scmp.eq.s32.totalorder %s38, 0
    %p401 = por %p399, %p400
    %s403 = sadd.s32 %s402, 1
    %p406 = scmp.eq.s32.totalorder %s32, 1
    %p407 = scmp.ne.s32.totalorder %s402, %s404
    %p408 = scmp.eq.s32.totalorder %s32, 0
    %p409 = por %p407, %p408
    %p410 = scmp.ne.s32.totalorder %s402, %s404
    %p411 = scmp.eq.s32.totalorder %s37, 1
    %p412 = por %p410, %p411
    %p413 = scmp.ne.s32.totalorder %s404, %s405
    %p414 = scmp.eq.s32.totalorder %s37, 0
    %p415 = por %p413, %p414
    %p416 = scmp.ne.s32.totalorder %s404, %s405
    %p417 = scmp.eq.s32.totalorder %s38, 1
    %p418 = por %p416, %p417
    %p420 = scmp.ne.s32.totalorder %s405, %s419
    %p421 = scmp.eq.s32.totalorder %s38, 0
    %p422 = por %p420, %p421
    %s424 = sadd.s32 %s423, 1
    %p427 = scmp.eq.s32.totalorder %s32, 1
    %p428 = scmp.ne.s32.totalorder %s423, %s425
    %p429 = scmp.eq.s32.totalorder %s32, 0
    %p430 = por %p428, %p429
    %p431 = scmp.ne.s32.totalorder %s423, %s425
    %p432 = scmp.eq.s32.totalorder %s37, 1
    %p433 = por %p431, %p432
    %p434 = scmp.ne.s32.totalorder %s425, %s426
    %p435 = scmp.eq.s32.totalorder %s37, 0
    %p436 = por %p434, %p435
    %p437 = scmp.ne.s32.totalorder %s425, %s426
    %p438 = scmp.eq.s32.totalorder %s38, 1
    %p439 = por %p437, %p438
    %p441 = scmp.ne.s32.totalorder %s426, %s440
    %p442 = scmp.eq.s32.totalorder %s38, 0
    %p443 = por %p441, %p442
    %s445 = sadd.s32 %s444, 1
    %p448 = scmp.eq.s32.totalorder %s32, 1
    %p449 = scmp.ne.s32.totalorder %s444, %s446
    %p450 = scmp.eq.s32.totalorder %s32, 0
    %p451 = por %p449, %p450
    %p452 = scmp.ne.s32.totalorder %s444, %s446
    %p453 = scmp.eq.s32.totalorder %s37, 1
    %p454 = por %p452, %p453
    %p455 = scmp.ne.s32.totalorder %s446, %s447
    %p456 = scmp.eq.s32.totalorder %s37, 0
    %p457 = por %p455, %p456
    %p458 = scmp.ne.s32.totalorder %s446, %s447
    %p459 = scmp.eq.s32.totalorder %s38, 1
    %p460 = por %p458, %p459
    %p462 = scmp.ne.s32.totalorder %s447, %s461
    %p463 = scmp.eq.s32.totalorder %s38, 0
    %p464 = por %p462, %p463
    %s466 = sadd.s32 %s465, 1
    %p469 = scmp.eq.s32.totalorder %s32, 1
    %p470 = scmp.ne.s32.totalorder %s465, %s467
    %p471 = scmp.eq.s32.totalorder %s32, 0
    %p472 = por %p470, %p471
    %p473 = scmp.ne.s32.totalorder %s465, %s467
    %p474 = scmp.eq.s32.totalorder %s37, 1
    %p475 = por %p473, %p474
    %p476 = scmp.ne.s32.totalorder %s467, %s468
    %p477 = scmp.eq.s32.totalorder %s37, 0
    %p478 = por %p476, %p477
    %p479 = scmp.ne.s32.totalorder %s467, %s468
    %p480 = scmp.eq.s32.totalorder %s38, 1
    %p481 = por %p479, %p480
    %p483 = scmp.ne.s32.totalorder %s468, %s482
    %p484 = scmp.eq.s32.totalorder %s38, 0
    %p485 = por %p483, %p484
    %s487 = sadd.s32 %s486, 1
    %p490 = scmp.eq.s32.totalorder %s32, 1
    %p491 = scmp.ne.s32.totalorder %s486, %s488
    %p492 = scmp.eq.s32.totalorder %s32, 0
    %p493 = por %p491, %p492
    %p494 = scmp.ne.s32.totalorder %s486, %s488
    %p495 = scmp.eq.s32.totalorder %s37, 1
    %p496 = por %p494, %p495
    %p497 = scmp.ne.s32.totalorder %s488, %s489
    %p498 = scmp.eq.s32.totalorder %s37, 0
    %p499 = por %p497, %p498
    %p500 = scmp.ne.s32.totalorder %s488, %s489
    %p501 = scmp.eq.s32.totalorder %s38, 1
    %p502 = por %p500, %p501
    %p504 = scmp.ne.s32.totalorder %s489, %s503
    %p505 = scmp.eq.s32.totalorder %s38, 0
    %p506 = por %p504, %p505
    %s508 = sadd.s32 %s507, 1
    %p511 = scmp.eq.s32.totalorder %s32, 1
    %p512 = scmp.ne.s32.totalorder %s507, %s509
    %p513 = scmp.eq.s32.totalorder %s32, 0
    %p514 = por %p512, %p513
    %p515 = scmp.ne.s32.totalorder %s507, %s509
    %p516 = scmp.eq.s32.totalorder %s37, 1
    %p517 = por %p515, %p516
    %p518 = scmp.ne.s32.totalorder %s509, %s510
    %p519 = scmp.eq.s32.totalorder %s37, 0
    %p520 = por %p518, %p519
    %p521 = scmp.ne.s32.totalorder %s509, %s510
    %p522 = scmp.eq.s32.totalorder %s38, 1
    %p523 = por %p521, %p522
    %p525 = scmp.ne.s32.totalorder %s510, %s524
    %p526 = scmp.eq.s32.totalorder %s38, 0
    %p527 = por %p525, %p526
    %s529 = sadd.s32 %s528, 1
    %p532 = scmp.eq.s32.totalorder %s32, 1
    %p533 = scmp.ne.s32.totalorder %s528, %s530
    %p534 = scmp.eq.s32.totalorder %s32, 0
    %p535 = por %p533, %p534
    %p536 = scmp.ne.s32.totalorder %s528, %s530
    %p537 = scmp.eq.s32.totalorder %s37, 1
    %p538 = por %p536, %p537
    %p539 = scmp.ne.s32.totalorder %s530, %s531
    %p540 = scmp.eq.s32.totalorder %s37, 0
    %p541 = por %p539, %p540
    %p542 = scmp.ne.s32.totalorder %s530, %s531
    %p543 = scmp.eq.s32.totalorder %s38, 1
    %p544 = por %p542, %p543
    %p546 = scmp.ne.s32.totalorder %s531, %s545
    %p547 = scmp.eq.s32.totalorder %s38, 0
    %p548 = por %p546, %p547
    %s550 = sadd.s32 %s549, 1
    %p553 = scmp.eq.s32.totalorder %s32, 1
    %p554 = scmp.ne.s32.totalorder %s549, %s551
    %p555 = scmp.eq.s32.totalorder %s32, 0
    %p556 = por %p554, %p555
    %p557 = scmp.ne.s32.totalorder %s549, %s551
    %p558 = scmp.eq.s32.totalorder %s37, 1
    %p559 = por %p557, %p558
    %p560 = scmp.ne.s32.totalorder %s551, %s552
    %p561 = scmp.eq.s32.totalorder %s37, 0
    %p562 = por %p560, %p561
    %p563 = scmp.ne.s32.totalorder %s551, %s552
    %p564 = scmp.eq.s32.totalorder %s38, 1
    %p565 = por %p563, %p564
    %p567 = scmp.ne.s32.totalorder %s552, %s566
    %p568 = scmp.eq.s32.totalorder %s38, 0
    %p569 = por %p567, %p568
    %s571 = sadd.s32 %s570, 1
    %p574 = scmp.eq.s32.totalorder %s32, 1
    %p575 = scmp.ne.s32.totalorder %s570, %s572
    %p576 = scmp.eq.s32.totalorder %s32, 0
    %p577 = por %p575, %p576
    %p578 = scmp.ne.s32.totalorder %s570, %s572
    %p579 = scmp.eq.s32.totalorder %s37, 1
    %p580 = por %p578, %p579
    %p581 = scmp.ne.s32.totalorder %s572, %s573
    %p582 = scmp.eq.s32.totalorder %s37, 0
    %p583 = por %p581, %p582
    %p584 = scmp.ne.s32.totalorder %s572, %s573
    %p585 = scmp.eq.s32.totalorder %s38, 1
    %p586 = por %p584, %p585
    %p588 = scmp.ne.s32.totalorder %s573, %s587
    %p589 = scmp.eq.s32.totalorder %s38, 0
    %p590 = por %p588, %p589
    %s591 = ssub.s32 %s32, %s39
    %p592 = scmp.eq.s32.totalorder %s591, 0
    %s594 = sadd.s32 %s593, 1
    %s595 = scalar_select %p592, %s593, %s594
    %p598 = pneg %p592
    %p599 = scmp.eq.s32.totalorder %s32, 1
    %p600 = por %p598, %p599
    %p601 = scmp.ne.s32.totalorder %s593, %s596
    %p602 = scmp.eq.s32.totalorder %s32, 0
    %p603 = por %p601, %p602
    %p604 = scmp.ne.s32.totalorder %s593, %s596
    %p605 = scmp.eq.s32.totalorder %s37, 1
    %p606 = por %p604, %p605
    %p607 = scmp.ne.s32.totalorder %s596, %s597
    %p608 = scmp.eq.s32.totalorder %s37, 0
    %p609 = por %p607, %p608
    %p610 = scmp.ne.s32.totalorder %s596, %s597
    %p611 = scmp.eq.s32.totalorder %s38, 1
    %p612 = por %p610, %p611
    %p614 = scmp.ne.s32.totalorder %s597, %s613
    %p615 = scmp.eq.s32.totalorder %s38, 0
    %p616 = por %p614, %p615
    %p617 = scmp.le.s32.totalorder 1, %s32
    %p618 = scmp.lt.s32.totalorder %s32, 3
    %p619 = pnand %p617, %p618
    %p620 = pneg %p619
    // Predicated region
    $region9: #{block_forward.1} parent=5 // pred_check
      _
    $region10: #{block_forward.1} parent=5 // pred_check_branch
      %622 = sbr.rel (%p619) target = $region12
    $region11: #{block_forward.1} parent=5 // pred_region
      %s623 = ssub.s32 %s32, 1
      // Predicated region
      $region13: #{block_forward.1} parent=11 // pred_check
        %p624 = pneg %p79
      $region14: #{block_forward.1} parent=11 // pred_check_branch
        %626 = sbr.rel (%p624) target = $region16
      $region15: #{block_forward.1} parent=11 // pred_region
        _
      $region16: #{block_forward.1} parent=11 // pred_fallthru
        _
      // Predicated region
      $region17: #{block_forward.1} parent=11 // pred_check
        %p627 = pneg %p100
      $region18: #{block_forward.1} parent=11 // pred_check_branch
        %629 = sbr.rel (%p627) target = $region20
      $region19: #{block_forward.1} parent=11 // pred_region
        _
      $region20: #{block_forward.1} parent=11 // pred_fallthru
        _
      // Predicated region
      $region21: #{block_forward.1} parent=11 // pred_check
        %p630 = pneg %p121
      $region22: #{block_forward.1} parent=11 // pred_check_branch
        %632 = sbr.rel (%p630) target = $region24
      $region23: #{block_forward.1} parent=11 // pred_region
        _
      $region24: #{block_forward.1} parent=11 // pred_fallthru
        _
      // Predicated region
      $region25: #{block_forward.1} parent=11 // pred_check
        %p633 = pneg %p142
      $region26: #{block_forward.1} parent=11 // pred_check_branch
        %635 = sbr.rel (%p633) target = $region28
      $region27: #{block_forward.1} parent=11 // pred_region
        _
      $region28: #{block_forward.1} parent=11 // pred_fallthru
        _
      // Predicated region
      $region29: #{block_forward.1} parent=11 // pred_check
        %p636 = pneg %p163
      $region30: #{block_forward.1} parent=11 // pred_check_branch
        %638 = sbr.rel (%p636) target = $region32
      $region31: #{block_forward.1} parent=11 // pred_region
        _
      $region32: #{block_forward.1} parent=11 // pred_fallthru
        _
      // Predicated region
      $region33: #{block_forward.1} parent=11 // pred_check
        %p639 = pneg %p184
      $region34: #{block_forward.1} parent=11 // pred_check_branch
        %641 = sbr.rel (%p639) target = $region36
      $region35: #{block_forward.1} parent=11 // pred_region
        _
      $region36: #{block_forward.1} parent=11 // pred_fallthru
        _
      // Predicated region
      $region37: #{block_forward.1} parent=11 // pred_check
        %p642 = pneg %p205
      $region38: #{block_forward.1} parent=11 // pred_check_branch
        %644 = sbr.rel (%p642) target = $region40
      $region39: #{block_forward.1} parent=11 // pred_region
        _
      $region40: #{block_forward.1} parent=11 // pred_fallthru
        _
      // Predicated region
      $region41: #{block_forward.1} parent=11 // pred_check
        %p645 = pneg %p226
      $region42: #{block_forward.1} parent=11 // pred_check_branch
        %647 = sbr.rel (%p645) target = $region44
      $region43: #{block_forward.1} parent=11 // pred_region
        _
      $region44: #{block_forward.1} parent=11 // pred_fallthru
        _
      // Predicated region
      $region45: #{block_forward.1} parent=11 // pred_check
        %p648 = pneg %p247
      $region46: #{block_forward.1} parent=11 // pred_check_branch
        %650 = sbr.rel (%p648) target = $region48
      $region47: #{block_forward.1} parent=11 // pred_region
        _
      $region48: #{block_forward.1} parent=11 // pred_fallthru
        _
      // Predicated region
      $region49: #{block_forward.1} parent=11 // pred_check
        %p651 = pneg %p268
      $region50: #{block_forward.1} parent=11 // pred_check_branch
        %653 = sbr.rel (%p651) target = $region52
      $region51: #{block_forward.1} parent=11 // pred_region
        _
      $region52: #{block_forward.1} parent=11 // pred_fallthru
        _
      // Predicated region
      $region53: #{block_forward.1} parent=11 // pred_check
        %p654 = pneg %p289
      $region54: #{block_forward.1} parent=11 // pred_check_branch
        %656 = sbr.rel (%p654) target = $region56
      $region55: #{block_forward.1} parent=11 // pred_region
        _
      $region56: #{block_forward.1} parent=11 // pred_fallthru
        _
      // Predicated region
      $region57: #{block_forward.1} parent=11 // pred_check
        %p657 = pneg %p310
      $region58: #{block_forward.1} parent=11 // pred_check_branch
        %659 = sbr.rel (%p657) target = $region60
      $region59: #{block_forward.1} parent=11 // pred_region
        _
      $region60: #{block_forward.1} parent=11 // pred_fallthru
        _
      // Predicated region
      $region61: #{block_forward.1} parent=11 // pred_check
        %p660 = pneg %p331
      $region62: #{block_forward.1} parent=11 // pred_check_branch
        %662 = sbr.rel (%p660) target = $region64
      $region63: #{block_forward.1} parent=11 // pred_region
        _
      $region64: #{block_forward.1} parent=11 // pred_fallthru
        _
      // Predicated region
      $region65: #{block_forward.1} parent=11 // pred_check
        %p663 = pneg %p352
      $region66: #{block_forward.1} parent=11 // pred_check_branch
        %665 = sbr.rel (%p663) target = $region68
      $region67: #{block_forward.1} parent=11 // pred_region
        _
      $region68: #{block_forward.1} parent=11 // pred_fallthru
        _
      // Predicated region
      $region69: #{block_forward.1} parent=11 // pred_check
        %p666 = pneg %p373
      $region70: #{block_forward.1} parent=11 // pred_check_branch
        %668 = sbr.rel (%p666) target = $region72
      $region71: #{block_forward.1} parent=11 // pred_region
        _
      $region72: #{block_forward.1} parent=11 // pred_fallthru
        _
      // Predicated region
      $region73: #{block_forward.1} parent=11 // pred_check
        %p669 = pneg %p394
      $region74: #{block_forward.1} parent=11 // pred_check_branch
        %671 = sbr.rel (%p669) target = $region76
      $region75: #{block_forward.1} parent=11 // pred_region
        _
      $region76: #{block_forward.1} parent=11 // pred_fallthru
        _
      // Predicated region
      $region77: #{block_forward.1} parent=11 // pred_check
        %p672 = pneg %p415
      $region78: #{block_forward.1} parent=11 // pred_check_branch
        %674 = sbr.rel (%p672) target = $region80
      $region79: #{block_forward.1} parent=11 // pred_region
        _
      $region80: #{block_forward.1} parent=11 // pred_fallthru
        _
      // Predicated region
      $region81: #{block_forward.1} parent=11 // pred_check
        %p675 = pneg %p436
      $region82: #{block_forward.1} parent=11 // pred_check_branch
        %677 = sbr.rel (%p675) target = $region84
      $region83: #{block_forward.1} parent=11 // pred_region
        _
      $region84: #{block_forward.1} parent=11 // pred_fallthru
        _
      // Predicated region
      $region85: #{block_forward.1} parent=11 // pred_check
        %p678 = pneg %p457
      $region86: #{block_forward.1} parent=11 // pred_check_branch
        %680 = sbr.rel (%p678) target = $region88
      $region87: #{block_forward.1} parent=11 // pred_region
        _
      $region88: #{block_forward.1} parent=11 // pred_fallthru
        _
      // Predicated region
      $region89: #{block_forward.1} parent=11 // pred_check
        %p681 = pneg %p478
      $region90: #{block_forward.1} parent=11 // pred_check_branch
        %683 = sbr.rel (%p681) target = $region92
      $region91: #{block_forward.1} parent=11 // pred_region
        _
      $region92: #{block_forward.1} parent=11 // pred_fallthru
        _
      // Predicated region
      $region93: #{block_forward.1} parent=11 // pred_check
        %p684 = pneg %p499
      $region94: #{block_forward.1} parent=11 // pred_check_branch
        %686 = sbr.rel (%p684) target = $region96
      $region95: #{block_forward.1} parent=11 // pred_region
        _
      $region96: #{block_forward.1} parent=11 // pred_fallthru
        _
      // Predicated region
      $region97: #{block_forward.1} parent=11 // pred_check
        %p687 = pneg %p520
      $region98: #{block_forward.1} parent=11 // pred_check_branch
        %689 = sbr.rel (%p687) target = $region100
      $region99: #{block_forward.1} parent=11 // pred_region
        _
      $region100: #{block_forward.1} parent=11 // pred_fallthru
        _
      // Predicated region
      $region101: #{block_forward.1} parent=11 // pred_check
        %p690 = pneg %p541
      $region102: #{block_forward.1} parent=11 // pred_check_branch
        %692 = sbr.rel (%p690) target = $region104
      $region103: #{block_forward.1} parent=11 // pred_region
        _
      $region104: #{block_forward.1} parent=11 // pred_fallthru
        _
      // Predicated region
      $region105: #{block_forward.1} parent=11 // pred_check
        %p693 = pneg %p562
      $region106: #{block_forward.1} parent=11 // pred_check_branch
        %695 = sbr.rel (%p693) target = $region108
      $region107: #{block_forward.1} parent=11 // pred_region
        _
      $region108: #{block_forward.1} parent=11 // pred_fallthru
        _
      // Predicated region
      $region109: #{block_forward.1} parent=11 // pred_check
        %p696 = pneg %p583
      $region110: #{block_forward.1} parent=11 // pred_check_branch
        %698 = sbr.rel (%p696) target = $region112
      $region111: #{block_forward.1} parent=11 // pred_region
        _
      $region112: #{block_forward.1} parent=11 // pred_fallthru
        _
    $region12: #{block_forward.1} parent=5 // pred_fallthru
      _
    %p699 = scmp.lt.s32.totalorder %s32, 2
    // Predicated region
    $region113: #{block_forward.1} parent=5 // pred_check
      %p700 = pneg %p699
    $region114: #{block_forward.1} parent=5 // pred_check_branch
      %702 = sbr.rel (%p700) target = $region116
    $region115: #{block_forward.1} parent=5 // pred_region
      // Predicated region
      $region117: #{block_forward.1} parent=115 // pred_check
        %p703 = pneg %p52
      $region118: #{block_forward.1} parent=115 // pred_check_branch
        %705 = sbr.rel (%p703) target = $region120
      $region119: #{block_forward.1} parent=115 // pred_region
        %p706 = scmp.lt.s32.totalorder %s32, 1
        %s707 = scalar_select %p706, %s32, 1
        %s708 = smul.addr %s707, 2
        %s709 = smul.addr %s708, 8
        %s710 = scalar_lea.vmem %s0, %s709
      $region120: #{block_forward.1} parent=115 // pred_fallthru
        _
    $region116: #{block_forward.1} parent=5 // pred_fallthru
      _
    %p711 = scmp.le.s32.totalorder 1, %s32
    %p712 = scmp.lt.s32.totalorder %s32, 3
    %p713 = pnand %p711, %p712
    %p714 = pneg %p713
    // Predicated region
    $region121: #{block_forward.1} parent=5 // pred_check
      _
    $region122: #{block_forward.1} parent=5 // pred_check_branch
      %716 = sbr.rel (%p713) target = $region124
    $region123: #{block_forward.1} parent=5 // pred_region
      %s717 = ssub.s32 %s32, 1
      %p718 = scmp.lt.s32.totalorder %s37, 1
      %s719 = scalar_select %p718, %s37, 1
      %s720 = smul.addr %s719, 2
      %s721 = smul.addr %s720, 8
      %s722 = scalar_lea.vmem %s0, %s721
      %p723 = pneg %p58
      %p724 = pneg %p55
      %p725 = pneg %p79
      %p726 = pneg %p76
      %p727 = pneg %p100
      %p728 = pneg %p97
      %p729 = pneg %p121
      %p730 = pneg %p118
      %p731 = pneg %p142
      %p732 = pneg %p139
      %p733 = pneg %p163
      %p734 = pneg %p160
      %p735 = pneg %p184
      %p736 = pneg %p181
      %p737 = pneg %p205
      %p738 = pneg %p202
      %p739 = pneg %p226
      %p740 = pneg %p223
      %p741 = pneg %p247
      %p742 = pneg %p244
      %p743 = pneg %p268
      %p744 = pneg %p265
      %p745 = pneg %p289
      %p746 = pneg %p286
      %p747 = pneg %p310
      %p748 = pneg %p307
      %p749 = pneg %p331
      %p750 = pneg %p328
      %p751 = pneg %p352
      %p752 = pneg %p349
      %p753 = pneg %p373
      %p754 = pneg %p370
      %p755 = pneg %p394
      %p756 = pneg %p391
      %p757 = pneg %p415
      %p758 = pneg %p412
      %p759 = pneg %p436
      %p760 = pneg %p433
      %p761 = pneg %p457
      %p762 = pneg %p454
      %p763 = pneg %p478
      %p764 = pneg %p475
      %p765 = pneg %p499
      %p766 = pneg %p496
      %p767 = pneg %p520
      %p768 = pneg %p517
      %p769 = pneg %p541
      %p770 = pneg %p538
      %p771 = pneg %p562
      %p772 = pneg %p559
      %p773 = pneg %p583
      %p774 = pneg %p580
      %p775 = pneg %p609
      %p776 = pneg %p606
      %p777 = scmp.lt.s32.totalorder %s37, 1
      %s778 = scalar_select %p777, %s37, 1
      %s779 = smul.addr %s778, 2
      %s780 = smul.addr %s779, 8
      %s781 = scalar_lea.vmem %s26, %s780
      %p782 = scmp.lt.s32.totalorder %s37, 1
      %s783 = scalar_select %p782, %s37, 1
      %s784 = smul.addr %s783, 2
      %s785 = smul.addr %s784, 8
      %s786 = scalar_lea.vmem %s0, %s785
      %p787 = scmp.lt.s32.totalorder %s37, 1
      %s788 = scalar_select %p787, %s37, 1
      %s789 = smul.addr %s788, 2
      %s790 = smul.addr %s789, 8
      %s791 = scalar_lea.vmem %s26, %s790
      %v793 = vld [vmem:[%s786] sm:$0xff]
      %v794 = vld [vmem:[%s786 + $0x8] sm:$0xff]
      %v795 = vld [vmem:[%s1] sm:$0xf]
      %v796 = vld [vmem:[%s1 + $0x4] sm:$0xf]
      %v797 = vld [vmem:[%s1 + $0x8] sm:$0xf]
      %v798 = vld [vmem:[%s1 + $0xc] sm:$0xf]
      %v799 = vld [vmem:[%s1 + $0x10] sm:$0xf]
      %v800 = vld [vmem:[%s1 + $0x14] sm:$0xf]
      %v801 = vld [vmem:[%s1 + $0x18] sm:$0xf]
      %v802 = vld [vmem:[%s1 + $0x1c] sm:$0xf]
      %v803 = vld [vmem:[%s1 + $0x20] sm:$0xf]
      %v804 = vld [vmem:[%s1 + $0x24] sm:$0xf]
      %v805 = vld [vmem:[%s1 + $0x28] sm:$0xf]
      %v806 = vld [vmem:[%s1 + $0x2c] sm:$0xf]
      %v807 = vld [vmem:[%s1 + $0x30] sm:$0xf]
      %v808 = vld [vmem:[%s1 + $0x34] sm:$0xf]
      %v809 = vld [vmem:[%s1 + $0x38] sm:$0xf]
      %v810 = vld [vmem:[%s1 + $0x3c] sm:$0xf]
      %v811 = vld [vmem:[%s1 + $0x40] sm:$0xf]
      %v812 = vld [vmem:[%s1 + $0x44] sm:$0xf]
      %v813 = vld [vmem:[%s1 + $0x48] sm:$0xf]
      %v814 = vld [vmem:[%s1 + $0x4c] sm:$0xf]
      %v815 = vld [vmem:[%s1 + $0x50] sm:$0xf]
      %v816 = vld [vmem:[%s1 + $0x54] sm:$0xf]
      %v817 = vld [vmem:[%s1 + $0x58] sm:$0xf]
      %v818 = vld [vmem:[%s1 + $0x5c] sm:$0xf]
      %v819 = vld [vmem:[%s1 + $0x60] sm:$0xf]
      %v820 = vld [vmem:[%s1 + $0x64] sm:$0xf]
      %v821 = vld [vmem:[%s1 + $0x68] sm:$0xf]
      %v822 = vld [vmem:[%s1 + $0x6c] sm:$0xf]
      %v823 = vld [vmem:[%s1 + $0x70] sm:$0xf]
      %v824 = vld [vmem:[%s1 + $0x74] sm:$0xf]
      %v825 = vld [vmem:[%s1 + $0x78] sm:$0xf]
      %v826 = vld [vmem:[%s1 + $0x7c] sm:$0xf]
      %v827 = vld [vmem:[%s1 + $0x80] sm:$0xf]
      %v828 = vld [vmem:[%s1 + $0x84] sm:$0xf]
      %v829 = vld [vmem:[%s1 + $0x88] sm:$0xf]
      %v830 = vld [vmem:[%s1 + $0x8c] sm:$0xf]
      %v831 = vld [vmem:[%s1 + $0x90] sm:$0xf]
      %v832 = vld [vmem:[%s1 + $0x94] sm:$0xf]
      %v833 = vld [vmem:[%s1 + $0x98] sm:$0xf]
      %v834 = vld [vmem:[%s1 + $0x9c] sm:$0xf]
      %v835 = vld [vmem:[%s1 + $0xa0] sm:$0xf]
      %v836 = vld [vmem:[%s1 + $0xa4] sm:$0xf]
      %v837 = vld [vmem:[%s1 + $0xa8] sm:$0xf]
      %v838 = vld [vmem:[%s1 + $0xac] sm:$0xf]
      %v839 = vld [vmem:[%s1 + $0xb0] sm:$0xf]
      %v840 = vld [vmem:[%s1 + $0xb4] sm:$0xf]
      %v841 = vld [vmem:[%s1 + $0xb8] sm:$0xf]
      %v842 = vld [vmem:[%s1 + $0xbc] sm:$0xf]
      %v843 = vld [vmem:[%s1 + $0xc0] sm:$0xf]
      %v844 = vld [vmem:[%s1 + $0xc4] sm:$0xf]
      %v845 = vld [vmem:[%s1 + $0xc8] sm:$0xf]
      %v846 = vld [vmem:[%s1 + $0xcc] sm:$0xf]
      %v847 = vld [vmem:[%s1 + $0xd0] sm:$0xf]
      %v848 = vld [vmem:[%s1 + $0xd4] sm:$0xf]
      %v849 = vld [vmem:[%s1 + $0xd8] sm:$0xf]
      %v850 = vld [vmem:[%s1 + $0xdc] sm:$0xf]
      %v851 = vld [vmem:[%s1 + $0xe0] sm:$0xf]
      %v852 = vld [vmem:[%s1 + $0xe4] sm:$0xf]
      %v853 = vld [vmem:[%s1 + $0xe8] sm:$0xf]
      %v854 = vld [vmem:[%s1 + $0xec] sm:$0xf]
      %v855 = vld [vmem:[%s1 + $0xf0] sm:$0xf]
      %v856 = vld [vmem:[%s1 + $0xf4] sm:$0xf]
      %v857 = vld [vmem:[%s1 + $0xf8] sm:$0xf]
      %v858 = vld [vmem:[%s1 + $0xfc] sm:$0xf]
      %v859 = vld [vmem:[%s1 + $0x100] sm:$0xf]
      %v860 = vld [vmem:[%s1 + $0x104] sm:$0xf]
      %v861 = vld [vmem:[%s1 + $0x108] sm:$0xf]
      %v862 = vld [vmem:[%s1 + $0x10c] sm:$0xf]
      %v863 = vld [vmem:[%s1 + $0x110] sm:$0xf]
      %v864 = vld [vmem:[%s1 + $0x114] sm:$0xf]
      %v865 = vld [vmem:[%s1 + $0x118] sm:$0xf]
      %v866 = vld [vmem:[%s1 + $0x11c] sm:$0xf]
      %v867 = vld [vmem:[%s2] sm:$0xf]
      %v868 = vld [vmem:[%s3] sm:$0xf]
      %v869 = vld [vmem:[%s4] sm:$0xf]
      %v870 = vld [vmem:[%s4 + $0x4] sm:$0xf]
      %v871 = vld [vmem:[%s4 + $0x8] sm:$0xf]
      %v872 = vld [vmem:[%s4 + $0xc] sm:$0xf]
      %v873 = vld [vmem:[%s4 + $0x10] sm:$0xf]
      %v874 = vld [vmem:[%s4 + $0x14] sm:$0xf]
      %v875 = vld [vmem:[%s4 + $0x18] sm:$0xf]
      %v876 = vld [vmem:[%s4 + $0x1c] sm:$0xf]
      %v877 = vpack.c.bf16 %v794, %v793
      %v878 = vld [vmem:[%s5] sm:$0xff]
      %v879 = vld [vmem:[%s5 + $0x8] sm:$0xff]
      %v880 = vld [vmem:[%s5 + $0x10] sm:$0xff]
      %v881 = vld [vmem:[%s5 + $0x18] sm:$0xff]
      %v882 = vld [vmem:[%s5 + $0x20] sm:$0xff]
      %v883 = vld [vmem:[%s5 + $0x28] sm:$0xff]
      %v884 = vld [vmem:[%s5 + $0x30] sm:$0xff]
      %v885 = vld [vmem:[%s5 + $0x38] sm:$0xff]
      %887 = vset.pattern.permute.xlu0 0
      %888 = vperm.xlu0 %887, %v878
      %v889 = vpop.permute.xlu0 %888
      %892 = vset.pattern.permute.xlu0 0
      %893 = vperm.xlu0 %892, %v879
      %v894 = vpop.permute.xlu0 %893
      %897 = vset.pattern.permute.xlu0 0
      %898 = vperm.xlu0 %897, %v880
      %v899 = vpop.permute.xlu0 %898
      %902 = vset.pattern.permute.xlu0 0
      %903 = vperm.xlu0 %902, %v881
      %v904 = vpop.permute.xlu0 %903
      %907 = vset.pattern.permute.xlu0 0
      %908 = vperm.xlu0 %907, %v882
      %v909 = vpop.permute.xlu0 %908
      %912 = vset.pattern.permute.xlu0 0
      %913 = vperm.xlu0 %912, %v883
      %v914 = vpop.permute.xlu0 %913
      %917 = vset.pattern.permute.xlu0 0
      %918 = vperm.xlu0 %917, %v884
      %v919 = vpop.permute.xlu0 %918
      %922 = vset.pattern.permute.xlu0 0
      %923 = vperm.xlu0 %922, %v885
      %v924 = vpop.permute.xlu0 %923
      %v934 = vunpack.c.l.b16 %v869
      %v935 = vunpack.c.l.b16 %v870
      %v936 = vunpack.c.l.b16 %v871
      %v937 = vunpack.c.l.b16 %v872
      %v938 = vunpack.c.l.b16 %v873
      %v939 = vunpack.c.l.b16 %v874
      %v940 = vunpack.c.l.b16 %v875
      %v941 = vunpack.c.l.b16 %v876
      %v942 = vpack.c.b16 %v935, %v934
      %v943 = vpack.c.b16 %v937, %v936
      %v944 = vpack.c.b16 %v939, %v938
      %v945 = vpack.c.b16 %v941, %v940
      %vm946 = vcmask 130048
      %v948 = vsel %vm946, %v942, 0
      %v951 = vsel %vm946, %v943, 0
      %v954 = vsel %vm946, %v944, 0
      %v957 = vsel %vm946, %v945, 0
      %959 = vmatprep.subr.bf16.mxu0 0
      %960 = vmatpush1.bf16.msra.mxu0 %v877
      %961 = vmatprep.subr.bf16.mxu0 0
      %962 = vmatpush1.bf16.msra.mxu0 0
      %963 = vmatprep.subr.bf16.mxu0 0
      %964 = vmatpush1.bf16.msra.mxu0 0
      %965 = vmatprep.subr.bf16.mxu0 0
      %966 = vmatpush1.bf16.msra.mxu0 0
      %967 = vmatprep.subr.bf16.mxu0 0
      %968 = vmatpush1.bf16.msra.mxu0 0
      %969 = vmatprep.subr.bf16.mxu0 0
      %970 = vmatpush1.bf16.msra.mxu0 0
      %971 = vmatprep.subr.bf16.mxu0 0
      %972 = vmatpush1.bf16.msra.mxu0 0
      %973 = vmatprep.subr.bf16.mxu0 0
      %974 = vmatpush1.bf16.msra.mxu0 0
      %975 = vmatprep.subr.bf16.mxu0 0
      %976 = vmatpush1.bf16.msra.mxu0 0
      %977 = vmatprep.subr.bf16.mxu0 0
      %978 = vmatpush1.bf16.msra.mxu0 0
      %979 = vmatprep.subr.bf16.mxu0 0
      %980 = vmatpush1.bf16.msra.mxu0 0
      %981 = vmatprep.subr.bf16.mxu0 0
      %982 = vmatpush1.bf16.msra.mxu0 0
      %983 = vmatprep.subr.bf16.mxu0 0
      %984 = vmatpush1.bf16.msra.mxu0 0
      %985 = vmatprep.subr.bf16.mxu0 0
      %986 = vmatpush1.bf16.msra.mxu0 0
      %987 = vmatprep.subr.bf16.mxu0 0
      %988 = vmatpush1.bf16.msra.mxu0 0
      %989 = vmatprep.subr.bf16.mxu0 0
      %990 = vmatpush1.bf16.msra.mxu0 0
      %991 = vmatprep.mubr.bf16.mxu0 0
      %992 = vmatmul.mubr.bf16.gmra.mrb[0].mxu0 %v948
      %v993 = vpop.f32.mrb[0].mxu0
      %v994 = vadd.f32 %v889, %v993
      %v995 = vpop.f32.mrb[0].mxu0
      %v996 = vpop.f32.mrb[0].mxu0
      %v997 = vadd.f32 %v894, %v996
      %v998 = vpop.f32.mrb[0].mxu0
      %999 = vmatprep.mubr.bf16.mxu0 0
      %1000 = vmatmul.mubr.bf16.gmra.mrb[0].mxu0 %v951
      %v1001 = vpop.f32.mrb[0].mxu0
      %v1002 = vadd.f32 %v899, %v1001
      %v1003 = vpop.f32.mrb[0].mxu0
      %v1004 = vpop.f32.mrb[0].mxu0
      %v1005 = vadd.f32 %v904, %v1004
      %v1006 = vpop.f32.mrb[0].mxu0
      %1007 = vmatprep.mubr.bf16.mxu0 0
      %1008 = vmatmul.mubr.bf16.gmra.mrb[0].mxu0 %v954
      %v1009 = vpop.f32.mrb[0].mxu0
      %v1010 = vadd.f32 %v909, %v1009
      %v1011 = vpop.f32.mrb[0].mxu0
      %v1012 = vpop.f32.mrb[0].mxu0
      %v1013 = vadd.f32 %v914, %v1012
      %v1014 = vpop.f32.mrb[0].mxu0
      %1015 = vmatprep.mubr.bf16.mxu0 0
      %1016 = vmatmul.mubr.bf16.gmra.mrb[0].mxu0 %v957
      %v1017 = vpop.f32.mrb[0].mxu0
      %v1018 = vadd.f32 %v919, %v1017
      %v1019 = vpop.f32.mrb[0].mxu0
      %v1020 = vpop.f32.mrb[0].mxu0
      %v1021 = vadd.f32 %v924, %v1020
      %v1022 = vpop.f32.mrb[0].mxu0
      %1023 = vdwg.mxu0
      %v1024 = vld [vmem:[%s6] sm:$0xff]
      %v1025 = vld [vmem:[%s6 + $0x8] sm:$0xff]
      %v1026 = vld [vmem:[%s6 + $0x10] sm:$0xff]
      %v1027 = vld [vmem:[%s6 + $0x18] sm:$0xff]
      %v1028 = vld [vmem:[%s6 + $0x20] sm:$0xff]
      %v1029 = vld [vmem:[%s6 + $0x28] sm:$0xff]
      %v1030 = vld [vmem:[%s6 + $0x30] sm:$0xff]
      %v1031 = vld [vmem:[%s6 + $0x38] sm:$0xff]
      %1033 = vset.pattern.permute.xlu0 0
      %1034 = vperm.xlu0 %1033, %v1024
      %v1035 = vpop.permute.xlu0 %1034
      %1038 = vset.pattern.permute.xlu0 0
      %1039 = vperm.xlu0 %1038, %v1025
      %v1040 = vpop.permute.xlu0 %1039
      %1043 = vset.pattern.permute.xlu0 0
      %1044 = vperm.xlu0 %1043, %v1026
      %v1045 = vpop.permute.xlu0 %1044
      %1048 = vset.pattern.permute.xlu0 0
      %1049 = vperm.xlu0 %1048, %v1027
      %v1050 = vpop.permute.xlu0 %1049
      %1053 = vset.pattern.permute.xlu0 0
      %1054 = vperm.xlu0 %1053, %v1028
      %v1055 = vpop.permute.xlu0 %1054
      %1058 = vset.pattern.permute.xlu0 0
      %1059 = vperm.xlu0 %1058, %v1029
      %v1060 = vpop.permute.xlu0 %1059
      %1063 = vset.pattern.permute.xlu0 0
      %1064 = vperm.xlu0 %1063, %v1030
      %v1065 = vpop.permute.xlu0 %1064
      %1068 = vset.pattern.permute.xlu0 0
      %1069 = vperm.xlu0 %1068, %v1031
      %v1070 = vpop.permute.xlu0 %1069
      %v1072 = vmul.f32 %v994, %v1035
      %v1073 = vmul.f32 %v997, %v1040
      %v1074 = vmul.f32 %v1002, %v1045
      %v1075 = vmul.f32 %v1005, %v1050
      %v1076 = vmul.f32 %v1010, %v1055
      %v1077 = vmul.f32 %v1013, %v1060
      %v1078 = vmul.f32 %v1018, %v1065
      %v1079 = vmul.f32 %v1021, %v1070
      %v1080 = vpack.c.bf16 %v1073, %v1072
      %v1081 = vpack.c.bf16 %v1075, %v1074
      %v1082 = vpack.c.bf16 %v1077, %v1076
      %v1083 = vpack.c.bf16 %v1079, %v1078
      %vm1084 = vcmask 523264
      %1085 = vst.msk [vmem:[#allocation2] sm:$0xff] %vm1084, %v1080
      %1086 = vst.msk [vmem:[#allocation2 + $0x28] sm:$0xff] %vm1084, %v1081
      %1087 = vst.msk [vmem:[#allocation2 + $0x50] sm:$0xff] %vm1084, %v1082
      %1088 = vst.msk [vmem:[#allocation2 + $0x78] sm:$0xff] %vm1084, %v1083
      %s1089 = scalar_lea.vmem %s6, 64
      %v1090 = vld [vmem:[%s1089] sm:$0xff]
      %v1091 = vld [vmem:[%s1089 + $0x8] sm:$0xff]
      %v1092 = vld [vmem:[%s1089 + $0x10] sm:$0xff]
      %v1093 = vld [vmem:[%s1089 + $0x18] sm:$0xff]
      %v1094 = vld [vmem:[%s1089 + $0x20] sm:$0xff]
      %v1095 = vld [vmem:[%s1089 + $0x28] sm:$0xff]
      %v1096 = vld [vmem:[%s1089 + $0x30] sm:$0xff]
      %v1097 = vld [vmem:[%s1089 + $0x38] sm:$0xff]
      %1099 = vset.pattern.permute.xlu0 0
      %1100 = vperm.xlu0 %1099, %v1090
      %v1101 = vpop.permute.xlu0 %1100
      %1104 = vset.pattern.permute.xlu0 0
      %1105 = vperm.xlu0 %1104, %v1091
      %v1106 = vpop.permute.xlu0 %1105
      %1109 = vset.pattern.permute.xlu0 0
      %1110 = vperm.xlu0 %1109, %v1092
      %v1111 = vpop.permute.xlu0 %1110
      %1114 = vset.pattern.permute.xlu0 0
      %1115 = vperm.xlu0 %1114, %v1093
      %v1116 = vpop.permute.xlu0 %1115
      %1119 = vset.pattern.permute.xlu0 0
      %1120 = vperm.xlu0 %1119, %v1094
      %v1121 = vpop.permute.xlu0 %1120
      %1124 = vset.pattern.permute.xlu0 0
      %1125 = vperm.xlu0 %1124, %v1095
      %v1126 = vpop.permute.xlu0 %1125
      %1129 = vset.pattern.permute.xlu0 0
      %1130 = vperm.xlu0 %1129, %v1096
      %v1131 = vpop.permute.xlu0 %1130
      %1134 = vset.pattern.permute.xlu0 0
      %1135 = vperm.xlu0 %1134, %v1097
      %v1136 = vpop.permute.xlu0 %1135
      %v1138 = vmul.f32 %v994, %v1101
      %v1139 = vmul.f32 %v997, %v1106
      %v1140 = vmul.f32 %v1002, %v1111
      %v1141 = vmul.f32 %v1005, %v1116
      %v1142 = vmul.f32 %v1010, %v1121
      %v1143 = vmul.f32 %v1013, %v1126
      %v1144 = vmul.f32 %v1018, %v1131
      %v1145 = vmul.f32 %v1021, %v1136
      %v1146 = vpack.c.bf16 %v1139, %v1138
      %v1147 = vpack.c.bf16 %v1141, %v1140
      %v1148 = vpack.c.bf16 %v1143, %v1142
      %v1149 = vpack.c.bf16 %v1145, %v1144
      %1154 = vrot.lane.b32.xlu0 %v1146, 64
      %v1155 = vpop.permute.xlu0 %1154
      %1156 = vrot.lane.b32.xlu0 %v1147, 64
      %v1157 = vpop.permute.xlu0 %1156
      %1158 = vrot.lane.b32.xlu0 %v1148, 64
      %v1159 = vpop.permute.xlu0 %1158
      %1160 = vrot.lane.b32.xlu0 %v1149, 64
      %v1161 = vpop.permute.xlu0 %1160
      %vm1166 = vcmask 1048064
      %1167 = vst.msk [vmem:[#allocation2] sm:$0xff] %vm1166, %v1155
      %1168 = vst.msk [vmem:[#allocation2 + $0x28] sm:$0xff] %vm1166, %v1157
      %1169 = vst.msk [vmem:[#allocation2 + $0x50] sm:$0xff] %vm1166, %v1159
      %1170 = vst.msk [vmem:[#allocation2 + $0x78] sm:$0xff] %vm1166, %v1161
      %s1171 = scalar_lea.vmem %s6, 128
      %v1172 = vld [vmem:[%s1171] sm:$0xff]
      %v1173 = vld [vmem:[%s1171 + $0x8] sm:$0xff]
      %v1174 = vld [vmem:[%s1171 + $0x10] sm:$0xff]
      %v1175 = vld [vmem:[%s1171 + $0x18] sm:$0xff]
      %v1176 = vld [vmem:[%s1171 + $0x20] sm:$0xff]
      %v1177 = vld [vmem:[%s1171 + $0x28] sm:$0xff]
      %v1178 = vld [vmem:[%s1171 + $0x30] sm:$0xff]
      %v1179 = vld [vmem:[%s1171 + $0x38] sm:$0xff]
      %1181 = vset.pattern.permute.xlu0 0
      %1182 = vperm.xlu0 %1181, %v1172
      %v1183 = vpop.permute.xlu0 %1182
      %1186 = vset.pattern.permute.xlu0 0
      %1187 = vperm.xlu0 %1186, %v1173
      %v1188 = vpop.permute.xlu0 %1187
      %1191 = vset.pattern.permute.xlu0 0
      %1192 = vperm.xlu0 %1191, %v1174
      %v1193 = vpop.permute.xlu0 %1192
      %1196 = vset.pattern.permute.xlu0 0
      %1197 = vperm.xlu0 %1196, %v1175
      %v1198 = vpop.permute.xlu0 %1197
      %1201 = vset.pattern.permute.xlu0 0
      %1202 = vperm.xlu0 %1201, %v1176
      %v1203 = vpop.permute.xlu0 %1202
      %1206 = vset.pattern.permute.xlu0 0
      %1207 = vperm.xlu0 %1206, %v1177
      %v1208 = vpop.permute.xlu0 %1207
      %1211 = vset.pattern.permute.xlu0 0
      %1212 = vperm.xlu0 %1211, %v1178
      %v1213 = vpop.permute.xlu0 %1212
      %1216 = vset.pattern.permute.xlu0 0
      %1217 = vperm.xlu0 %1216, %v1179
      %v1218 = vpop.permute.xlu0 %1217
      %v1220 = vmul.f32 %v994, %v1183
      %v1221 = vmul.f32 %v997, %v1188
      %v1222 = vmul.f32 %v1002, %v1193
      %v1223 = vmul.f32 %v1005, %v1198
      %v1224 = vmul.f32 %v1010, %v1203
      %v1225 = vmul.f32 %v1013, %v1208
      %v1226 = vmul.f32 %v1018, %v1213
      %v1227 = vmul.f32 %v1021, %v1218
      %v1228 = vpack.c.bf16 %v1221, %v1220
      %v1229 = vpack.c.bf16 %v1223, %v1222
      %v1230 = vpack.c.bf16 %v1225, %v1224
      %v1231 = vpack.c.bf16 %v1227, %v1226
      %1232 = vst.msk [vmem:[#allocation2 + $0x8] sm:$0xff] %vm1084, %v1228
      %1233 = vst.msk [vmem:[#allocation2 + $0x30] sm:$0xff] %vm1084, %v1229
      %1234 = vst.msk [vmem:[#allocation2 + $0x58] sm:$0xff] %vm1084, %v1230
      %1235 = vst.msk [vmem:[#allocation2 + $0x80] sm:$0xff] %vm1084, %v1231
      %s1236 = scalar_lea.vmem %s6, 192
      %v1237 = vld [vmem:[%s1236] sm:$0xff]
      %v1238 = vld [vmem:[%s1236 + $0x8] sm:$0xff]
      %v1239 = vld [vmem:[%s1236 + $0x10] sm:$0xff]
      %v1240 = vld [vmem:[%s1236 + $0x18] sm:$0xff]
      %v1241 = vld [vmem:[%s1236 + $0x20] sm:$0xff]
      %v1242 = vld [vmem:[%s1236 + $0x28] sm:$0xff]
      %v1243 = vld [vmem:[%s1236 + $0x30] sm:$0xff]
      %v1244 = vld [vmem:[%s1236 + $0x38] sm:$0xff]
      %1246 = vset.pattern.permute.xlu0 0
      %1247 = vperm.xlu0 %1246, %v1237
      %v1248 = vpop.permute.xlu0 %1247
      %1251 = vset.pattern.permute.xlu0 0
      %1252 = vperm.xlu0 %1251, %v1238
      %v1253 = vpop.permute.xlu0 %1252
      %1256 = vset.pattern.permute.xlu0 0
      %1257 = vperm.xlu0 %1256, %v1239
      %v1258 = vpop.permute.xlu0 %1257
      %1261 = vset.pattern.permute.xlu0 0
      %1262 = vperm.xlu0 %1261, %v1240
      %v1263 = vpop.permute.xlu0 %1262
      %1266 = vset.pattern.permute.xlu0 0
      %1267 = vperm.xlu0 %1266, %v1241
      %v1268 = vpop.permute.xlu0 %1267
      %1271 = vset.pattern.permute.xlu0 0
      %1272 = vperm.xlu0 %1271, %v1242
      %v1273 = vpop.permute.xlu0 %1272
      %1276 = vset.pattern.permute.xlu0 0
      %1277 = vperm.xlu0 %1276, %v1243
      %v1278 = vpop.permute.xlu0 %1277
      %1281 = vset.pattern.permute.xlu0 0
      %1282 = vperm.xlu0 %1281, %v1244
      %v1283 = vpop.permute.xlu0 %1282
      %v1285 = vmul.f32 %v994, %v1248
      %v1286 = vmul.f32 %v997, %v1253
      %v1287 = vmul.f32 %v1002, %v1258
      %v1288 = vmul.f32 %v1005, %v1263
      %v1289 = vmul.f32 %v1010, %v1268
      %v1290 = vmul.f32 %v1013, %v1273
      %v1291 = vmul.f32 %v1018, %v1278
      %v1292 = vmul.f32 %v1021, %v1283
      %v1293 = vpack.c.bf16 %v1286, %v1285
      %v1294 = vpack.c.bf16 %v1288, %v1287
      %v1295 = vpack.c.bf16 %v1290, %v1289
      %v1296 = vpack.c.bf16 %v1292, %v1291
      %1301 = vrot.lane.b32.xlu0 %v1293, 64
      %v1302 = vpop.permute.xlu0 %1301
      %1303 = vrot.lane.b32.xlu0 %v1294, 64
      %v1304 = vpop.permute.xlu0 %1303
      %1305 = vrot.lane.b32.xlu0 %v1295, 64
      %v1306 = vpop.permute.xlu0 %1305
      %1307 = vrot.lane.b32.xlu0 %v1296, 64
      %v1308 = vpop.permute.xlu0 %1307
      %1313 = vst.msk [vmem:[#allocation2 + $0x8] sm:$0xff] %vm1166, %v1302
      %1314 = vst.msk [vmem:[#allocation2 + $0x30] sm:$0xff] %vm1166, %v1304
      %1315 = vst.msk [vmem:[#allocation2 + $0x58] sm:$0xff] %vm1166, %v1306
      %1316 = vst.msk [vmem:[#allocation2 + $0x80] sm:$0xff] %vm1166, %v1308
      %s1317 = scalar_lea.vmem %s6, 256
      %v1318 = vld [vmem:[%s1317] sm:$0xff]
      %v1319 = vld [vmem:[%s1317 + $0x8] sm:$0xff]
      %v1320 = vld [vmem:[%s1317 + $0x10] sm:$0xff]
      %v1321 = vld [vmem:[%s1317 + $0x18] sm:$0xff]
      %v1322 = vld [vmem:[%s1317 + $0x20] sm:$0xff]
      %v1323 = vld [vmem:[%s1317 + $0x28] sm:$0xff]
      %v1324 = vld [vmem:[%s1317 + $0x30] sm:$0xff]
      %v1325 = vld [vmem:[%s1317 + $0x38] sm:$0xff]
      %1327 = vset.pattern.permute.xlu0 0
      %1328 = vperm.xlu0 %1327, %v1318
      %v1329 = vpop.permute.xlu0 %1328
      %1332 = vset.pattern.permute.xlu0 0
      %1333 = vperm.xlu0 %1332, %v1319
      %v1334 = vpop.permute.xlu0 %1333
      %1337 = vset.pattern.permute.xlu0 0
      %1338 = vperm.xlu0 %1337, %v1320
      %v1339 = vpop.permute.xlu0 %1338
      %1342 = vset.pattern.permute.xlu0 0
      %1343 = vperm.xlu0 %1342, %v1321
      %v1344 = vpop.permute.xlu0 %1343
      %1347 = vset.pattern.permute.xlu0 0
      %1348 = vperm.xlu0 %1347, %v1322
      %v1349 = vpop.permute.xlu0 %1348
      %1352 = vset.pattern.permute.xlu0 0
      %1353 = vperm.xlu0 %1352, %v1323
      %v1354 = vpop.permute.xlu0 %1353
      %1357 = vset.pattern.permute.xlu0 0
      %1358 = vperm.xlu0 %1357, %v1324
      %v1359 = vpop.permute.xlu0 %1358
      %1362 = vset.pattern.permute.xlu0 0
      %1363 = vperm.xlu0 %1362, %v1325
      %v1364 = vpop.permute.xlu0 %1363
      %v1366 = vmul.f32 %v994, %v1329
      %v1367 = vmul.f32 %v997, %v1334
      %v1368 = vmul.f32 %v1002, %v1339
      %v1369 = vmul.f32 %v1005, %v1344
      %v1370 = vmul.f32 %v1010, %v1349
      %v1371 = vmul.f32 %v1013, %v1354
      %v1372 = vmul.f32 %v1018, %v1359
      %v1373 = vmul.f32 %v1021, %v1364
      %v1374 = vpack.c.bf16 %v1367, %v1366
      %v1375 = vpack.c.bf16 %v1369, %v1368
      %v1376 = vpack.c.bf16 %v1371, %v1370
      %v1377 = vpack.c.bf16 %v1373, %v1372
      %1378 = vst.msk [vmem:[#allocation2 + $0x10] sm:$0xff] %vm1084, %v1374
      %1379 = vst.msk [vmem:[#allocation2 + $0x38] sm:$0xff] %vm1084, %v1375
      %1380 = vst.msk [vmem:[#allocation2 + $0x60] sm:$0xff] %vm1084, %v1376
      %1381 = vst.msk [vmem:[#allocation2 + $0x88] sm:$0xff] %vm1084, %v1377
      %s1382 = scalar_lea.vmem %s6, 320
      %v1383 = vld [vmem:[%s1382] sm:$0xff]
      %v1384 = vld [vmem:[%s1382 + $0x8] sm:$0xff]
      %v1385 = vld [vmem:[%s1382 + $0x10] sm:$0xff]
      %v1386 = vld [vmem:[%s1382 + $0x18] sm:$0xff]
      %v1387 = vld [vmem:[%s1382 + $0x20] sm:$0xff]
      %v1388 = vld [vmem:[%s1382 + $0x28] sm:$0xff]
      %v1389 = vld [vmem:[%s1382 + $0x30] sm:$0xff]
      %v1390 = vld [vmem:[%s1382 + $0x38] sm:$0xff]
      %1392 = vset.pattern.permute.xlu0 0
      %1393 = vperm.xlu0 %1392, %v1383
      %v1394 = vpop.permute.xlu0 %1393
      %1397 = vset.pattern.permute.xlu0 0
      %1398 = vperm.xlu0 %1397, %v1384
      %v1399 = vpop.permute.xlu0 %1398
      %1402 = vset.pattern.permute.xlu0 0
      %1403 = vperm.xlu0 %1402, %v1385
      %v1404 = vpop.permute.xlu0 %1403
      %1407 = vset.pattern.permute.xlu0 0
      %1408 = vperm.xlu0 %1407, %v1386
      %v1409 = vpop.permute.xlu0 %1408
      %1412 = vset.pattern.permute.xlu0 0
      %1413 = vperm.xlu0 %1412, %v1387
      %v1414 = vpop.permute.xlu0 %1413
      %1417 = vset.pattern.permute.xlu0 0
      %1418 = vperm.xlu0 %1417, %v1388
      %v1419 = vpop.permute.xlu0 %1418
      %1422 = vset.pattern.permute.xlu0 0
      %1423 = vperm.xlu0 %1422, %v1389
      %v1424 = vpop.permute.xlu0 %1423
      %1427 = vset.pattern.permute.xlu0 0
      %1428 = vperm.xlu0 %1427, %v1390
      %v1429 = vpop.permute.xlu0 %1428
      %v1431 = vmul.f32 %v994, %v1394
      %v1432 = vmul.f32 %v997, %v1399
      %v1433 = vmul.f32 %v1002, %v1404
      %v1434 = vmul.f32 %v1005, %v1409
      %v1435 = vmul.f32 %v1010, %v1414
      %v1436 = vmul.f32 %v1013, %v1419
      %v1437 = vmul.f32 %v1018, %v1424
      %v1438 = vmul.f32 %v1021, %v1429
      %v1439 = vpack.c.bf16 %v1432, %v1431
      %v1440 = vpack.c.bf16 %v1434, %v1433
      %v1441 = vpack.c.bf16 %v1436, %v1435
      %v1442 = vpack.c.bf16 %v1438, %v1437
      %1447 = vrot.lane.b32.xlu0 %v1439, 64
      %v1448 = vpop.permute.xlu0 %1447
      %1449 = vrot.lane.b32.xlu0 %v1440, 64
      %v1450 = vpop.permute.xlu0 %1449
      %1451 = vrot.lane.b32.xlu0 %v1441, 64
      %v1452 = vpop.permute.xlu0 %1451
      %1453 = vrot.lane.b32.xlu0 %v1442, 64
      %v1454 = vpop.permute.xlu0 %1453
      %1459 = vst.msk [vmem:[#allocation2 + $0x10] sm:$0xff] %vm1166, %v1448
      %1460 = vst.msk [vmem:[#allocation2 + $0x38] sm:$0xff] %vm1166, %v1450
      %1461 = vst.msk [vmem:[#allocation2 + $0x60] sm:$0xff] %vm1166, %v1452
      %1462 = vst.msk [vmem:[#allocation2 + $0x88] sm:$0xff] %vm1166, %v1454
      %s1463 = scalar_lea.vmem %s6, 384
      %v1464 = vld [vmem:[%s1463] sm:$0xff]
      %v1465 = vld [vmem:[%s1463 + $0x8] sm:$0xff]
      %v1466 = vld [vmem:[%s1463 + $0x10] sm:$0xff]
      %v1467 = vld [vmem:[%s1463 + $0x18] sm:$0xff]
      %v1468 = vld [vmem:[%s1463 + $0x20] sm:$0xff]
      %v1469 = vld [vmem:[%s1463 + $0x28] sm:$0xff]
      %v1470 = vld [vmem:[%s1463 + $0x30] sm:$0xff]
      %v1471 = vld [vmem:[%s1463 + $0x38] sm:$0xff]
      %1473 = vset.pattern.permute.xlu0 0
      %1474 = vperm.xlu0 %1473, %v1464
      %v1475 = vpop.permute.xlu0 %1474
      %1478 = vset.pattern.permute.xlu0 0
      %1479 = vperm.xlu0 %1478, %v1465
      %v1480 = vpop.permute.xlu0 %1479
      %1483 = vset.pattern.permute.xlu0 0
      %1484 = vperm.xlu0 %1483, %v1466
      %v1485 = vpop.permute.xlu0 %1484
      %1488 = vset.pattern.permute.xlu0 0
      %1489 = vperm.xlu0 %1488, %v1467
      %v1490 = vpop.permute.xlu0 %1489
      %1493 = vset.pattern.permute.xlu0 0
      %1494 = vperm.xlu0 %1493, %v1468
      %v1495 = vpop.permute.xlu0 %1494
      %1498 = vset.pattern.permute.xlu0 0
      %1499 = vperm.xlu0 %1498, %v1469
      %v1500 = vpop.permute.xlu0 %1499
      %1503 = vset.pattern.permute.xlu0 0
      %1504 = vperm.xlu0 %1503, %v1470
      %v1505 = vpop.permute.xlu0 %1504
      %1508 = vset.pattern.permute.xlu0 0
      %1509 = vperm.xlu0 %1508, %v1471
      %v1510 = vpop.permute.xlu0 %1509
      %v1512 = vmul.f32 %v994, %v1475
      %v1513 = vmul.f32 %v997, %v1480
      %v1514 = vmul.f32 %v1002, %v1485
      %v1515 = vmul.f32 %v1005, %v1490
      %v1516 = vmul.f32 %v1010, %v1495
      %v1517 = vmul.f32 %v1013, %v1500
      %v1518 = vmul.f32 %v1018, %v1505
      %v1519 = vmul.f32 %v1021, %v1510
      %v1520 = vpack.c.bf16 %v1513, %v1512
      %v1521 = vpack.c.bf16 %v1515, %v1514
      %v1522 = vpack.c.bf16 %v1517, %v1516
      %v1523 = vpack.c.bf16 %v1519, %v1518
      %1524 = vst.msk [vmem:[#allocation2 + $0x18] sm:$0xff] %vm1084, %v1520
      %1525 = vst.msk [vmem:[#allocation2 + $0x40] sm:$0xff] %vm1084, %v1521
      %1526 = vst.msk [vmem:[#allocation2 + $0x68] sm:$0xff] %vm1084, %v1522
      %1527 = vst.msk [vmem:[#allocation2 + $0x90] sm:$0xff] %vm1084, %v1523
      %s1528 = scalar_lea.vmem %s6, 448
      %v1529 = vld [vmem:[%s1528] sm:$0xff]
      %v1530 = vld [vmem:[%s1528 + $0x8] sm:$0xff]
      %v1531 = vld [vmem:[%s1528 + $0x10] sm:$0xff]
      %v1532 = vld [vmem:[%s1528 + $0x18] sm:$0xff]
      %v1533 = vld [vmem:[%s1528 + $0x20] sm:$0xff]
      %v1534 = vld [vmem:[%s1528 + $0x28] sm:$0xff]
      %v1535 = vld [vmem:[%s1528 + $0x30] sm:$0xff]
      %v1536 = vld [vmem:[%s1528 + $0x38] sm:$0xff]
      %1538 = vset.pattern.permute.xlu0 0
      %1539 = vperm.xlu0 %1538, %v1529
      %v1540 = vpop.permute.xlu0 %1539
      %1543 = vset.pattern.permute.xlu0 0
      %1544 = vperm.xlu0 %1543, %v1530
      %v1545 = vpop.permute.xlu0 %1544
      %1548 = vset.pattern.permute.xlu0 0
      %1549 = vperm.xlu0 %1548, %v1531
      %v1550 = vpop.permute.xlu0 %1549
      %1553 = vset.pattern.permute.xlu0 0
      %1554 = vperm.xlu0 %1553, %v1532
      %v1555 = vpop.permute.xlu0 %1554
      %1558 = vset.pattern.permute.xlu0 0
      %1559 = vperm.xlu0 %1558, %v1533
      %v1560 = vpop.permute.xlu0 %1559
      %1563 = vset.pattern.permute.xlu0 0
      %1564 = vperm.xlu0 %1563, %v1534
      %v1565 = vpop.permute.xlu0 %1564
      %1568 = vset.pattern.permute.xlu0 0
      %1569 = vperm.xlu0 %1568, %v1535
      %v1570 = vpop.permute.xlu0 %1569
      %1573 = vset.pattern.permute.xlu0 0
      %1574 = vperm.xlu0 %1573, %v1536
      %v1575 = vpop.permute.xlu0 %1574
      %v1577 = vmul.f32 %v994, %v1540
      %v1578 = vmul.f32 %v997, %v1545
      %v1579 = vmul.f32 %v1002, %v1550
      %v1580 = vmul.f32 %v1005, %v1555
      %v1581 = vmul.f32 %v1010, %v1560
      %v1582 = vmul.f32 %v1013, %v1565
      %v1583 = vmul.f32 %v1018, %v1570
      %v1584 = vmul.f32 %v1021, %v1575
      %v1585 = vpack.c.bf16 %v1578, %v1577
      %v1586 = vpack.c.bf16 %v1580, %v1579
      %v1587 = vpack.c.bf16 %v1582, %v1581
      %v1588 = vpack.c.bf16 %v1584, %v1583
      %1593 = vrot.lane.b32.xlu0 %v1585, 64
      %v1594 = vpop.permute.xlu0 %1593
      %1595 = vrot.lane.b32.xlu0 %v1586, 64
      %v1596 = vpop.permute.xlu0 %1595
      %1597 = vrot.lane.b32.xlu0 %v1587, 64
      %v1598 = vpop.permute.xlu0 %1597
      %1599 = vrot.lane.b32.xlu0 %v1588, 64
      %v1600 = vpop.permute.xlu0 %1599
      %1605 = vst.msk [vmem:[#allocation2 + $0x18] sm:$0xff] %vm1166, %v1594
      %1606 = vst.msk [vmem:[#allocation2 + $0x40] sm:$0xff] %vm1166, %v1596
      %1607 = vst.msk [vmem:[#allocation2 + $0x68] sm:$0xff] %vm1166, %v1598
      %1608 = vst.msk [vmem:[#allocation2 + $0x90] sm:$0xff] %vm1166, %v1600
      %s1609 = scalar_lea.vmem %s6, 512
      %v1610 = vld [vmem:[%s1609] sm:$0xff]
      %v1611 = vld [vmem:[%s1609 + $0x8] sm:$0xff]
      %v1612 = vld [vmem:[%s1609 + $0x10] sm:$0xff]
      %v1613 = vld [vmem:[%s1609 + $0x18] sm:$0xff]
      %v1614 = vld [vmem:[%s1609 + $0x20] sm:$0xff]
      %v1615 = vld [vmem:[%s1609 + $0x28] sm:$0xff]
      %v1616 = vld [vmem:[%s1609 + $0x30] sm:$0xff]
      %v1617 = vld [vmem:[%s1609 + $0x38] sm:$0xff]
      %1619 = vset.pattern.permute.xlu0 0
      %1620 = vperm.xlu0 %1619, %v1610
      %v1621 = vpop.permute.xlu0 %1620
      %1624 = vset.pattern.permute.xlu0 0
      %1625 = vperm.xlu0 %1624, %v1611
      %v1626 = vpop.permute.xlu0 %1625
      %1629 = vset.pattern.permute.xlu0 0
      %1630 = vperm.xlu0 %1629, %v1612
      %v1631 = vpop.permute.xlu0 %1630
      %1634 = vset.pattern.permute.xlu0 0
      %1635 = vperm.xlu0 %1634, %v1613
      %v1636 = vpop.permute.xlu0 %1635
      %1639 = vset.pattern.permute.xlu0 0
      %1640 = vperm.xlu0 %1639, %v1614
      %v1641 = vpop.permute.xlu0 %1640
      %1644 = vset.pattern.permute.xlu0 0
      %1645 = vperm.xlu0 %1644, %v1615
      %v1646 = vpop.permute.xlu0 %1645
      %1649 = vset.pattern.permute.xlu0 0
      %1650 = vperm.xlu0 %1649, %v1616
      %v1651 = vpop.permute.xlu0 %1650
      %1654 = vset.pattern.permute.xlu0 0
      %1655 = vperm.xlu0 %1654, %v1617
      %v1656 = vpop.permute.xlu0 %1655
      %v1658 = vmul.f32 %v994, %v1621
      %v1659 = vmul.f32 %v997, %v1626
      %v1660 = vmul.f32 %v1002, %v1631
      %v1661 = vmul.f32 %v1005, %v1636
      %v1662 = vmul.f32 %v1010, %v1641
      %v1663 = vmul.f32 %v1013, %v1646
      %v1664 = vmul.f32 %v1018, %v1651
      %v1665 = vmul.f32 %v1021, %v1656
      %v1666 = vpack.c.bf16 %v1659, %v1658
      %v1667 = vpack.c.bf16 %v1661, %v1660
      %v1668 = vpack.c.bf16 %v1663, %v1662
      %v1669 = vpack.c.bf16 %v1665, %v1664
      %1670 = vst.msk [vmem:[#allocation2 + $0x20] sm:$0xff] %vm1084, %v1666
      %1671 = vst.msk [vmem:[#allocation2 + $0x48] sm:$0xff] %vm1084, %v1667
      %1672 = vst.msk [vmem:[#allocation2 + $0x70] sm:$0xff] %vm1084, %v1668
      %1673 = vst.msk [vmem:[#allocation2 + $0x98] sm:$0xff] %vm1084, %v1669
      %v1674 = vld [vmem:[#allocation2] sm:$0xff]
      %v1675 = vld [vmem:[#allocation2 + $0x8] sm:$0xff]
      %v1676 = vld [vmem:[#allocation2 + $0x10] sm:$0xff]
      %v1677 = vld [vmem:[#allocation2 + $0x18] sm:$0xff]
      %v1678 = vld [vmem:[#allocation2 + $0x20] sm:$0xff]
      %v1679 = vld [vmem:[#allocation2 + $0x28] sm:$0xff]
      %v1680 = vld [vmem:[#allocation2 + $0x30] sm:$0xff]
      %v1681 = vld [vmem:[#allocation2 + $0x38] sm:$0xff]
      %v1682 = vld [vmem:[#allocation2 + $0x40] sm:$0xff]
      %v1683 = vld [vmem:[#allocation2 + $0x48] sm:$0xff]
      %v1684 = vld [vmem:[#allocation2 + $0x50] sm:$0xff]
      %v1685 = vld [vmem:[#allocation2 + $0x58] sm:$0xff]
      %v1686 = vld [vmem:[#allocation2 + $0x60] sm:$0xff]
      %v1687 = vld [vmem:[#allocation2 + $0x68] sm:$0xff]
      %v1688 = vld [vmem:[#allocation2 + $0x70] sm:$0xff]
      %v1689 = vld [vmem:[#allocation2 + $0x78] sm:$0xff]
      %v1690 = vld [vmem:[#allocation2 + $0x80] sm:$0xff]
      %v1691 = vld [vmem:[#allocation2 + $0x88] sm:$0xff]
      %v1692 = vld [vmem:[#allocation2 + $0x90] sm:$0xff]
      %v1693 = vld [vmem:[#allocation2 + $0x98] sm:$0xff]
      %v1694 = vld [vmem:[%s7] sm:$0xff]
      %v1695 = vld [vmem:[%s7 + $0x8] sm:$0xff]
      %v1696 = vld [vmem:[%s7 + $0x10] sm:$0xff]
      %v1697 = vld [vmem:[%s7 + $0x18] sm:$0xff]
      %v1698 = vld [vmem:[%s7 + $0x20] sm:$0xff]
      %v1699 = vld [vmem:[%s7 + $0x28] sm:$0xff]
      %v1700 = vld [vmem:[%s7 + $0x30] sm:$0xff]
      %v1701 = vld [vmem:[%s7 + $0x38] sm:$0xff]
      %1703 = vset.pattern.permute.xlu0 0
      %1704 = vperm.xlu0 %1703, %v1694
      %v1705 = vpop.permute.xlu0 %1704
      %1708 = vset.pattern.permute.xlu0 0
      %1709 = vperm.xlu0 %1708, %v1695
      %v1710 = vpop.permute.xlu0 %1709
      %1713 = vset.pattern.permute.xlu0 0
      %1714 = vperm.xlu0 %1713, %v1696
      %v1715 = vpop.permute.xlu0 %1714
      %1718 = vset.pattern.permute.xlu0 0
      %1719 = vperm.xlu0 %1718, %v1697
      %v1720 = vpop.permute.xlu0 %1719
      %1723 = vset.pattern.permute.xlu0 0
      %1724 = vperm.xlu0 %1723, %v1698
      %v1725 = vpop.permute.xlu0 %1724
      %1728 = vset.pattern.permute.xlu0 0
      %1729 = vperm.xlu0 %1728, %v1699
      %v1730 = vpop.permute.xlu0 %1729
      %1733 = vset.pattern.permute.xlu0 0
      %1734 = vperm.xlu0 %1733, %v1700
      %v1735 = vpop.permute.xlu0 %1734
      %1738 = vset.pattern.permute.xlu0 0
      %1739 = vperm.xlu0 %1738, %v1701
      %v1740 = vpop.permute.xlu0 %1739
      %v1814 = vunpack.c.l.b16 %v795
      %v1815 = vunpack.c.l.b16 %v796
      %v1816 = vunpack.c.l.b16 %v797
      %v1817 = vunpack.c.l.b16 %v798
      %v1818 = vunpack.c.l.b16 %v799
      %v1819 = vunpack.c.l.b16 %v800
      %v1820 = vunpack.c.l.b16 %v801
      %v1821 = vunpack.c.l.b16 %v802
      %v1822 = vunpack.c.l.b16 %v803
      %v1823 = vunpack.c.l.b16 %v804
      %v1824 = vunpack.c.l.b16 %v805
      %v1825 = vunpack.c.l.b16 %v806
      %v1826 = vunpack.c.l.b16 %v807
      %v1827 = vunpack.c.l.b16 %v808
      %v1828 = vunpack.c.l.b16 %v809
      %v1829 = vunpack.c.l.b16 %v810
      %v1830 = vunpack.c.l.b16 %v811
      %v1831 = vunpack.c.l.b16 %v812
      %v1832 = vunpack.c.l.b16 %v813
      %v1833 = vunpack.c.l.b16 %v814
      %v1834 = vunpack.c.l.b16 %v815
      %v1835 = vunpack.c.l.b16 %v816
      %v1836 = vunpack.c.l.b16 %v817
      %v1837 = vunpack.c.l.b16 %v818
      %v1838 = vunpack.c.l.b16 %v819
      %v1839 = vunpack.c.l.b16 %v820
      %v1840 = vunpack.c.l.b16 %v821
      %v1841 = vunpack.c.l.b16 %v822
      %v1842 = vunpack.c.l.b16 %v823
      %v1843 = vunpack.c.l.b16 %v824
      %v1844 = vunpack.c.l.b16 %v825
      %v1845 = vunpack.c.l.b16 %v826
      %v1846 = vunpack.c.l.b16 %v827
      %v1847 = vunpack.c.l.b16 %v828
      %v1848 = vunpack.c.l.b16 %v829
      %v1849 = vunpack.c.l.b16 %v830
      %v1850 = vunpack.c.l.b16 %v831
      %v1851 = vunpack.c.l.b16 %v832
      %v1852 = vunpack.c.l.b16 %v833
      %v1853 = vunpack.c.l.b16 %v834
      %v1854 = vunpack.c.l.b16 %v835
      %v1855 = vunpack.c.l.b16 %v836
      %v1856 = vunpack.c.l.b16 %v837
      %v1857 = vunpack.c.l.b16 %v838
      %v1858 = vunpack.c.l.b16 %v839
      %v1859 = vunpack.c.l.b16 %v840
      %v1860 = vunpack.c.l.b16 %v841
      %v1861 = vunpack.c.l.b16 %v842
      %v1862 = vunpack.c.l.b16 %v843
      %v1863 = vunpack.c.l.b16 %v844
      %v1864 = vunpack.c.l.b16 %v845
      %v1865 = vunpack.c.l.b16 %v846
      %v1866 = vunpack.c.l.b16 %v847
      %v1867 = vunpack.c.l.b16 %v848
      %v1868 = vunpack.c.l.b16 %v849
      %v1869 = vunpack.c.l.b16 %v850
      %v1870 = vunpack.c.l.b16 %v851
      %v1871 = vunpack.c.l.b16 %v852
      %v1872 = vunpack.c.l.b16 %v853
      %v1873 = vunpack.c.l.b16 %v854
      %v1874 = vunpack.c.l.b16 %v855
      %v1875 = vunpack.c.l.b16 %v856
      %v1876 = vunpack.c.l.b16 %v857
      %v1877 = vunpack.c.l.b16 %v858
      %v1878 = vunpack.c.l.b16 %v859
      %v1879 = vunpack.c.l.b16 %v860
      %v1880 = vunpack.c.l.b16 %v861
      %v1881 = vunpack.c.l.b16 %v862
      %v1882 = vunpack.c.l.b16 %v863
      %v1883 = vunpack.c.l.b16 %v864
      %v1884 = vunpack.c.l.b16 %v865
      %v1885 = vunpack.c.l.b16 %v866
      %v1886 = vpack.c.b16 %v1815, %v1814
      %v1887 = vpack.c.b16 %v1817, %v1816
      %v1888 = vpack.c.b16 %v1819, %v1818
      %v1889 = vpack.c.b16 %v1821, %v1820
      %v1890 = vpack.c.b16 %v1823, %v1822
      %v1891 = vpack.c.b16 %v1825, %v1824
      %v1892 = vpack.c.b16 %v1827, %v1826
      %v1893 = vpack.c.b16 %v1829, %v1828
      %v1894 = vpack.c.b16 %v1831, %v1830
      %v1895 = vpack.c.b16 %v1833, %v1832
      %v1896 = vpack.c.b16 %v1835, %v1834
      %v1897 = vpack.c.b16 %v1837, %v1836
      %v1898 = vpack.c.b16 %v1839, %v1838
      %v1899 = vpack.c.b16 %v1841, %v1840
      %v1900 = vpack.c.b16 %v1843, %v1842
      %v1901 = vpack.c.b16 %v1845, %v1844
      %v1902 = vpack.c.b16 %v1847, %v1846
      %v1903 = vpack.c.b16 %v1849, %v1848
      %v1904 = vpack.c.b16 %v1851, %v1850
      %v1905 = vpack.c.b16 %v1853, %v1852
      %v1906 = vpack.c.b16 %v1855, %v1854
      %v1907 = vpack.c.b16 %v1857, %v1856
      %v1908 = vpack.c.b16 %v1859, %v1858
      %v1909 = vpack.c.b16 %v1861, %v1860
      %v1910 = vpack.c.b16 %v1863, %v1862
      %v1911 = vpack.c.b16 %v1865, %v1864
      %v1912 = vpack.c.b16 %v1867, %v1866
      %v1913 = vpack.c.b16 %v1869, %v1868
      %v1914 = vpack.c.b16 %v1871, %v1870
      %v1915 = vpack.c.b16 %v1873, %v1872
      %v1916 = vpack.c.b16 %v1875, %v1874
      %v1917 = vpack.c.b16 %v1877, %v1876
      %v1918 = vpack.c.b16 %v1879, %v1878
      %v1919 = vpack.c.b16 %v1881, %v1880
      %v1920 = vpack.c.b16 %v1883, %v1882
      %v1921 = vpack.c.b16 %v1885, %v1884
      %v1959 = vsel %vm1084, %v1678, 0
      %v1962 = vsel %vm1084, %v1683, 0
      %v1965 = vsel %vm1084, %v1688, 0
      %v1968 = vsel %vm1084, %v1693, 0
      %1970 = vmatprep.subr.bf16.mxu0 0
      %1971 = vmatpush1.bf16.msra.mxu0 %v1886
      %1972 = vmatprep.subr.bf16.mxu0 0
      %1973 = vmatpush1.bf16.msra.mxu0 %v1887
      %1974 = vmatprep.subr.bf16.mxu0 0
      %1975 = vmatpush1.bf16.msra.mxu0 %v1888
      %1976 = vmatprep.subr.bf16.mxu0 0
      %1977 = vmatpush1.bf16.msra.mxu0 %v1889
      %1978 = vmatprep.subr.bf16.mxu0 0
      %1979 = vmatpush1.bf16.msra.mxu0 %v1890
      %1980 = vmatprep.subr.bf16.mxu0 0
      %1981 = vmatpush1.bf16.msra.mxu0 %v1891
      %1982 = vmatprep.subr.bf16.mxu0 0
      %1983 = vmatpush1.bf16.msra.mxu0 %v1892
      %1984 = vmatprep.subr.bf16.mxu0 0
      %1985 = vmatpush1.bf16.msra.mxu0 %v1893
      %1986 = vmatprep.subr.bf16.mxu0 0
      %1987 = vmatpush1.bf16.msra.mxu0 %v1894
      %1988 = vmatprep.subr.bf16.mxu0 0
      %1989 = vmatpush1.bf16.msra.mxu0 %v1895
      %1990 = vmatprep.subr.bf16.mxu0 0
      %1991 = vmatpush1.bf16.msra.mxu0 %v1896
      %1992 = vmatprep.subr.bf16.mxu0 0
      %1993 = vmatpush1.bf16.msra.mxu0 %v1897
      %1994 = vmatprep.subr.bf16.mxu0 0
      %1995 = vmatpush1.bf16.msra.mxu0 %v1898
      %1996 = vmatprep.subr.bf16.mxu0 0
      %1997 = vmatpush1.bf16.msra.mxu0 %v1899
      %1998 = vmatprep.subr.bf16.mxu0 0
      %1999 = vmatpush1.bf16.msra.mxu0 %v1900
      %2000 = vmatprep.subr.bf16.mxu0 0
      %2001 = vmatpush1.bf16.msra.mxu0 %v1901
      %2002 = vmatprep.mubr.bf16.mxu0 %v1675
      %2003 = vmatmul.mubr.bf16.gmra.mrb[0].mxu0 %v1674
      %v2004 = vpop.f32.mrb[0].mxu0
      %v2005 = vadd.f32 %v1705, %v2004
      %v2006 = vpop.f32.mrb[0].mxu0
      %v2007 = vpop.f32.mrb[0].mxu0
      %v2008 = vadd.f32 %v1710, %v2007
      %v2009 = vpop.f32.mrb[0].mxu0
      %2010 = vmatprep.mubr.bf16.mxu0 %v1680
      %2011 = vmatmul.mubr.bf16.gmra.mrb[0].mxu0 %v1679
      %v2012 = vpop.f32.mrb[0].mxu0
      %v2013 = vadd.f32 %v1715, %v2012
      %v2014 = vpop.f32.mrb[0].mxu0
      %v2015 = vpop.f32.mrb[0].mxu0
      %v2016 = vadd.f32 %v1720, %v2015
      %v2017 = vpop.f32.mrb[0].mxu0
      %2018 = vmatprep.mubr.bf16.mxu0 %v1685
      %2019 = vmatmul.mubr.bf16.gmra.mrb[0].mxu0 %v1684
      %v2020 = vpop.f32.mrb[0].mxu0
      %v2021 = vadd.f32 %v1725, %v2020
      %v2022 = vpop.f32.mrb[0].mxu0
      %v2023 = vpop.f32.mrb[0].mxu0
      %v2024 = vadd.f32 %v1730, %v2023
      %v2025 = vpop.f32.mrb[0].mxu0
      %2026 = vmatprep.mubr.bf16.mxu0 %v1690
      %2027 = vmatmul.mubr.bf16.gmra.mrb[0].mxu0 %v1689
      %v2028 = vpop.f32.mrb[0].mxu0
      %v2029 = vadd.f32 %v1735, %v2028
      %v2030 = vpop.f32.mrb[0].mxu0
      %v2031 = vpop.f32.mrb[0].mxu0
      %v2032 = vadd.f32 %v1740, %v2031
      %v2033 = vpop.f32.mrb[0].mxu0
      %2034 = vdwg.mxu0
      %2035 = vmatprep.subr.bf16.mxu0 0
      %2036 = vmatpush1.bf16.msra.mxu0 %v1902
      %2037 = vmatprep.subr.bf16.mxu0 0
      %2038 = vmatpush1.bf16.msra.mxu0 %v1903
      %2039 = vmatprep.subr.bf16.mxu0 0
      %2040 = vmatpush1.bf16.msra.mxu0 %v1904
      %2041 = vmatprep.subr.bf16.mxu0 0
      %2042 = vmatpush1.bf16.msra.mxu0 %v1905
      %2043 = vmatprep.subr.bf16.mxu0 0
      %2044 = vmatpush1.bf16.msra.mxu0 %v1906
      %2045 = vmatprep.subr.bf16.mxu0 0
      %2046 = vmatpush1.bf16.msra.mxu0 %v1907
      %2047 = vmatprep.subr.bf16.mxu0 0
      %2048 = vmatpush1.bf16.msra.mxu0 %v1908
      %2049 = vmatprep.subr.bf16.mxu0 0
      %2050 = vmatpush1.bf16.msra.mxu0 %v1909
      %2051 = vmatprep.subr.bf16.mxu0 0
      %2052 = vmatpush1.bf16.msra.mxu0 %v1910
      %2053 = vmatprep.subr.bf16.mxu0 0
      %2054 = vmatpush1.bf16.msra.mxu0 %v1911
      %2055 = vmatprep.subr.bf16.mxu0 0
      %2056 = vmatpush1.bf16.msra.mxu0 %v1912
      %2057 = vmatprep.subr.bf16.mxu0 0
      %2058 = vmatpush1.bf16.msra.mxu0 %v1913
      %2059 = vmatprep.subr.bf16.mxu0 0
      %2060 = vmatpush1.bf16.msra.mxu0 %v1914
      %2061 = vmatprep.subr.bf16.mxu0 0
      %2062 = vmatpush1.bf16.msra.mxu0 %v1915
      %2063 = vmatprep.subr.bf16.mxu0 0
      %2064 = vmatpush1.bf16.msra.mxu0 %v1916
      %2065 = vmatprep.subr.bf16.mxu0 0
      %2066 = vmatpush1.bf16.msra.mxu0 %v1917
      %2067 = vmatprep.mubr.bf16.mxu0 %v1677
      %2068 = vmatmul.mubr.bf16.gmra.mrb[0].mxu0 %v1676
      %v2069 = vpop.f32.mrb[0].mxu0
      %v2070 = vadd.f32 %v2005, %v2069
      %v2071 = vpop.f32.mrb[0].mxu0
      %v2072 = vpop.f32.mrb[0].mxu0
      %v2073 = vadd.f32 %v2008, %v2072
      %v2074 = vpop.f32.mrb[0].mxu0
      %2075 = vmatprep.mubr.bf16.mxu0 %v1682
      %2076 = vmatmul.mubr.bf16.gmra.mrb[0].mxu0 %v1681
      %v2077 = vpop.f32.mrb[0].mxu0
      %v2078 = vadd.f32 %v2013, %v2077
      %v2079 = vpop.f32.mrb[0].mxu0
      %v2080 = vpop.f32.mrb[0].mxu0
      %v2081 = vadd.f32 %v2016, %v2080
      %v2082 = vpop.f32.mrb[0].mxu0
      %2083 = vmatprep.mubr.bf16.mxu0 %v1687
      %2084 = vmatmul.mubr.bf16.gmra.mrb[0].mxu0 %v1686
      %v2085 = vpop.f32.mrb[0].mxu0
      %v2086 = vadd.f32 %v2021, %v2085
      %v2087 = vpop.f32.mrb[0].mxu0
      %v2088 = vpop.f32.mrb[0].mxu0
      %v2089 = vadd.f32 %v2024, %v2088
      %v2090 = vpop.f32.mrb[0].mxu0
      %2091 = vmatprep.mubr.bf16.mxu0 %v1692
      %2092 = vmatmul.mubr.bf16.gmra.mrb[0].mxu0 %v1691
      %v2093 = vpop.f32.mrb[0].mxu0
      %v2094 = vadd.f32 %v2029, %v2093
      %v2095 = vpop.f32.mrb[0].mxu0
      %v2096 = vpop.f32.mrb[0].mxu0
      %v2097 = vadd.f32 %v2032, %v2096
      %v2098 = vpop.f32.mrb[0].mxu0
      %2099 = vdwg.mxu0
      %2100 = vmatprep.subr.bf16.mxu0 0
      %2101 = vmatpush1.bf16.msra.mxu0 %v1918
      %2102 = vmatprep.subr.bf16.mxu0 0
      %2103 = vmatpush1.bf16.msra.mxu0 %v1919
      %2104 = vmatprep.subr.bf16.mxu0 0
      %2105 = vmatpush1.bf16.msra.mxu0 %v1920
      %2106 = vmatprep.subr.bf16.mxu0 0
      %2107 = vmatpush1.bf16.msra.mxu0 %v1921
      %2108 = vmatprep.subr.bf16.mxu0 0
      %2109 = vmatpush1.bf16.msra.mxu0 0
      %2110 = vmatprep.subr.bf16.mxu0 0
      %2111 = vmatpush1.bf16.msra.mxu0 0
      %2112 = vmatprep.subr.bf16.mxu0 0
      %2113 = vmatpush1.bf16.msra.mxu0 0
      %2114 = vmatprep.subr.bf16.mxu0 0
      %2115 = vmatpush1.bf16.msra.mxu0 0
      %2116 = vmatprep.subr.bf16.mxu0 0
      %2117 = vmatpush1.bf16.msra.mxu0 0
      %2118 = vmatprep.subr.bf16.mxu0 0
      %2119 = vmatpush1.bf16.msra.mxu0 0
      %2120 = vmatprep.subr.bf16.mxu0 0
      %2121 = vmatpush1.bf16.msra.mxu0 0
      %2122 = vmatprep.subr.bf16.mxu0 0
      %2123 = vmatpush1.bf16.msra.mxu0 0
      %2124 = vmatprep.subr.bf16.mxu0 0
      %2125 = vmatpush1.bf16.msra.mxu0 0
      %2126 = vmatprep.subr.bf16.mxu0 0
      %2127 = vmatpush1.bf16.msra.mxu0 0
      %2128 = vmatprep.subr.bf16.mxu0 0
      %2129 = vmatpush1.bf16.msra.mxu0 0
      %2130 = vmatprep.subr.bf16.mxu0 0
      %2131 = vmatpush1.bf16.msra.mxu0 0
      %2132 = vmatprep.mubr.bf16.mxu0 0
      %2133 = vmatmul.mubr.bf16.gmra.mrb[0].mxu0 %v1959
      %v2134 = vpop.f32.mrb[0].mxu0
      %v2135 = vadd.f32 %v2070, %v2134
      %v2136 = vpop.f32.mrb[0].mxu0
      %v2137 = vpop.f32.mrb[0].mxu0
      %v2138 = vadd.f32 %v2073, %v2137
      %v2139 = vpop.f32.mrb[0].mxu0
      %2140 = vmatprep.mubr.bf16.mxu0 0
      %2141 = vmatmul.mubr.bf16.gmra.mrb[0].mxu0 %v1962
      %v2142 = vpop.f32.mrb[0].mxu0
      %v2143 = vadd.f32 %v2078, %v2142
      %v2144 = vpop.f32.mrb[0].mxu0
      %v2145 = vpop.f32.mrb[0].mxu0
      %v2146 = vadd.f32 %v2081, %v2145
      %v2147 = vpop.f32.mrb[0].mxu0
      %2148 = vmatprep.mubr.bf16.mxu0 0
      %2149 = vmatmul.mubr.bf16.gmra.mrb[0].mxu0 %v1965
      %v2150 = vpop.f32.mrb[0].mxu0
      %v2151 = vadd.f32 %v2086, %v2150
      %v2152 = vpop.f32.mrb[0].mxu0
      %v2153 = vpop.f32.mrb[0].mxu0
      %v2154 = vadd.f32 %v2089, %v2153
      %v2155 = vpop.f32.mrb[0].mxu0
      %2156 = vmatprep.mubr.bf16.mxu0 0
      %2157 = vmatmul.mubr.bf16.gmra.mrb[0].mxu0 %v1968
      %v2158 = vpop.f32.mrb[0].mxu0
      %v2159 = vadd.f32 %v2094, %v2158
      %v2160 = vpop.f32.mrb[0].mxu0
      %v2161 = vpop.f32.mrb[0].mxu0
      %v2162 = vadd.f32 %v2097, %v2161
      %v2163 = vpop.f32.mrb[0].mxu0
      %2164 = vdwg.mxu0
      %v2165 = vmax.f32 %v2135, 0.0
      %v2166 = vmax.f32 %v2138, 0.0
      %v2167 = vmax.f32 %v2143, 0.0
      %v2168 = vmax.f32 %v2146, 0.0
      %v2169 = vmax.f32 %v2151, 0.0
      %v2170 = vmax.f32 %v2154, 0.0
      %v2171 = vmax.f32 %v2159, 0.0
      %v2172 = vmax.f32 %v2162, 0.0
      %v2173 = vld [vmem:[%s8] sm:$0xf]
      %v2174 = vld [vmem:[%s8 + $0x4] sm:$0xf]
      %v2175 = vpack.c.bf16 %v2166, %v2165
      %v2176 = vpack.c.bf16 %v2168, %v2167
      %v2177 = vpack.c.bf16 %v2170, %v2169
      %v2178 = vpack.c.bf16 %v2172, %v2171
      %v2179 = vld [vmem:[%s9] sm:$0xff]
      %v2180 = vld [vmem:[%s9 + $0x8] sm:$0xff]
      %2182 = vset.pattern.permute.xlu0 0
      %2183 = vperm.xlu0 %2182, %v2179
      %v2184 = vpop.permute.xlu0 %2183
      %2187 = vset.pattern.permute.xlu0 0
      %2188 = vperm.xlu0 %2187, %v2180
      %v2189 = vpop.permute.xlu0 %2188
      %v2193 = vunpack.c.l.b16 %v2173
      %v2194 = vunpack.c.l.b16 %v2174
      %v2195 = vpack.c.b16 %v2194, %v2193
      %v2197 = vsel %vm1084, %v2195, 0
      %2199 = vmatprep.subr.bf16.mxu0 0
      %2200 = vmatpush1.bf16.msra.mxu0 %v2175
      %2201 = vmatprep.subr.bf16.mxu0 0
      %2202 = vmatpush1.bf16.msra.mxu0 %v2176
      %2203 = vmatprep.subr.bf16.mxu0 0
      %2204 = vmatpush1.bf16.msra.mxu0 %v2177
      %2205 = vmatprep.subr.bf16.mxu0 0
      %2206 = vmatpush1.bf16.msra.mxu0 %v2178
      %2207 = vmatprep.subr.bf16.mxu0 0
      %2208 = vmatpush1.bf16.msra.mxu0 0
      %2209 = vmatprep.subr.bf16.mxu0 0
      %2210 = vmatpush1.bf16.msra.mxu0 0
      %2211 = vmatprep.subr.bf16.mxu0 0
      %2212 = vmatpush1.bf16.msra.mxu0 0
      %2213 = vmatprep.subr.bf16.mxu0 0
      %2214 = vmatpush1.bf16.msra.mxu0 0
      %2215 = vmatprep.subr.bf16.mxu0 0
      %2216 = vmatpush1.bf16.msra.mxu0 0
      %2217 = vmatprep.subr.bf16.mxu0 0
      %2218 = vmatpush1.bf16.msra.mxu0 0
      %2219 = vmatprep.subr.bf16.mxu0 0
      %2220 = vmatpush1.bf16.msra.mxu0 0
      %2221 = vmatprep.subr.bf16.mxu0 0
      %2222 = vmatpush1.bf16.msra.mxu0 0
      %2223 = vmatprep.subr.bf16.mxu0 0
      %2224 = vmatpush1.bf16.msra.mxu0 0
      %2225 = vmatprep.subr.bf16.mxu0 0
      %2226 = vmatpush1.bf16.msra.mxu0 0
      %2227 = vmatprep.subr.bf16.mxu0 0
      %2228 = vmatpush1.bf16.msra.mxu0 0
      %2229 = vmatprep.subr.bf16.mxu0 0
      %2230 = vmatpush1.bf16.msra.mxu0 0
      %2231 = vmatprep.mubr.bf16.mxu0 0
      %2232 = vmatmul.mubr.bf16.gmra.mrb[0].mxu0 %v2197
      %v2233 = vpop.f32.mrb[0].mxu0
      %v2234 = vadd.f32 %v2184, %v2233
      %v2235 = vpop.f32.mrb[0].mxu0
      %v2236 = vpop.f32.mrb[0].mxu0
      %v2237 = vadd.f32 %v2189, %v2236
      %v2238 = vpop.f32.mrb[0].mxu0
      %2239 = vdwg.mxu0
      %v2240 = vpack.c.bf16 %v997, %v994
      %v2242 = vsel %vm1084, %v867, 0
      %v2245 = vsel %vm1084, %v2240, 0
      %2247 = vmatprep.subr.bf16.mxu0 0
      %2248 = vmatpush1.bf16.xpose.msra.mxu0 %v2245
      %2249 = vmatprep.subr.bf16.mxu0 0
      %2250 = vmatpush1.bf16.xpose.msra.mxu0 0
      %2251 = vmatprep.subr.bf16.mxu0 0
      %2252 = vmatpush1.bf16.xpose.msra.mxu0 0
      %2253 = vmatprep.subr.bf16.mxu0 0
      %2254 = vmatpush1.bf16.xpose.msra.mxu0 0
      %2255 = vmatprep.subr.bf16.mxu0 0
      %2256 = vmatpush1.bf16.xpose.msra.mxu0 0
      %2257 = vmatprep.subr.bf16.mxu0 0
      %2258 = vmatpush1.bf16.xpose.msra.mxu0 0
      %2259 = vmatprep.subr.bf16.mxu0 0
      %2260 = vmatpush1.bf16.xpose.msra.mxu0 0
      %2261 = vmatprep.subr.bf16.mxu0 0
      %2262 = vmatpush1.bf16.xpose.msra.mxu0 0
      %2263 = vmatprep.subr.bf16.mxu0 0
      %2264 = vmatpush1.bf16.xpose.msra.mxu0 0
      %2265 = vmatprep.subr.bf16.mxu0 0
      %2266 = vmatpush1.bf16.xpose.msra.mxu0 0
      %2267 = vmatprep.subr.bf16.mxu0 0
      %2268 = vmatpush1.bf16.xpose.msra.mxu0 0
      %2269 = vmatprep.subr.bf16.mxu0 0
      %2270 = vmatpush1.bf16.xpose.msra.mxu0 0
      %2271 = vmatprep.subr.bf16.mxu0 0
      %2272 = vmatpush1.bf16.xpose.msra.mxu0 0
      %2273 = vmatprep.subr.bf16.mxu0 0
      %2274 = vmatpush1.bf16.xpose.msra.mxu0 0
      %2275 = vmatprep.subr.bf16.mxu0 0
      %2276 = vmatpush1.bf16.xpose.msra.mxu0 0
      %2277 = vmatprep.subr.bf16.mxu0 0
      %2278 = vmatpush1.bf16.xpose.msra.mxu0 0
      %2279 = vmatprep.mubr.bf16.mxu0 0
      %2280 = vmatmul.mubr.bf16.gmra.mrb[0].mxu0 %v2242
      %v2281 = vpop.f32.mrb[0].mxu0
      %v2282 = vadd.f32 0.0, %v2281
      %v2283 = vpop.f32.mrb[0].mxu0
      %v2284 = vpop.f32.mrb[0].mxu0
      %v2285 = vpop.f32.mrb[0].mxu0
      %2286 = vdwg.mxu0
      %v2287 = vmul.f32 %v2282, 0.125
      %v2288 = vld [vmem:[%s10] sm:$0xff]
      %v2289 = vadd.f32 %v2287, %v2288
      %v2290 = vpack.c.bf16 %v1005, %v1002
      %v2292 = vsel %vm1084, %v2290, 0
      %2294 = vmatprep.subr.bf16.mxu0 0
      %2295 = vmatpush1.bf16.xpose.msra.mxu0 %v2292
      %2296 = vmatprep.subr.bf16.mxu0 0
      %2297 = vmatpush1.bf16.xpose.msra.mxu0 0
      %2298 = vmatprep.subr.bf16.mxu0 0
      %2299 = vmatpush1.bf16.xpose.msra.mxu0 0
      %2300 = vmatprep.subr.bf16.mxu0 0
      %2301 = vmatpush1.bf16.xpose.msra.mxu0 0
      %2302 = vmatprep.subr.bf16.mxu0 0
      %2303 = vmatpush1.bf16.xpose.msra.mxu0 0
      %2304 = vmatprep.subr.bf16.mxu0 0
      %2305 = vmatpush1.bf16.xpose.msra.mxu0 0
      %2306 = vmatprep.subr.bf16.mxu0 0
      %2307 = vmatpush1.bf16.xpose.msra.mxu0 0
      %2308 = vmatprep.subr.bf16.mxu0 0
      %2309 = vmatpush1.bf16.xpose.msra.mxu0 0
      %2310 = vmatprep.subr.bf16.mxu0 0
      %2311 = vmatpush1.bf16.xpose.msra.mxu0 0
      %2312 = vmatprep.subr.bf16.mxu0 0
      %2313 = vmatpush1.bf16.xpose.msra.mxu0 0
      %2314 = vmatprep.subr.bf16.mxu0 0
      %2315 = vmatpush1.bf16.xpose.msra.mxu0 0
      %2316 = vmatprep.subr.bf16.mxu0 0
      %2317 = vmatpush1.bf16.xpose.msra.mxu0 0
      %2318 = vmatprep.subr.bf16.mxu0 0
      %2319 = vmatpush1.bf16.xpose.msra.mxu0 0
      %2320 = vmatprep.subr.bf16.mxu0 0
      %2321 = vmatpush1.bf16.xpose.msra.mxu0 0
      %2322 = vmatprep.subr.bf16.mxu0 0
      %2323 = vmatpush1.bf16.xpose.msra.mxu0 0
      %2324 = vmatprep.subr.bf16.mxu0 0
      %2325 = vmatpush1.bf16.xpose.msra.mxu0 0
      %2326 = vmatprep.mubr.bf16.mxu0 0
      %2327 = vmatmul.mubr.bf16.gmra.mrb[0].mxu0 %v2242
      %v2328 = vpop.f32.mrb[0].mxu0
      %v2329 = vadd.f32 0.0, %v2328
      %v2330 = vpop.f32.mrb[0].mxu0
      %v2331 = vpop.f32.mrb[0].mxu0
      %v2332 = vpop.f32.mrb[0].mxu0
      %2333 = vdwg.mxu0
      %v2334 = vmul.f32 %v2329, 0.125
      %v2335 = vld [vmem:[%s11] sm:$0xff]
      %v2336 = vadd.f32 %v2334, %v2335
      %v2337 = vpack.c.bf16 %v1013, %v1010
      %v2338 = vpack.c.bf16 %v1021, %v1018
      %v2340 = vsel %vm1084, %v2337, 0
      %v2343 = vsel %vm1084, %v2338, 0
      %2345 = vmatprep.subr.bf16.mxu0 0
      %2346 = vmatpush1.bf16.xpose.msra.mxu0 %v2242
      %2347 = vmatprep.subr.bf16.mxu0 0
      %2348 = vmatpush1.bf16.xpose.msra.mxu0 0
      %2349 = vmatprep.subr.bf16.mxu0 0
      %2350 = vmatpush1.bf16.xpose.msra.mxu0 0
      %2351 = vmatprep.subr.bf16.mxu0 0
      %2352 = vmatpush1.bf16.xpose.msra.mxu0 0
      %2353 = vmatprep.subr.bf16.mxu0 0
      %2354 = vmatpush1.bf16.xpose.msra.mxu0 0
      %2355 = vmatprep.subr.bf16.mxu0 0
      %2356 = vmatpush1.bf16.xpose.msra.mxu0 0
      %2357 = vmatprep.subr.bf16.mxu0 0
      %2358 = vmatpush1.bf16.xpose.msra.mxu0 0
      %2359 = vmatprep.subr.bf16.mxu0 0
      %2360 = vmatpush1.bf16.xpose.msra.mxu0 0
      %2361 = vmatprep.subr.bf16.mxu0 0
      %2362 = vmatpush1.bf16.xpose.msra.mxu0 0
      %2363 = vmatprep.subr.bf16.mxu0 0
      %2364 = vmatpush1.bf16.xpose.msra.mxu0 0
      %2365 = vmatprep.subr.bf16.mxu0 0
      %2366 = vmatpush1.bf16.xpose.msra.mxu0 0
      %2367 = vmatprep.subr.bf16.mxu0 0
      %2368 = vmatpush1.bf16.xpose.msra.mxu0 0
      %2369 = vmatprep.subr.bf16.mxu0 0
      %2370 = vmatpush1.bf16.xpose.msra.mxu0 0
      %2371 = vmatprep.subr.bf16.mxu0 0
      %2372 = vmatpush1.bf16.xpose.msra.mxu0 0
      %2373 = vmatprep.subr.bf16.mxu0 0
      %2374 = vmatpush1.bf16.xpose.msra.mxu0 0
      %2375 = vmatprep.subr.bf16.mxu0 0
      %2376 = vmatpush1.bf16.xpose.msra.mxu0 0
      %2377 = vmatprep.mubr.bf16.mxu0 0
      %2378 = vmatmul.mubr.bf16.gmra.mrb[0].mxu0 %v2340
      %v2379 = vpop.f32.mrb[0].mxu0
      %v2380 = vadd.f32 0.0, %v2379
      %v2381 = vpop.f32.mrb[0].mxu0
      %v2382 = vpop.f32.mrb[0].mxu0
      %v2383 = vadd.f32 0.0, %v2382
      %v2384 = vpop.f32.mrb[0].mxu0
      %2385 = vmatprep.mubr.bf16.mxu0 0
      %2386 = vmatmul.mubr.bf16.gmra.mrb[0].mxu0 %v2343
      %v2387 = vpop.f32.mrb[0].mxu0
      %v2388 = vadd.f32 0.0, %v2387
      %v2389 = vpop.f32.mrb[0].mxu0
      %v2390 = vpop.f32.mrb[0].mxu0
      %v2391 = vadd.f32 0.0, %v2390
      %v2392 = vpop.f32.mrb[0].mxu0
      %2393 = vdwg.mxu0
      %v2394 = vmul.f32 %v2380, 0.125
      %v2395 = vmul.f32 %v2383, 0.125
      %v2396 = vmul.f32 %v2388, 0.125
      %v2397 = vmul.f32 %v2391, 0.125
      %v2399 = vsel %vm1084, %v868, 0
      %2401 = vmatprep.subr.bf16.mxu0 0
      %2402 = vmatpush1.bf16.xpose.msra.mxu0 %v2245
      %2403 = vmatprep.subr.bf16.mxu0 0
      %2404 = vmatpush1.bf16.xpose.msra.mxu0 0
      %2405 = vmatprep.subr.bf16.mxu0 0
      %2406 = vmatpush1.bf16.xpose.msra.mxu0 0
      %2407 = vmatprep.subr.bf16.mxu0 0
      %2408 = vmatpush1.bf16.xpose.msra.mxu0 0
      %2409 = vmatprep.subr.bf16.mxu0 0
      %2410 = vmatpush1.bf16.xpose.msra.mxu0 0
      %2411 = vmatprep.subr.bf16.mxu0 0
      %2412 = vmatpush1.bf16.xpose.msra.mxu0 0
      %2413 = vmatprep.subr.bf16.mxu0 0
      %2414 = vmatpush1.bf16.xpose.msra.mxu0 0
      %2415 = vmatprep.subr.bf16.mxu0 0
      %2416 = vmatpush1.bf16.xpose.msra.mxu0 0
      %2417 = vmatprep.subr.bf16.mxu0 0
      %2418 = vmatpush1.bf16.xpose.msra.mxu0 0
      %2419 = vmatprep.subr.bf16.mxu0 0
      %2420 = vmatpush1.bf16.xpose.msra.mxu0 0
      %2421 = vmatprep.subr.bf16.mxu0 0
      %2422 = vmatpush1.bf16.xpose.msra.mxu0 0
      %2423 = vmatprep.subr.bf16.mxu0 0
      %2424 = vmatpush1.bf16.xpose.msra.mxu0 0
      %2425 = vmatprep.subr.bf16.mxu0 0
      %2426 = vmatpush1.bf16.xpose.msra.mxu0 0
      %2427 = vmatprep.subr.bf16.mxu0 0
      %2428 = vmatpush1.bf16.xpose.msra.mxu0 0
      %2429 = vmatprep.subr.bf16.mxu0 0
      %2430 = vmatpush1.bf16.xpose.msra.mxu0 0
      %2431 = vmatprep.subr.bf16.mxu0 0
      %2432 = vmatpush1.bf16.xpose.msra.mxu0 0
      %2433 = vmatprep.mubr.bf16.mxu0 0
      %2434 = vmatmul.mubr.bf16.gmra.mrb[0].mxu0 %v2399
      %v2435 = vpop.f32.mrb[0].mxu0
      %v2436 = vadd.f32 0.0, %v2435
      %v2437 = vpop.f32.mrb[0].mxu0
      %v2438 = vpop.f32.mrb[0].mxu0
      %v2439 = vpop.f32.mrb[0].mxu0
      %2440 = vdwg.mxu0
      %v2441 = vmul.f32 %v2436, 0.125
      %v2442 = vld [vmem:[%s12] sm:$0xff]
      %v2443 = vadd.f32 %v2441, %v2442
      %2444 = vmatprep.subr.bf16.mxu0 0
      %2445 = vmatpush1.bf16.xpose.msra.mxu0 %v2292
      %2446 = vmatprep.subr.bf16.mxu0 0
      %2447 = vmatpush1.bf16.xpose.msra.mxu0 0
      %2448 = vmatprep.subr.bf16.mxu0 0
      %2449 = vmatpush1.bf16.xpose.msra.mxu0 0
      %2450 = vmatprep.subr.bf16.mxu0 0
      %2451 = vmatpush1.bf16.xpose.msra.mxu0 0
      %2452 = vmatprep.subr.bf16.mxu0 0
      %2453 = vmatpush1.bf16.xpose.msra.mxu0 0
      %2454 = vmatprep.subr.bf16.mxu0 0
      %2455 = vmatpush1.bf16.xpose.msra.mxu0 0
      %2456 = vmatprep.subr.bf16.mxu0 0
      %2457 = vmatpush1.bf16.xpose.msra.mxu0 0
      %2458 = vmatprep.subr.bf16.mxu0 0
      %2459 = vmatpush1.bf16.xpose.msra.mxu0 0
      %2460 = vmatprep.subr.bf16.mxu0 0
      %2461 = vmatpush1.bf16.xpose.msra.mxu0 0
      %2462 = vmatprep.subr.bf16.mxu0 0
      %2463 = vmatpush1.bf16.xpose.msra.mxu0 0
      %2464 = vmatprep.subr.bf16.mxu0 0
      %2465 = vmatpush1.bf16.xpose.msra.mxu0 0
      %2466 = vmatprep.subr.bf16.mxu0 0
      %2467 = vmatpush1.bf16.xpose.msra.mxu0 0
      %2468 = vmatprep.subr.bf16.mxu0 0
      %2469 = vmatpush1.bf16.xpose.msra.mxu0 0
      %2470 = vmatprep.subr.bf16.mxu0 0
      %2471 = vmatpush1.bf16.xpose.msra.mxu0 0
      %2472 = vmatprep.subr.bf16.mxu0 0
      %2473 = vmatpush1.bf16.xpose.msra.mxu0 0
      %2474 = vmatprep.subr.bf16.mxu0 0
      %2475 = vmatpush1.bf16.xpose.msra.mxu0 0
      %2476 = vmatprep.mubr.bf16.mxu0 0
      %2477 = vmatmul.mubr.bf16.gmra.mrb[0].mxu0 %v2399
      %v2478 = vpop.f32.mrb[0].mxu0
      %v2479 = vadd.f32 0.0, %v2478
      %v2480 = vpop.f32.mrb[0].mxu0
      %v2481 = vpop.f32.mrb[0].mxu0
      %v2482 = vpop.f32.mrb[0].mxu0
      %2483 = vdwg.mxu0
      %v2484 = vmul.f32 %v2479, 0.125
      %v2485 = vld [vmem:[%s13] sm:$0xff]
      %v2486 = vadd.f32 %v2484, %v2485
      %2487 = vmatprep.subr.bf16.mxu0 0
      %2488 = vmatpush1.bf16.xpose.msra.mxu0 %v2399
      %2489 = vmatprep.subr.bf16.mxu0 0
      %2490 = vmatpush1.bf16.xpose.msra.mxu0 0
      %2491 = vmatprep.subr.bf16.mxu0 0
      %2492 = vmatpush1.bf16.xpose.msra.mxu0 0
      %2493 = vmatprep.subr.bf16.mxu0 0
      %2494 = vmatpush1.bf16.xpose.msra.mxu0 0
      %2495 = vmatprep.subr.bf16.mxu0 0
      %2496 = vmatpush1.bf16.xpose.msra.mxu0 0
      %2497 = vmatprep.subr.bf16.mxu0 0
      %2498 = vmatpush1.bf16.xpose.msra.mxu0 0
      %2499 = vmatprep.subr.bf16.mxu0 0
      %2500 = vmatpush1.bf16.xpose.msra.mxu0 0
      %2501 = vmatprep.subr.bf16.mxu0 0
      %2502 = vmatpush1.bf16.xpose.msra.mxu0 0
      %2503 = vmatprep.subr.bf16.mxu0 0
      %2504 = vmatpush1.bf16.xpose.msra.mxu0 0
      %2505 = vmatprep.subr.bf16.mxu0 0
      %2506 = vmatpush1.bf16.xpose.msra.mxu0 0
      %2507 = vmatprep.subr.bf16.mxu0 0
      %2508 = vmatpush1.bf16.xpose.msra.mxu0 0
      %2509 = vmatprep.subr.bf16.mxu0 0
      %2510 = vmatpush1.bf16.xpose.msra.mxu0 0
      %2511 = vmatprep.subr.bf16.mxu0 0
      %2512 = vmatpush1.bf16.xpose.msra.mxu0 0
      %2513 = vmatprep.subr.bf16.mxu0 0
      %2514 = vmatpush1.bf16.xpose.msra.mxu0 0
      %2515 = vmatprep.subr.bf16.mxu0 0
      %2516 = vmatpush1.bf16.xpose.msra.mxu0 0
      %2517 = vmatprep.subr.bf16.mxu0 0
      %2518 = vmatpush1.bf16.xpose.msra.mxu0 0
      %2519 = vmatprep.mubr.bf16.mxu0 0
      %2520 = vmatmul.mubr.bf16.gmra.mrb[0].mxu0 %v2340
      %v2521 = vpop.f32.mrb[0].mxu0
      %v2522 = vadd.f32 0.0, %v2521
      %v2523 = vpop.f32.mrb[0].mxu0
      %v2524 = vpop.f32.mrb[0].mxu0
      %v2525 = vadd.f32 0.0, %v2524
      %v2526 = vpop.f32.mrb[0].mxu0
      %2527 = vmatprep.mubr.bf16.mxu0 0
      %2528 = vmatmul.mubr.bf16.gmra.mrb[0].mxu0 %v2343
      %v2529 = vpop.f32.mrb[0].mxu0
      %v2530 = vadd.f32 0.0, %v2529
      %v2531 = vpop.f32.mrb[0].mxu0
      %v2532 = vpop.f32.mrb[0].mxu0
      %v2533 = vadd.f32 0.0, %v2532
      %v2534 = vpop.f32.mrb[0].mxu0
      %2535 = vdwg.mxu0
      %v2536 = vmul.f32 %v2522, 0.125
      %v2537 = vmul.f32 %v2525, 0.125
      %v2538 = vmul.f32 %v2530, 0.125
      %v2539 = vmul.f32 %v2533, 0.125
      %v2540 = vpack.c.bf16 %v2289, %v2289
      %v2541 = vpack.c.bf16 %v2336, %v2336
      %vm2542 = vcmask 64512
      %v2544 = vsel %vm2542, %v2540, 0
      %v2547 = vsel %vm2542, %v2541, 0
      %2549 = vmatprep.subr.bf16.mxu0 0
      %2550 = vmatpush1.bf16.xpose.msra.mxu0 %v2547
      %2551 = vmatprep.subr.bf16.mxu0 0
      %2552 = vmatpush1.bf16.xpose.msra.mxu0 0
      %2553 = vmatprep.subr.bf16.mxu0 0
      %2554 = vmatpush1.bf16.xpose.msra.mxu0 0
      %2555 = vmatprep.subr.bf16.mxu0 0
      %2556 = vmatpush1.bf16.xpose.msra.mxu0 0
      %2557 = vmatprep.subr.bf16.mxu0 0
      %2558 = vmatpush1.bf16.xpose.msra.mxu0 0
      %2559 = vmatprep.subr.bf16.mxu0 0
      %2560 = vmatpush1.bf16.xpose.msra.mxu0 0
      %2561 = vmatprep.subr.bf16.mxu0 0
      %2562 = vmatpush1.bf16.xpose.msra.mxu0 0
      %2563 = vmatprep.subr.bf16.mxu0 0
      %2564 = vmatpush1.bf16.xpose.msra.mxu0 0
      %2565 = vmatprep.subr.bf16.mxu0 0
      %2566 = vmatpush1.bf16.xpose.msra.mxu0 0
      %2567 = vmatprep.subr.bf16.mxu0 0
      %2568 = vmatpush1.bf16.xpose.msra.mxu0 0
      %2569 = vmatprep.subr.bf16.mxu0 0
      %2570 = vmatpush1.bf16.xpose.msra.mxu0 0
      %2571 = vmatprep.subr.bf16.mxu0 0
      %2572 = vmatpush1.bf16.xpose.msra.mxu0 0
      %2573 = vmatprep.subr.bf16.mxu0 0
      %2574 = vmatpush1.bf16.xpose.msra.mxu0 0
      %2575 = vmatprep.subr.bf16.mxu0 0
      %2576 = vmatpush1.bf16.xpose.msra.mxu0 0
      %2577 = vmatprep.subr.bf16.mxu0 0
      %2578 = vmatpush1.bf16.xpose.msra.mxu0 0
      %2579 = vmatprep.subr.bf16.mxu0 0
      %2580 = vmatpush1.bf16.xpose.msra.mxu0 0
      %2581 = vmatprep.mubr.bf16.mxu0 0
      %2582 = vmatmul.mubr.bf16.gmra.mrb[0].mxu0 %v2544
      %v2583 = vpop.f32.mrb[0].mxu0
      %v2584 = vadd.f32 0.0, %v2583
      %v2585 = vpop.f32.mrb[0].mxu0
      %v2586 = vpop.f32.mrb[0].mxu0
      %v2587 = vpop.f32.mrb[0].mxu0
      %2588 = vdwg.mxu0
      %v2589 = vmul.f32 %v2584, 0.35355338
      %v2590 = vsel %vm2542, %v2589, -inf
      %2591 = vmax.xlane.f32.xlu0 %v2590
      %v2592 = vpop.xlane.xlu0 %2591
      %v2593 = vsub.f32 %v2589, %v2592
      %v2594 = vmul.f32 %v2593, 1.442695
      %v2595 = vpow.pop %v2594
      %v2596 = vsel %vm2542, %v2595, 0.0
      %2597 = vadd.xlane.f32.xlu0 %v2596
      %v2598 = vpop.xlane.xlu0 %2597
      %v2599 = vrcp.pop %v2598
      %v2600 = vmul.f32 %v2595, %v2599
      %v2601 = vpack.c.bf16 %v2395, %v2394
      %v2602 = vpack.c.bf16 %v2600, %v2600
      %v2604 = vsel %vm2542, %v2601, 0
      %v2607 = vsel %vm2542, %v2602, 0
      %2609 = vmatprep.subr.bf16.mxu0 0
      %2610 = vmatpush1.bf16.xpose.msra.mxu0 %v2607
      %2611 = vmatprep.subr.bf16.mxu0 0
      %2612 = vmatpush1.bf16.xpose.msra.mxu0 0
      %2613 = vmatprep.subr.bf16.mxu0 0
      %2614 = vmatpush1.bf16.xpose.msra.mxu0 0
      %2615 = vmatprep.subr.bf16.mxu0 0
      %2616 = vmatpush1.bf16.xpose.msra.mxu0 0
      %2617 = vmatprep.subr.bf16.mxu0 0
      %2618 = vmatpush1.bf16.xpose.msra.mxu0 0
      %2619 = vmatprep.subr.bf16.mxu0 0
      %2620 = vmatpush1.bf16.xpose.msra.mxu0 0
      %2621 = vmatprep.subr.bf16.mxu0 0
      %2622 = vmatpush1.bf16.xpose.msra.mxu0 0
      %2623 = vmatprep.subr.bf16.mxu0 0
      %2624 = vmatpush1.bf16.xpose.msra.mxu0 0
      %2625 = vmatprep.subr.bf16.mxu0 0
      %2626 = vmatpush1.bf16.xpose.msra.mxu0 0
      %2627 = vmatprep.subr.bf16.mxu0 0
      %2628 = vmatpush1.bf16.xpose.msra.mxu0 0
      %2629 = vmatprep.subr.bf16.mxu0 0
      %2630 = vmatpush1.bf16.xpose.msra.mxu0 0
      %2631 = vmatprep.subr.bf16.mxu0 0
      %2632 = vmatpush1.bf16.xpose.msra.mxu0 0
      %2633 = vmatprep.subr.bf16.mxu0 0
      %2634 = vmatpush1.bf16.xpose.msra.mxu0 0
      %2635 = vmatprep.subr.bf16.mxu0 0
      %2636 = vmatpush1.bf16.xpose.msra.mxu0 0
      %2637 = vmatprep.subr.bf16.mxu0 0
      %2638 = vmatpush1.bf16.xpose.msra.mxu0 0
      %2639 = vmatprep.subr.bf16.mxu0 0
      %2640 = vmatpush1.bf16.xpose.msra.mxu0 0
      %2641 = vmatprep.mubr.bf16.mxu0 0
      %2642 = vmatmul.mubr.bf16.gmra.mrb[0].mxu0 %v2604
      %v2643 = vpop.f32.mrb[0].mxu0
      %v2644 = vadd.f32 0.0, %v2643
      %v2645 = vpop.f32.mrb[0].mxu0
      %v2646 = vpop.f32.mrb[0].mxu0
      %v2647 = vadd.f32 0.0, %v2646
      %v2648 = vpop.f32.mrb[0].mxu0
      %2649 = vdwg.mxu0
      %v2650 = vmax.f32 %v2644, 0.0
      %v2651 = vmax.f32 %v2647, 0.0
      %2653 = vrot.lane.b32.xlu0 %v2540, 120
      %v2654 = vpop.permute.xlu0 %2653
      %2656 = vrot.lane.b32.xlu0 %v2541, 120
      %v2657 = vpop.permute.xlu0 %2656
      %v2659 = vsel %vm2542, %v2654, 0
      %v2662 = vsel %vm2542, %v2657, 0
      %2664 = vmatprep.subr.bf16.mxu0 0
      %2665 = vmatpush1.bf16.xpose.msra.mxu0 %v2662
      %2666 = vmatprep.subr.bf16.mxu0 0
      %2667 = vmatpush1.bf16.xpose.msra.mxu0 0
      %2668 = vmatprep.subr.bf16.mxu0 0
      %2669 = vmatpush1.bf16.xpose.msra.mxu0 0
      %2670 = vmatprep.subr.bf16.mxu0 0
      %2671 = vmatpush1.bf16.xpose.msra.mxu0 0
      %2672 = vmatprep.subr.bf16.mxu0 0
      %2673 = vmatpush1.bf16.xpose.msra.mxu0 0
      %2674 = vmatprep.subr.bf16.mxu0 0
      %2675 = vmatpush1.bf16.xpose.msra.mxu0 0
      %2676 = vmatprep.subr.bf16.mxu0 0
      %2677 = vmatpush1.bf16.xpose.msra.mxu0 0
      %2678 = vmatprep.subr.bf16.mxu0 0
      %2679 = vmatpush1.bf16.xpose.msra.mxu0 0
      %2680 = vmatprep.subr.bf16.mxu0 0
      %2681 = vmatpush1.bf16.xpose.msra.mxu0 0
      %2682 = vmatprep.subr.bf16.mxu0 0
      %2683 = vmatpush1.bf16.xpose.msra.mxu0 0
      %2684 = vmatprep.subr.bf16.mxu0 0
      %2685 = vmatpush1.bf16.xpose.msra.mxu0 0
      %2686 = vmatprep.subr.bf16.mxu0 0
      %2687 = vmatpush1.bf16.xpose.msra.mxu0 0
      %2688 = vmatprep.subr.bf16.mxu0 0
      %2689 = vmatpush1.bf16.xpose.msra.mxu0 0
      %2690 = vmatprep.subr.bf16.mxu0 0
      %2691 = vmatpush1.bf16.xpose.msra.mxu0 0
      %2692 = vmatprep.subr.bf16.mxu0 0
      %2693 = vmatpush1.bf16.xpose.msra.mxu0 0
      %2694 = vmatprep.subr.bf16.mxu0 0
      %2695 = vmatpush1.bf16.xpose.msra.mxu0 0
      %2696 = vmatprep.mubr.bf16.mxu0 0
      %2697 = vmatmul.mubr.bf16.gmra.mrb[0].mxu0 %v2659
      %v2698 = vpop.f32.mrb[0].mxu0
      %v2699 = vadd.f32 0.0, %v2698
      %v2700 = vpop.f32.mrb[0].mxu0
      %v2701 = vpop.f32.mrb[0].mxu0
      %v2702 = vpop.f32.mrb[0].mxu0
      %2703 = vdwg.mxu0
      %v2704 = vmul.f32 %v2699, 0.35355338
      %v2705 = vsel %vm2542, %v2704, -inf
      %2706 = vmax.xlane.f32.xlu0 %v2705
      %v2707 = vpop.xlane.xlu0 %2706
      %v2708 = vsub.f32 %v2704, %v2707
      %v2709 = vmul.f32 %v2708, 1.442695
      %v2710 = vpow.pop %v2709
      %v2711 = vsel %vm2542, %v2710, 0.0
      %2712 = vadd.xlane.f32.xlu0 %v2711
      %v2713 = vpop.xlane.xlu0 %2712
      %v2714 = vrcp.pop %v2713
      %v2715 = vmul.f32 %v2710, %v2714
      %v2716 = vpack.c.bf16 %v2397, %v2396
      %v2717 = vpack.c.bf16 %v2715, %v2715
      %v2719 = vsel %vm2542, %v2716, 0
      %v2722 = vsel %vm2542, %v2717, 0
      %2724 = vmatprep.subr.bf16.mxu0 0
      %2725 = vmatpush1.bf16.xpose.msra.mxu0 %v2722
      %2726 = vmatprep.subr.bf16.mxu0 0
      %2727 = vmatpush1.bf16.xpose.msra.mxu0 0
      %2728 = vmatprep.subr.bf16.mxu0 0
      %2729 = vmatpush1.bf16.xpose.msra.mxu0 0
      %2730 = vmatprep.subr.bf16.mxu0 0
      %2731 = vmatpush1.bf16.xpose.msra.mxu0 0
      %2732 = vmatprep.subr.bf16.mxu0 0
      %2733 = vmatpush1.bf16.xpose.msra.mxu0 0
      %2734 = vmatprep.subr.bf16.mxu0 0
      %2735 = vmatpush1.bf16.xpose.msra.mxu0 0
      %2736 = vmatprep.subr.bf16.mxu0 0
      %2737 = vmatpush1.bf16.xpose.msra.mxu0 0
      %2738 = vmatprep.subr.bf16.mxu0 0
      %2739 = vmatpush1.bf16.xpose.msra.mxu0 0
      %2740 = vmatprep.subr.bf16.mxu0 0
      %2741 = vmatpush1.bf16.xpose.msra.mxu0 0
      %2742 = vmatprep.subr.bf16.mxu0 0
      %2743 = vmatpush1.bf16.xpose.msra.mxu0 0
      %2744 = vmatprep.subr.bf16.mxu0 0
      %2745 = vmatpush1.bf16.xpose.msra.mxu0 0
      %2746 = vmatprep.subr.bf16.mxu0 0
      %2747 = vmatpush1.bf16.xpose.msra.mxu0 0
      %2748 = vmatprep.subr.bf16.mxu0 0
      %2749 = vmatpush1.bf16.xpose.msra.mxu0 0
      %2750 = vmatprep.subr.bf16.mxu0 0
      %2751 = vmatpush1.bf16.xpose.msra.mxu0 0
      %2752 = vmatprep.subr.bf16.mxu0 0
      %2753 = vmatpush1.bf16.xpose.msra.mxu0 0
      %2754 = vmatprep.subr.bf16.mxu0 0
      %2755 = vmatpush1.bf16.xpose.msra.mxu0 0
      %2756 = vmatprep.mubr.bf16.mxu0 0
      %2757 = vmatmul.mubr.bf16.gmra.mrb[0].mxu0 %v2719
      %v2758 = vpop.f32.mrb[0].mxu0
      %v2759 = vadd.f32 0.0, %v2758
      %v2760 = vpop.f32.mrb[0].mxu0
      %v2761 = vpop.f32.mrb[0].mxu0
      %v2762 = vadd.f32 0.0, %v2761
      %v2763 = vpop.f32.mrb[0].mxu0
      %2764 = vdwg.mxu0
      %v2765 = vmax.f32 %v2759, 0.0
      %v2766 = vmax.f32 %v2762, 0.0
      %v2767 = vld [vmem:[%s14] sm:$0xf]
      %v2768 = vld [vmem:[%s14 + $0x4] sm:$0xf]
      %v2769 = vld [vmem:[%s14 + $0x8] sm:$0xf]
      %v2770 = vld [vmem:[%s14 + $0xc] sm:$0xf]
      %v2771 = vpack.c.bf16 %v2651, %v2650
      %v2772 = vpack.c.bf16 %v2766, %v2765
      %v2773 = vld [vmem:[%s15] sm:$0xff]
      %v2774 = vld [vmem:[%s15 + $0x8] sm:$0xff]
      %v2775 = vld [vmem:[%s15 + $0x10] sm:$0xff]
      %v2776 = vld [vmem:[%s15 + $0x18] sm:$0xff]
      %2778 = vset.pattern.permute.xlu0 0
      %2779 = vperm.xlu0 %2778, %v2773
      %v2780 = vpop.permute.xlu0 %2779
      %2783 = vset.pattern.permute.xlu0 0
      %2784 = vperm.xlu0 %2783, %v2774
      %v2785 = vpop.permute.xlu0 %2784
      %2788 = vset.pattern.permute.xlu0 0
      %2789 = vperm.xlu0 %2788, %v2775
      %v2790 = vpop.permute.xlu0 %2789
      %2793 = vset.pattern.permute.xlu0 0
      %2794 = vperm.xlu0 %2793, %v2776
      %v2795 = vpop.permute.xlu0 %2794
      %v2801 = vunpack.c.l.b16 %v2767
      %v2802 = vunpack.c.l.b16 %v2768
      %v2803 = vunpack.c.l.b16 %v2769
      %v2804 = vunpack.c.l.b16 %v2770
      %v2805 = vpack.c.b16 %v2802, %v2801
      %v2806 = vpack.c.b16 %v2804, %v2803
      %vm2807 = vcmask 261120
      %v2809 = vsel %vm2807, %v2805, 0
      %v2812 = vsel %vm2807, %v2806, 0
      %2814 = vmatprep.subr.bf16.mxu0 0
      %2815 = vmatpush1.bf16.msra.mxu0 %v2771
      %2816 = vmatprep.subr.bf16.mxu0 0
      %2817 = vmatpush1.bf16.msra.mxu0 %v2772
      %2818 = vmatprep.subr.bf16.mxu0 0
      %2819 = vmatpush1.bf16.msra.mxu0 0
      %2820 = vmatprep.subr.bf16.mxu0 0
      %2821 = vmatpush1.bf16.msra.mxu0 0
      %2822 = vmatprep.subr.bf16.mxu0 0
      %2823 = vmatpush1.bf16.msra.mxu0 0
      %2824 = vmatprep.subr.bf16.mxu0 0
      %2825 = vmatpush1.bf16.msra.mxu0 0
      %2826 = vmatprep.subr.bf16.mxu0 0
      %2827 = vmatpush1.bf16.msra.mxu0 0
      %2828 = vmatprep.subr.bf16.mxu0 0
      %2829 = vmatpush1.bf16.msra.mxu0 0
      %2830 = vmatprep.subr.bf16.mxu0 0
      %2831 = vmatpush1.bf16.msra.mxu0 0
      %2832 = vmatprep.subr.bf16.mxu0 0
      %2833 = vmatpush1.bf16.msra.mxu0 0
      %2834 = vmatprep.subr.bf16.mxu0 0
      %2835 = vmatpush1.bf16.msra.mxu0 0
      %2836 = vmatprep.subr.bf16.mxu0 0
      %2837 = vmatpush1.bf16.msra.mxu0 0
      %2838 = vmatprep.subr.bf16.mxu0 0
      %2839 = vmatpush1.bf16.msra.mxu0 0
      %2840 = vmatprep.subr.bf16.mxu0 0
      %2841 = vmatpush1.bf16.msra.mxu0 0
      %2842 = vmatprep.subr.bf16.mxu0 0
      %2843 = vmatpush1.bf16.msra.mxu0 0
      %2844 = vmatprep.subr.bf16.mxu0 0
      %2845 = vmatpush1.bf16.msra.mxu0 0
      %2846 = vmatprep.mubr.bf16.mxu0 0
      %2847 = vmatmul.mubr.bf16.gmra.mrb[0].mxu0 %v2809
      %v2848 = vpop.f32.mrb[0].mxu0
      %v2849 = vadd.f32 %v2780, %v2848
      %v2850 = vpop.f32.mrb[0].mxu0
      %v2851 = vpop.f32.mrb[0].mxu0
      %v2852 = vadd.f32 %v2785, %v2851
      %v2853 = vpop.f32.mrb[0].mxu0
      %2854 = vmatprep.mubr.bf16.mxu0 0
      %2855 = vmatmul.mubr.bf16.gmra.mrb[0].mxu0 %v2812
      %v2856 = vpop.f32.mrb[0].mxu0
      %v2857 = vadd.f32 %v2790, %v2856
      %v2858 = vpop.f32.mrb[0].mxu0
      %v2859 = vpop.f32.mrb[0].mxu0
      %v2860 = vadd.f32 %v2795, %v2859
      %v2861 = vpop.f32.mrb[0].mxu0
      %2862 = vdwg.mxu0
      %v2863 = vpack.c.bf16 %v2443, %v2443
      %v2864 = vpack.c.bf16 %v2486, %v2486
      %v2866 = vsel %vm2542, %v2863, 0
      %v2869 = vsel %vm2542, %v2864, 0
      %2871 = vmatprep.subr.bf16.mxu0 0
      %2872 = vmatpush1.bf16.xpose.msra.mxu0 %v2869
      %2873 = vmatprep.subr.bf16.mxu0 0
      %2874 = vmatpush1.bf16.xpose.msra.mxu0 0
      %2875 = vmatprep.subr.bf16.mxu0 0
      %2876 = vmatpush1.bf16.xpose.msra.mxu0 0
      %2877 = vmatprep.subr.bf16.mxu0 0
      %2878 = vmatpush1.bf16.xpose.msra.mxu0 0
      %2879 = vmatprep.subr.bf16.mxu0 0
      %2880 = vmatpush1.bf16.xpose.msra.mxu0 0
      %2881 = vmatprep.subr.bf16.mxu0 0
      %2882 = vmatpush1.bf16.xpose.msra.mxu0 0
      %2883 = vmatprep.subr.bf16.mxu0 0
      %2884 = vmatpush1.bf16.xpose.msra.mxu0 0
      %2885 = vmatprep.subr.bf16.mxu0 0
      %2886 = vmatpush1.bf16.xpose.msra.mxu0 0
      %2887 = vmatprep.subr.bf16.mxu0 0
      %2888 = vmatpush1.bf16.xpose.msra.mxu0 0
      %2889 = vmatprep.subr.bf16.mxu0 0
      %2890 = vmatpush1.bf16.xpose.msra.mxu0 0
      %2891 = vmatprep.subr.bf16.mxu0 0
      %2892 = vmatpush1.bf16.xpose.msra.mxu0 0
      %2893 = vmatprep.subr.bf16.mxu0 0
      %2894 = vmatpush1.bf16.xpose.msra.mxu0 0
      %2895 = vmatprep.subr.bf16.mxu0 0
      %2896 = vmatpush1.bf16.xpose.msra.mxu0 0
      %2897 = vmatprep.subr.bf16.mxu0 0
      %2898 = vmatpush1.bf16.xpose.msra.mxu0 0
      %2899 = vmatprep.subr.bf16.mxu0 0
      %2900 = vmatpush1.bf16.xpose.msra.mxu0 0
      %2901 = vmatprep.subr.bf16.mxu0 0
      %2902 = vmatpush1.bf16.xpose.msra.mxu0 0
      %2903 = vmatprep.mubr.bf16.mxu0 0
      %2904 = vmatmul.mubr.bf16.gmra.mrb[0].mxu0 %v2866
      %v2905 = vpop.f32.mrb[0].mxu0
      %v2906 = vadd.f32 0.0, %v2905
      %v2907 = vpop.f32.mrb[0].mxu0
      %v2908 = vpop.f32.mrb[0].mxu0
      %v2909 = vpop.f32.mrb[0].mxu0
      %2910 = vdwg.mxu0
      %v2911 = vmul.f32 %v2906, 0.35355338
      %v2912 = vsel %vm2542, %v2911, -inf
      %2913 = vmax.xlane.f32.xlu0 %v2912
      %v2914 = vpop.xlane.xlu0 %2913
      %v2915 = vsub.f32 %v2911, %v2914
      %v2916 = vmul.f32 %v2915, 1.442695
      %v2917 = vpow.pop %v2916
      %v2918 = vsel %vm2542, %v2917, 0.0
      %2919 = vadd.xlane.f32.xlu0 %v2918
      %v2920 = vpop.xlane.xlu0 %2919
      %v2921 = vrcp.pop %v2920
      %v2922 = vmul.f32 %v2917, %v2921
      %v2923 = vpack.c.bf16 %v2537, %v2536
      %v2924 = vpack.c.bf16 %v2922, %v2922
      %v2926 = vsel %vm2542, %v2923, 0
      %v2929 = vsel %vm2542, %v2924, 0
      %2931 = vmatprep.subr.bf16.mxu0 0
      %2932 = vmatpush1.bf16.xpose.msra.mxu0 %v2929
      %2933 = vmatprep.subr.bf16.mxu0 0
      %2934 = vmatpush1.bf16.xpose.msra.mxu0 0
      %2935 = vmatprep.subr.bf16.mxu0 0
      %2936 = vmatpush1.bf16.xpose.msra.mxu0 0
      %2937 = vmatprep.subr.bf16.mxu0 0
      %2938 = vmatpush1.bf16.xpose.msra.mxu0 0
      %2939 = vmatprep.subr.bf16.mxu0 0
      %2940 = vmatpush1.bf16.xpose.msra.mxu0 0
      %2941 = vmatprep.subr.bf16.mxu0 0
      %2942 = vmatpush1.bf16.xpose.msra.mxu0 0
      %2943 = vmatprep.subr.bf16.mxu0 0
      %2944 = vmatpush1.bf16.xpose.msra.mxu0 0
      %2945 = vmatprep.subr.bf16.mxu0 0
      %2946 = vmatpush1.bf16.xpose.msra.mxu0 0
      %2947 = vmatprep.subr.bf16.mxu0 0
      %2948 = vmatpush1.bf16.xpose.msra.mxu0 0
      %2949 = vmatprep.subr.bf16.mxu0 0
      %2950 = vmatpush1.bf16.xpose.msra.mxu0 0
      %2951 = vmatprep.subr.bf16.mxu0 0
      %2952 = vmatpush1.bf16.xpose.msra.mxu0 0
      %2953 = vmatprep.subr.bf16.mxu0 0
      %2954 = vmatpush1.bf16.xpose.msra.mxu0 0
      %2955 = vmatprep.subr.bf16.mxu0 0
      %2956 = vmatpush1.bf16.xpose.msra.mxu0 0
      %2957 = vmatprep.subr.bf16.mxu0 0
      %2958 = vmatpush1.bf16.xpose.msra.mxu0 0
      %2959 = vmatprep.subr.bf16.mxu0 0
      %2960 = vmatpush1.bf16.xpose.msra.mxu0 0
      %2961 = vmatprep.subr.bf16.mxu0 0
      %2962 = vmatpush1.bf16.xpose.msra.mxu0 0
      %2963 = vmatprep.mubr.bf16.mxu0 0
      %2964 = vmatmul.mubr.bf16.gmra.mrb[0].mxu0 %v2926
      %v2965 = vpop.f32.mrb[0].mxu0
      %v2966 = vadd.f32 0.0, %v2965
      %v2967 = vpop.f32.mrb[0].mxu0
      %v2968 = vpop.f32.mrb[0].mxu0
      %v2969 = vadd.f32 0.0, %v2968
      %v2970 = vpop.f32.mrb[0].mxu0
      %2971 = vdwg.mxu0
      %v2972 = vmax.f32 %v2966, 0.0
      %v2973 = vmax.f32 %v2969, 0.0
      %2975 = vrot.lane.b32.xlu0 %v2863, 120
      %v2976 = vpop.permute.xlu0 %2975
      %2978 = vrot.lane.b32.xlu0 %v2864, 120
      %v2979 = vpop.permute.xlu0 %2978
      %v2981 = vsel %vm2542, %v2976, 0
      %v2984 = vsel %vm2542, %v2979, 0
      %2986 = vmatprep.subr.bf16.mxu0 0
      %2987 = vmatpush1.bf16.xpose.msra.mxu0 %v2984
      %2988 = vmatprep.subr.bf16.mxu0 0
      %2989 = vmatpush1.bf16.xpose.msra.mxu0 0
      %2990 = vmatprep.subr.bf16.mxu0 0
      %2991 = vmatpush1.bf16.xpose.msra.mxu0 0
      %2992 = vmatprep.subr.bf16.mxu0 0
      %2993 = vmatpush1.bf16.xpose.msra.mxu0 0
      %2994 = vmatprep.subr.bf16.mxu0 0
      %2995 = vmatpush1.bf16.xpose.msra.mxu0 0
      %2996 = vmatprep.subr.bf16.mxu0 0
      %2997 = vmatpush1.bf16.xpose.msra.mxu0 0
      %2998 = vmatprep.subr.bf16.mxu0 0
      %2999 = vmatpush1.bf16.xpose.msra.mxu0 0
      %3000 = vmatprep.subr.bf16.mxu0 0
      %3001 = vmatpush1.bf16.xpose.msra.mxu0 0
      %3002 = vmatprep.subr.bf16.mxu0 0
      %3003 = vmatpush1.bf16.xpose.msra.mxu0 0
      %3004 = vmatprep.subr.bf16.mxu0 0
      %3005 = vmatpush1.bf16.xpose.msra.mxu0 0
      %3006 = vmatprep.subr.bf16.mxu0 0
      %3007 = vmatpush1.bf16.xpose.msra.mxu0 0
      %3008 = vmatprep.subr.bf16.mxu0 0
      %3009 = vmatpush1.bf16.xpose.msra.mxu0 0
      %3010 = vmatprep.subr.bf16.mxu0 0
      %3011 = vmatpush1.bf16.xpose.msra.mxu0 0
      %3012 = vmatprep.subr.bf16.mxu0 0
      %3013 = vmatpush1.bf16.xpose.msra.mxu0 0
      %3014 = vmatprep.subr.bf16.mxu0 0
      %3015 = vmatpush1.bf16.xpose.msra.mxu0 0
      %3016 = vmatprep.subr.bf16.mxu0 0
      %3017 = vmatpush1.bf16.xpose.msra.mxu0 0
      %3018 = vmatprep.mubr.bf16.mxu0 0
      %3019 = vmatmul.mubr.bf16.gmra.mrb[0].mxu0 %v2981
      %v3020 = vpop.f32.mrb[0].mxu0
      %v3021 = vadd.f32 0.0, %v3020
      %v3022 = vpop.f32.mrb[0].mxu0
      %v3023 = vpop.f32.mrb[0].mxu0
      %v3024 = vpop.f32.mrb[0].mxu0
      %3025 = vdwg.mxu0
      %v3026 = vmul.f32 %v3021, 0.35355338
      %v3027 = vsel %vm2542, %v3026, -inf
      %3028 = vmax.xlane.f32.xlu0 %v3027
      %v3029 = vpop.xlane.xlu0 %3028
      %v3030 = vsub.f32 %v3026, %v3029
      %v3031 = vmul.f32 %v3030, 1.442695
      %v3032 = vpow.pop %v3031
      %v3033 = vsel %vm2542, %v3032, 0.0
      %3034 = vadd.xlane.f32.xlu0 %v3033
      %v3035 = vpop.xlane.xlu0 %3034
      %v3036 = vrcp.pop %v3035
      %v3037 = vmul.f32 %v3032, %v3036
      %v3038 = vpack.c.bf16 %v2539, %v2538
      %v3039 = vpack.c.bf16 %v3037, %v3037
      %v3041 = vsel %vm2542, %v3038, 0
      %v3044 = vsel %vm2542, %v3039, 0
      %3046 = vmatprep.subr.bf16.mxu0 0
      %3047 = vmatpush1.bf16.xpose.msra.mxu0 %v3044
      %3048 = vmatprep.subr.bf16.mxu0 0
      %3049 = vmatpush1.bf16.xpose.msra.mxu0 0
      %3050 = vmatprep.subr.bf16.mxu0 0
      %3051 = vmatpush1.bf16.xpose.msra.mxu0 0
      %3052 = vmatprep.subr.bf16.mxu0 0
      %3053 = vmatpush1.bf16.xpose.msra.mxu0 0
      %3054 = vmatprep.subr.bf16.mxu0 0
      %3055 = vmatpush1.bf16.xpose.msra.mxu0 0
      %3056 = vmatprep.subr.bf16.mxu0 0
      %3057 = vmatpush1.bf16.xpose.msra.mxu0 0
      %3058 = vmatprep.subr.bf16.mxu0 0
      %3059 = vmatpush1.bf16.xpose.msra.mxu0 0
      %3060 = vmatprep.subr.bf16.mxu0 0
      %3061 = vmatpush1.bf16.xpose.msra.mxu0 0
      %3062 = vmatprep.subr.bf16.mxu0 0
      %3063 = vmatpush1.bf16.xpose.msra.mxu0 0
      %3064 = vmatprep.subr.bf16.mxu0 0
      %3065 = vmatpush1.bf16.xpose.msra.mxu0 0
      %3066 = vmatprep.subr.bf16.mxu0 0
      %3067 = vmatpush1.bf16.xpose.msra.mxu0 0
      %3068 = vmatprep.subr.bf16.mxu0 0
      %3069 = vmatpush1.bf16.xpose.msra.mxu0 0
      %3070 = vmatprep.subr.bf16.mxu0 0
      %3071 = vmatpush1.bf16.xpose.msra.mxu0 0
      %3072 = vmatprep.subr.bf16.mxu0 0
      %3073 = vmatpush1.bf16.xpose.msra.mxu0 0
      %3074 = vmatprep.subr.bf16.mxu0 0
      %3075 = vmatpush1.bf16.xpose.msra.mxu0 0
      %3076 = vmatprep.subr.bf16.mxu0 0
      %3077 = vmatpush1.bf16.xpose.msra.mxu0 0
      %3078 = vmatprep.mubr.bf16.mxu0 0
      %3079 = vmatmul.mubr.bf16.gmra.mrb[0].mxu0 %v3041
      %v3080 = vpop.f32.mrb[0].mxu0
      %v3081 = vadd.f32 0.0, %v3080
      %v3082 = vpop.f32.mrb[0].mxu0
      %v3083 = vpop.f32.mrb[0].mxu0
      %v3084 = vadd.f32 0.0, %v3083
      %v3085 = vpop.f32.mrb[0].mxu0
      %3086 = vdwg.mxu0
      %v3087 = vmax.f32 %v3081, 0.0
      %v3088 = vmax.f32 %v3084, 0.0
      %v3089 = vld [vmem:[%s16] sm:$0xf]
      %v3090 = vld [vmem:[%s16 + $0x4] sm:$0xf]
      %v3091 = vld [vmem:[%s16 + $0x8] sm:$0xf]
      %v3092 = vld [vmem:[%s16 + $0xc] sm:$0xf]
      %v3093 = vpack.c.bf16 %v2973, %v2972
      %v3094 = vpack.c.bf16 %v3088, %v3087
      %v3095 = vld [vmem:[%s17] sm:$0xff]
      %v3096 = vld [vmem:[%s17 + $0x8] sm:$0xff]
      %v3097 = vld [vmem:[%s17 + $0x10] sm:$0xff]
      %v3098 = vld [vmem:[%s17 + $0x18] sm:$0xff]
      %3100 = vset.pattern.permute.xlu0 0
      %3101 = vperm.xlu0 %3100, %v3095
      %v3102 = vpop.permute.xlu0 %3101
      %3105 = vset.pattern.permute.xlu0 0
      %3106 = vperm.xlu0 %3105, %v3096
      %v3107 = vpop.permute.xlu0 %3106
      %3110 = vset.pattern.permute.xlu0 0
      %3111 = vperm.xlu0 %3110, %v3097
      %v3112 = vpop.permute.xlu0 %3111
      %3115 = vset.pattern.permute.xlu0 0
      %3116 = vperm.xlu0 %3115, %v3098
      %v3117 = vpop.permute.xlu0 %3116
      %v3123 = vunpack.c.l.b16 %v3089
      %v3124 = vunpack.c.l.b16 %v3090
      %v3125 = vunpack.c.l.b16 %v3091
      %v3126 = vunpack.c.l.b16 %v3092
      %v3127 = vpack.c.b16 %v3124, %v3123
      %v3128 = vpack.c.b16 %v3126, %v3125
      %v3130 = vsel %vm2807, %v3127, 0
      %v3133 = vsel %vm2807, %v3128, 0
      %3135 = vmatprep.subr.bf16.mxu0 0
      %3136 = vmatpush1.bf16.msra.mxu0 %v3093
      %3137 = vmatprep.subr.bf16.mxu0 0
      %3138 = vmatpush1.bf16.msra.mxu0 %v3094
      %3139 = vmatprep.subr.bf16.mxu0 0
      %3140 = vmatpush1.bf16.msra.mxu0 0
      %3141 = vmatprep.subr.bf16.mxu0 0
      %3142 = vmatpush1.bf16.msra.mxu0 0
      %3143 = vmatprep.subr.bf16.mxu0 0
      %3144 = vmatpush1.bf16.msra.mxu0 0
      %3145 = vmatprep.subr.bf16.mxu0 0
      %3146 = vmatpush1.bf16.msra.mxu0 0
      %3147 = vmatprep.subr.bf16.mxu0 0
      %3148 = vmatpush1.bf16.msra.mxu0 0
      %3149 = vmatprep.subr.bf16.mxu0 0
      %3150 = vmatpush1.bf16.msra.mxu0 0
      %3151 = vmatprep.subr.bf16.mxu0 0
      %3152 = vmatpush1.bf16.msra.mxu0 0
      %3153 = vmatprep.subr.bf16.mxu0 0
      %3154 = vmatpush1.bf16.msra.mxu0 0
      %3155 = vmatprep.subr.bf16.mxu0 0
      %3156 = vmatpush1.bf16.msra.mxu0 0
      %3157 = vmatprep.subr.bf16.mxu0 0
      %3158 = vmatpush1.bf16.msra.mxu0 0
      %3159 = vmatprep.subr.bf16.mxu0 0
      %3160 = vmatpush1.bf16.msra.mxu0 0
      %3161 = vmatprep.subr.bf16.mxu0 0
      %3162 = vmatpush1.bf16.msra.mxu0 0
      %3163 = vmatprep.subr.bf16.mxu0 0
      %3164 = vmatpush1.bf16.msra.mxu0 0
      %3165 = vmatprep.subr.bf16.mxu0 0
      %3166 = vmatpush1.bf16.msra.mxu0 0
      %3167 = vmatprep.mubr.bf16.mxu0 0
      %3168 = vmatmul.mubr.bf16.gmra.mrb[0].mxu0 %v3130
      %v3169 = vpop.f32.mrb[0].mxu0
      %v3170 = vadd.f32 %v3102, %v3169
      %v3171 = vpop.f32.mrb[0].mxu0
      %v3172 = vpop.f32.mrb[0].mxu0
      %v3173 = vadd.f32 %v3107, %v3172
      %v3174 = vpop.f32.mrb[0].mxu0
      %3175 = vmatprep.mubr.bf16.mxu0 0
      %3176 = vmatmul.mubr.bf16.gmra.mrb[0].mxu0 %v3133
      %v3177 = vpop.f32.mrb[0].mxu0
      %v3178 = vadd.f32 %v3112, %v3177
      %v3179 = vpop.f32.mrb[0].mxu0
      %v3180 = vpop.f32.mrb[0].mxu0
      %v3181 = vadd.f32 %v3117, %v3180
      %v3182 = vpop.f32.mrb[0].mxu0
      %3183 = vdwg.mxu0
      %v3184 = vpack.c.bf16 %v2852, %v2849
      %v3185 = vpack.c.bf16 %v2860, %v2857
      %v3187 = vsel %vm2542, %v3184, 0
      %v3190 = vsel %vm2542, %v3185, 0
      %vm3192 = vcmask 1043456
      %v3193 = vsel %vm3192, %v867, 0
      %3195 = vmatprep.subr.bf16.mxu0 0
      %3196 = vmatpush1.bf16.msra.mxu0 %v3193
      %3197 = vmatprep.subr.bf16.mxu0 0
      %3198 = vmatpush1.bf16.msra.mxu0 0
      %3199 = vmatprep.subr.bf16.mxu0 0
      %3200 = vmatpush1.bf16.msra.mxu0 0
      %3201 = vmatprep.subr.bf16.mxu0 0
      %3202 = vmatpush1.bf16.msra.mxu0 0
      %3203 = vmatprep.subr.bf16.mxu0 0
      %3204 = vmatpush1.bf16.msra.mxu0 0
      %3205 = vmatprep.subr.bf16.mxu0 0
      %3206 = vmatpush1.bf16.msra.mxu0 0
      %3207 = vmatprep.subr.bf16.mxu0 0
      %3208 = vmatpush1.bf16.msra.mxu0 0
      %3209 = vmatprep.subr.bf16.mxu0 0
      %3210 = vmatpush1.bf16.msra.mxu0 0
      %3211 = vmatprep.subr.bf16.mxu0 0
      %3212 = vmatpush1.bf16.msra.mxu0 0
      %3213 = vmatprep.subr.bf16.mxu0 0
      %3214 = vmatpush1.bf16.msra.mxu0 0
      %3215 = vmatprep.subr.bf16.mxu0 0
      %3216 = vmatpush1.bf16.msra.mxu0 0
      %3217 = vmatprep.subr.bf16.mxu0 0
      %3218 = vmatpush1.bf16.msra.mxu0 0
      %3219 = vmatprep.subr.bf16.mxu0 0
      %3220 = vmatpush1.bf16.msra.mxu0 0
      %3221 = vmatprep.subr.bf16.mxu0 0
      %3222 = vmatpush1.bf16.msra.mxu0 0
      %3223 = vmatprep.subr.bf16.mxu0 0
      %3224 = vmatpush1.bf16.msra.mxu0 0
      %3225 = vmatprep.subr.bf16.mxu0 0
      %3226 = vmatpush1.bf16.msra.mxu0 0
      %3227 = vmatprep.mubr.bf16.mxu0 0
      %3228 = vmatmul.mubr.bf16.gmra.mrb[0].mxu0 %v3187
      %v3229 = vpop.f32.mrb[0].mxu0
      %v3230 = vadd.f32 0.0, %v3229
      %v3231 = vpop.f32.mrb[0].mxu0
      %v3232 = vpop.f32.mrb[0].mxu0
      %v3233 = vadd.f32 0.0, %v3232
      %v3234 = vpop.f32.mrb[0].mxu0
      %3235 = vmatprep.mubr.bf16.mxu0 0
      %3236 = vmatmul.mubr.bf16.gmra.mrb[0].mxu0 %v3190
      %v3237 = vpop.f32.mrb[0].mxu0
      %v3238 = vadd.f32 0.0, %v3237
      %v3239 = vpop.f32.mrb[0].mxu0
      %v3240 = vpop.f32.mrb[0].mxu0
      %v3241 = vadd.f32 0.0, %v3240
      %v3242 = vpop.f32.mrb[0].mxu0
      %3243 = vdwg.mxu0
      %v3244 = vadd.f32 %v1010, %v3230
      %v3245 = vadd.f32 %v1013, %v3233
      %v3246 = vadd.f32 %v1018, %v3238
      %v3247 = vadd.f32 %v1021, %v3241
      %v3248 = vpack.c.bf16 %v3173, %v3170
      %v3249 = vpack.c.bf16 %v3181, %v3178
      %v3251 = vsel %vm2542, %v3248, 0
      %v3254 = vsel %vm2542, %v3249, 0
      %v3256 = vsel %vm3192, %v868, 0
      %3258 = vmatprep.subr.bf16.mxu0 0
      %3259 = vmatpush1.bf16.msra.mxu0 %v3256
      %3260 = vmatprep.subr.bf16.mxu0 0
      %3261 = vmatpush1.bf16.msra.mxu0 0
      %3262 = vmatprep.subr.bf16.mxu0 0
      %3263 = vmatpush1.bf16.msra.mxu0 0
      %3264 = vmatprep.subr.bf16.mxu0 0
      %3265 = vmatpush1.bf16.msra.mxu0 0
      %3266 = vmatprep.subr.bf16.mxu0 0
      %3267 = vmatpush1.bf16.msra.mxu0 0
      %3268 = vmatprep.subr.bf16.mxu0 0
      %3269 = vmatpush1.bf16.msra.mxu0 0
      %3270 = vmatprep.subr.bf16.mxu0 0
      %3271 = vmatpush1.bf16.msra.mxu0 0
      %3272 = vmatprep.subr.bf16.mxu0 0
      %3273 = vmatpush1.bf16.msra.mxu0 0
      %3274 = vmatprep.subr.bf16.mxu0 0
      %3275 = vmatpush1.bf16.msra.mxu0 0
      %3276 = vmatprep.subr.bf16.mxu0 0
      %3277 = vmatpush1.bf16.msra.mxu0 0
      %3278 = vmatprep.subr.bf16.mxu0 0
      %3279 = vmatpush1.bf16.msra.mxu0 0
      %3280 = vmatprep.subr.bf16.mxu0 0
      %3281 = vmatpush1.bf16.msra.mxu0 0
      %3282 = vmatprep.subr.bf16.mxu0 0
      %3283 = vmatpush1.bf16.msra.mxu0 0
      %3284 = vmatprep.subr.bf16.mxu0 0
      %3285 = vmatpush1.bf16.msra.mxu0 0
      %3286 = vmatprep.subr.bf16.mxu0 0
      %3287 = vmatpush1.bf16.msra.mxu0 0
      %3288 = vmatprep.subr.bf16.mxu0 0
      %3289 = vmatpush1.bf16.msra.mxu0 0
      %3290 = vmatprep.mubr.bf16.mxu0 0
      %3291 = vmatmul.mubr.bf16.gmra.mrb[0].mxu0 %v3251
      %v3292 = vpop.f32.mrb[0].mxu0
      %v3293 = vadd.f32 0.0, %v3292
      %v3294 = vpop.f32.mrb[0].mxu0
      %v3295 = vpop.f32.mrb[0].mxu0
      %v3296 = vadd.f32 0.0, %v3295
      %v3297 = vpop.f32.mrb[0].mxu0
      %3298 = vmatprep.mubr.bf16.mxu0 0
      %3299 = vmatmul.mubr.bf16.gmra.mrb[0].mxu0 %v3254
      %v3300 = vpop.f32.mrb[0].mxu0
      %v3301 = vadd.f32 0.0, %v3300
      %v3302 = vpop.f32.mrb[0].mxu0
      %v3303 = vpop.f32.mrb[0].mxu0
      %v3304 = vadd.f32 0.0, %v3303
      %v3305 = vpop.f32.mrb[0].mxu0
      %3306 = vdwg.mxu0
      %v3307 = vadd.f32 %v3244, %v3293
      %v3308 = vadd.f32 %v3245, %v3296
      %v3309 = vadd.f32 %v3246, %v3301
      %v3310 = vadd.f32 %v3247, %v3304
      %v3311 = vld [vmem:[%s18] sm:$0xf]
      %v3312 = vld [vmem:[%s18 + $0x4] sm:$0xf]
      %v3313 = vmax.f32 %v3307, 0.0
      %v3314 = vmax.f32 %v3308, 0.0
      %v3315 = vmax.f32 %v3309, 0.0
      %v3316 = vmax.f32 %v3310, 0.0
      %v3317 = vpack.c.bf16 %v3314, %v3313
      %v3318 = vpack.c.bf16 %v3316, %v3315
      %v3319 = vld [vmem:[%s19] sm:$0xff]
      %v3320 = vld [vmem:[%s19 + $0x8] sm:$0xff]
      %3322 = vset.pattern.permute.xlu0 0
      %3323 = vperm.xlu0 %3322, %v3319
      %v3324 = vpop.permute.xlu0 %3323
      %3327 = vset.pattern.permute.xlu0 0
      %3328 = vperm.xlu0 %3327, %v3320
      %v3329 = vpop.permute.xlu0 %3328
      %v3333 = vunpack.c.l.b16 %v3311
      %v3334 = vunpack.c.l.b16 %v3312
      %v3335 = vpack.c.b16 %v3334, %v3333
      %v3337 = vsel %vm2807, %v3335, 0
      %3339 = vmatprep.subr.bf16.mxu0 0
      %3340 = vmatpush1.bf16.msra.mxu0 %v3317
      %3341 = vmatprep.subr.bf16.mxu0 0
      %3342 = vmatpush1.bf16.msra.mxu0 %v3318
      %3343 = vmatprep.subr.bf16.mxu0 0
      %3344 = vmatpush1.bf16.msra.mxu0 0
      %3345 = vmatprep.subr.bf16.mxu0 0
      %3346 = vmatpush1.bf16.msra.mxu0 0
      %3347 = vmatprep.subr.bf16.mxu0 0
      %3348 = vmatpush1.bf16.msra.mxu0 0
      %3349 = vmatprep.subr.bf16.mxu0 0
      %3350 = vmatpush1.bf16.msra.mxu0 0
      %3351 = vmatprep.subr.bf16.mxu0 0
      %3352 = vmatpush1.bf16.msra.mxu0 0
      %3353 = vmatprep.subr.bf16.mxu0 0
      %3354 = vmatpush1.bf16.msra.mxu0 0
      %3355 = vmatprep.subr.bf16.mxu0 0
      %3356 = vmatpush1.bf16.msra.mxu0 0
      %3357 = vmatprep.subr.bf16.mxu0 0
      %3358 = vmatpush1.bf16.msra.mxu0 0
      %3359 = vmatprep.subr.bf16.mxu0 0
      %3360 = vmatpush1.bf16.msra.mxu0 0
      %3361 = vmatprep.subr.bf16.mxu0 0
      %3362 = vmatpush1.bf16.msra.mxu0 0
      %3363 = vmatprep.subr.bf16.mxu0 0
      %3364 = vmatpush1.bf16.msra.mxu0 0
      %3365 = vmatprep.subr.bf16.mxu0 0
      %3366 = vmatpush1.bf16.msra.mxu0 0
      %3367 = vmatprep.subr.bf16.mxu0 0
      %3368 = vmatpush1.bf16.msra.mxu0 0
      %3369 = vmatprep.subr.bf16.mxu0 0
      %3370 = vmatpush1.bf16.msra.mxu0 0
      %3371 = vmatprep.mubr.bf16.mxu0 0
      %3372 = vmatmul.mubr.bf16.gmra.mrb[0].mxu0 %v3337
      %v3373 = vpop.f32.mrb[0].mxu0
      %v3374 = vadd.f32 %v3324, %v3373
      %v3375 = vpop.f32.mrb[0].mxu0
      %v3376 = vpop.f32.mrb[0].mxu0
      %v3377 = vadd.f32 %v3329, %v3376
      %v3378 = vpop.f32.mrb[0].mxu0
      %3379 = vdwg.mxu0
      %v3380 = vadd.f32 %v3374, 3.0
      %v3381 = vadd.f32 %v3377, 3.0
      %v3382 = vmax.f32 %v3380, 0.0
      %v3383 = vmax.f32 %v3381, 0.0
      %v3384 = vmin.f32 %v3382, 6.0
      %v3385 = vmin.f32 %v3383, 6.0
      %v3386 = vmul.f32 %v3384, 0.16666667
      %v3387 = vmul.f32 %v3385, 0.16666667
      %v3388 = vmul.f32 %v3386, %v2234
      %v3389 = vmul.f32 %v3387, %v2237
      %v3390 = vadd.f32 %v793, %v3388
      %v3391 = vadd.f32 %v794, %v3389
      %v3392 = vld [vmem:[%s20] sm:$0xf]
      %v3393 = vld [vmem:[%s20 + $0x4] sm:$0xf]
      %v3394 = vld [vmem:[%s20 + $0x8] sm:$0xf]
      %v3395 = vld [vmem:[%s20 + $0xc] sm:$0xf]
      %v3396 = vpack.c.bf16 %v3391, %v3390
      %v3397 = vld [vmem:[%s21] sm:$0xff]
      %v3398 = vld [vmem:[%s21 + $0x8] sm:$0xff]
      %v3399 = vld [vmem:[%s21 + $0x10] sm:$0xff]
      %v3400 = vld [vmem:[%s21 + $0x18] sm:$0xff]
      %3402 = vset.pattern.permute.xlu0 0
      %3403 = vperm.xlu0 %3402, %v3397
      %v3404 = vpop.permute.xlu0 %3403
      %3407 = vset.pattern.permute.xlu0 0
      %3408 = vperm.xlu0 %3407, %v3398
      %v3409 = vpop.permute.xlu0 %3408
      %3412 = vset.pattern.permute.xlu0 0
      %3413 = vperm.xlu0 %3412, %v3399
      %v3414 = vpop.permute.xlu0 %3413
      %3417 = vset.pattern.permute.xlu0 0
      %3418 = vperm.xlu0 %3417, %v3400
      %v3419 = vpop.permute.xlu0 %3418
      %v3425 = vunpack.c.l.b16 %v3392
      %v3426 = vunpack.c.l.b16 %v3393
      %v3427 = vunpack.c.l.b16 %v3394
      %v3428 = vunpack.c.l.b16 %v3395
      %v3429 = vpack.c.b16 %v3426, %v3425
      %v3430 = vpack.c.b16 %v3428, %v3427
      %v3432 = vsel %vm946, %v3429, 0
      %v3435 = vsel %vm946, %v3430, 0
      %3437 = vmatprep.subr.bf16.mxu0 0
      %3438 = vmatpush1.bf16.msra.mxu0 %v3396
      %3439 = vmatprep.subr.bf16.mxu0 0
      %3440 = vmatpush1.bf16.msra.mxu0 0
      %3441 = vmatprep.subr.bf16.mxu0 0
      %3442 = vmatpush1.bf16.msra.mxu0 0
      %3443 = vmatprep.subr.bf16.mxu0 0
      %3444 = vmatpush1.bf16.msra.mxu0 0
      %3445 = vmatprep.subr.bf16.mxu0 0
      %3446 = vmatpush1.bf16.msra.mxu0 0
      %3447 = vmatprep.subr.bf16.mxu0 0
      %3448 = vmatpush1.bf16.msra.mxu0 0
      %3449 = vmatprep.subr.bf16.mxu0 0
      %3450 = vmatpush1.bf16.msra.mxu0 0
      %3451 = vmatprep.subr.bf16.mxu0 0
      %3452 = vmatpush1.bf16.msra.mxu0 0
      %3453 = vmatprep.subr.bf16.mxu0 0
      %3454 = vmatpush1.bf16.msra.mxu0 0
      %3455 = vmatprep.subr.bf16.mxu0 0
      %3456 = vmatpush1.bf16.msra.mxu0 0
      %3457 = vmatprep.subr.bf16.mxu0 0
      %3458 = vmatpush1.bf16.msra.mxu0 0
      %3459 = vmatprep.subr.bf16.mxu0 0
      %3460 = vmatpush1.bf16.msra.mxu0 0
      %3461 = vmatprep.subr.bf16.mxu0 0
      %3462 = vmatpush1.bf16.msra.mxu0 0
      %3463 = vmatprep.subr.bf16.mxu0 0
      %3464 = vmatpush1.bf16.msra.mxu0 0
      %3465 = vmatprep.subr.bf16.mxu0 0
      %3466 = vmatpush1.bf16.msra.mxu0 0
      %3467 = vmatprep.subr.bf16.mxu0 0
      %3468 = vmatpush1.bf16.msra.mxu0 0
      %3469 = vmatprep.mubr.bf16.mxu0 0
      %3470 = vmatmul.mubr.bf16.gmra.mrb[0].mxu0 %v3432
      %v3471 = vpop.f32.mrb[0].mxu0
      %v3472 = vadd.f32 %v3404, %v3471
      %v3473 = vpop.f32.mrb[0].mxu0
      %v3474 = vpop.f32.mrb[0].mxu0
      %v3475 = vadd.f32 %v3409, %v3474
      %v3476 = vpop.f32.mrb[0].mxu0
      %3477 = vmatprep.mubr.bf16.mxu0 0
      %3478 = vmatmul.mubr.bf16.gmra.mrb[0].mxu0 %v3435
      %v3479 = vpop.f32.mrb[0].mxu0
      %v3480 = vadd.f32 %v3414, %v3479
      %v3481 = vpop.f32.mrb[0].mxu0
      %v3482 = vpop.f32.mrb[0].mxu0
      %v3483 = vadd.f32 %v3419, %v3482
      %v3484 = vpop.f32.mrb[0].mxu0
      %3485 = vdwg.mxu0
      %v3486 = vld [vmem:[%s22] sm:$0xff]
      %v3487 = vld [vmem:[%s22 + $0x8] sm:$0xff]
      %v3488 = vld [vmem:[%s22 + $0x10] sm:$0xff]
      %v3489 = vld [vmem:[%s22 + $0x18] sm:$0xff]
      %3491 = vset.pattern.permute.xlu0 0
      %3492 = vperm.xlu0 %3491, %v3486
      %v3493 = vpop.permute.xlu0 %3492
      %3496 = vset.pattern.permute.xlu0 0
      %3497 = vperm.xlu0 %3496, %v3487
      %v3498 = vpop.permute.xlu0 %3497
      %3501 = vset.pattern.permute.xlu0 0
      %3502 = vperm.xlu0 %3501, %v3488
      %v3503 = vpop.permute.xlu0 %3502
      %3506 = vset.pattern.permute.xlu0 0
      %3507 = vperm.xlu0 %3506, %v3489
      %v3508 = vpop.permute.xlu0 %3507
      %v3510 = vmul.f32 %v3472, %v3493
      %v3511 = vmul.f32 %v3475, %v3498
      %v3512 = vmul.f32 %v3480, %v3503
      %v3513 = vmul.f32 %v3483, %v3508
      %v3514 = vpack.c.bf16 %v3511, %v3510
      %v3515 = vpack.c.bf16 %v3513, %v3512
      %3516 = vst.msk [vmem:[#allocation3] sm:$0xff] %vm1084, %v3514
      %3517 = vst.msk [vmem:[#allocation3 + $0x28] sm:$0xff] %vm1084, %v3515
      %s3518 = scalar_lea.vmem %s22, 32
      %v3519 = vld [vmem:[%s3518] sm:$0xff]
      %v3520 = vld [vmem:[%s3518 + $0x8] sm:$0xff]
      %v3521 = vld [vmem:[%s3518 + $0x10] sm:$0xff]
      %v3522 = vld [vmem:[%s3518 + $0x18] sm:$0xff]
      %3524 = vset.pattern.permute.xlu0 0
      %3525 = vperm.xlu0 %3524, %v3519
      %v3526 = vpop.permute.xlu0 %3525
      %3529 = vset.pattern.permute.xlu0 0
      %3530 = vperm.xlu0 %3529, %v3520
      %v3531 = vpop.permute.xlu0 %3530
      %3534 = vset.pattern.permute.xlu0 0
      %3535 = vperm.xlu0 %3534, %v3521
      %v3536 = vpop.permute.xlu0 %3535
      %3539 = vset.pattern.permute.xlu0 0
      %3540 = vperm.xlu0 %3539, %v3522
      %v3541 = vpop.permute.xlu0 %3540
      %v3543 = vmul.f32 %v3472, %v3526
      %v3544 = vmul.f32 %v3475, %v3531
      %v3545 = vmul.f32 %v3480, %v3536
      %v3546 = vmul.f32 %v3483, %v3541
      %v3547 = vpack.c.bf16 %v3544, %v3543
      %v3548 = vpack.c.bf16 %v3546, %v3545
      %3551 = vrot.lane.b32.xlu0 %v3547, 64
      %v3552 = vpop.permute.xlu0 %3551
      %3553 = vrot.lane.b32.xlu0 %v3548, 64
      %v3554 = vpop.permute.xlu0 %3553
      %3557 = vst.msk [vmem:[#allocation3] sm:$0xff] %vm1166, %v3552
      %3558 = vst.msk [vmem:[#allocation3 + $0x28] sm:$0xff] %vm1166, %v3554
      %s3559 = scalar_lea.vmem %s22, 64
      %v3560 = vld [vmem:[%s3559] sm:$0xff]
      %v3561 = vld [vmem:[%s3559 + $0x8] sm:$0xff]
      %v3562 = vld [vmem:[%s3559 + $0x10] sm:$0xff]
      %v3563 = vld [vmem:[%s3559 + $0x18] sm:$0xff]
      %3565 = vset.pattern.permute.xlu0 0
      %3566 = vperm.xlu0 %3565, %v3560
      %v3567 = vpop.permute.xlu0 %3566
      %3570 = vset.pattern.permute.xlu0 0
      %3571 = vperm.xlu0 %3570, %v3561
      %v3572 = vpop.permute.xlu0 %3571
      %3575 = vset.pattern.permute.xlu0 0
      %3576 = vperm.xlu0 %3575, %v3562
      %v3577 = vpop.permute.xlu0 %3576
      %3580 = vset.pattern.permute.xlu0 0
      %3581 = vperm.xlu0 %3580, %v3563
      %v3582 = vpop.permute.xlu0 %3581
      %v3584 = vmul.f32 %v3472, %v3567
      %v3585 = vmul.f32 %v3475, %v3572
      %v3586 = vmul.f32 %v3480, %v3577
      %v3587 = vmul.f32 %v3483, %v3582
      %v3588 = vpack.c.bf16 %v3585, %v3584
      %v3589 = vpack.c.bf16 %v3587, %v3586
      %3590 = vst.msk [vmem:[#allocation3 + $0x8] sm:$0xff] %vm1084, %v3588
      %3591 = vst.msk [vmem:[#allocation3 + $0x30] sm:$0xff] %vm1084, %v3589
      %s3592 = scalar_lea.vmem %s22, 96
      %v3593 = vld [vmem:[%s3592] sm:$0xff]
      %v3594 = vld [vmem:[%s3592 + $0x8] sm:$0xff]
      %v3595 = vld [vmem:[%s3592 + $0x10] sm:$0xff]
      %v3596 = vld [vmem:[%s3592 + $0x18] sm:$0xff]
      %3598 = vset.pattern.permute.xlu0 0
      %3599 = vperm.xlu0 %3598, %v3593
      %v3600 = vpop.permute.xlu0 %3599
      %3603 = vset.pattern.permute.xlu0 0
      %3604 = vperm.xlu0 %3603, %v3594
      %v3605 = vpop.permute.xlu0 %3604
      %3608 = vset.pattern.permute.xlu0 0
      %3609 = vperm.xlu0 %3608, %v3595
      %v3610 = vpop.permute.xlu0 %3609
      %3613 = vset.pattern.permute.xlu0 0
      %3614 = vperm.xlu0 %3613, %v3596
      %v3615 = vpop.permute.xlu0 %3614
      %v3617 = vmul.f32 %v3472, %v3600
      %v3618 = vmul.f32 %v3475, %v3605
      %v3619 = vmul.f32 %v3480, %v3610
      %v3620 = vmul.f32 %v3483, %v3615
      %v3621 = vpack.c.bf16 %v3618, %v3617
      %v3622 = vpack.c.bf16 %v3620, %v3619
      %3625 = vrot.lane.b32.xlu0 %v3621, 64
      %v3626 = vpop.permute.xlu0 %3625
      %3627 = vrot.lane.b32.xlu0 %v3622, 64
      %v3628 = vpop.permute.xlu0 %3627
      %3631 = vst.msk [vmem:[#allocation3 + $0x8] sm:$0xff] %vm1166, %v3626
      %3632 = vst.msk [vmem:[#allocation3 + $0x30] sm:$0xff] %vm1166, %v3628
      %s3633 = scalar_lea.vmem %s22, 128
      %v3634 = vld [vmem:[%s3633] sm:$0xff]
      %v3635 = vld [vmem:[%s3633 + $0x8] sm:$0xff]
      %v3636 = vld [vmem:[%s3633 + $0x10] sm:$0xff]
      %v3637 = vld [vmem:[%s3633 + $0x18] sm:$0xff]
      %3639 = vset.pattern.permute.xlu0 0
      %3640 = vperm.xlu0 %3639, %v3634
      %v3641 = vpop.permute.xlu0 %3640
      %3644 = vset.pattern.permute.xlu0 0
      %3645 = vperm.xlu0 %3644, %v3635
      %v3646 = vpop.permute.xlu0 %3645
      %3649 = vset.pattern.permute.xlu0 0
      %3650 = vperm.xlu0 %3649, %v3636
      %v3651 = vpop.permute.xlu0 %3650
      %3654 = vset.pattern.permute.xlu0 0
      %3655 = vperm.xlu0 %3654, %v3637
      %v3656 = vpop.permute.xlu0 %3655
      %v3658 = vmul.f32 %v3472, %v3641
      %v3659 = vmul.f32 %v3475, %v3646
      %v3660 = vmul.f32 %v3480, %v3651
      %v3661 = vmul.f32 %v3483, %v3656
      %v3662 = vpack.c.bf16 %v3659, %v3658
      %v3663 = vpack.c.bf16 %v3661, %v3660
      %3664 = vst.msk [vmem:[#allocation3 + $0x10] sm:$0xff] %vm1084, %v3662
      %3665 = vst.msk [vmem:[#allocation3 + $0x38] sm:$0xff] %vm1084, %v3663
      %s3666 = scalar_lea.vmem %s22, 160
      %v3667 = vld [vmem:[%s3666] sm:$0xff]
      %v3668 = vld [vmem:[%s3666 + $0x8] sm:$0xff]
      %v3669 = vld [vmem:[%s3666 + $0x10] sm:$0xff]
      %v3670 = vld [vmem:[%s3666 + $0x18] sm:$0xff]
      %3672 = vset.pattern.permute.xlu0 0
      %3673 = vperm.xlu0 %3672, %v3667
      %v3674 = vpop.permute.xlu0 %3673
      %3677 = vset.pattern.permute.xlu0 0
      %3678 = vperm.xlu0 %3677, %v3668
      %v3679 = vpop.permute.xlu0 %3678
      %3682 = vset.pattern.permute.xlu0 0
      %3683 = vperm.xlu0 %3682, %v3669
      %v3684 = vpop.permute.xlu0 %3683
      %3687 = vset.pattern.permute.xlu0 0
      %3688 = vperm.xlu0 %3687, %v3670
      %v3689 = vpop.permute.xlu0 %3688
      %v3691 = vmul.f32 %v3472, %v3674
      %v3692 = vmul.f32 %v3475, %v3679
      %v3693 = vmul.f32 %v3480, %v3684
      %v3694 = vmul.f32 %v3483, %v3689
      %v3695 = vpack.c.bf16 %v3692, %v3691
      %v3696 = vpack.c.bf16 %v3694, %v3693
      %3699 = vrot.lane.b32.xlu0 %v3695, 64
      %v3700 = vpop.permute.xlu0 %3699
      %3701 = vrot.lane.b32.xlu0 %v3696, 64
      %v3702 = vpop.permute.xlu0 %3701
      %3705 = vst.msk [vmem:[#allocation3 + $0x10] sm:$0xff] %vm1166, %v3700
      %3706 = vst.msk [vmem:[#allocation3 + $0x38] sm:$0xff] %vm1166, %v3702
      %s3707 = scalar_lea.vmem %s22, 192
      %v3708 = vld [vmem:[%s3707] sm:$0xff]
      %v3709 = vld [vmem:[%s3707 + $0x8] sm:$0xff]
      %v3710 = vld [vmem:[%s3707 + $0x10] sm:$0xff]
      %v3711 = vld [vmem:[%s3707 + $0x18] sm:$0xff]
      %3713 = vset.pattern.permute.xlu0 0
      %3714 = vperm.xlu0 %3713, %v3708
      %v3715 = vpop.permute.xlu0 %3714
      %3718 = vset.pattern.permute.xlu0 0
      %3719 = vperm.xlu0 %3718, %v3709
      %v3720 = vpop.permute.xlu0 %3719
      %3723 = vset.pattern.permute.xlu0 0
      %3724 = vperm.xlu0 %3723, %v3710
      %v3725 = vpop.permute.xlu0 %3724
      %3728 = vset.pattern.permute.xlu0 0
      %3729 = vperm.xlu0 %3728, %v3711
      %v3730 = vpop.permute.xlu0 %3729
      %v3732 = vmul.f32 %v3472, %v3715
      %v3733 = vmul.f32 %v3475, %v3720
      %v3734 = vmul.f32 %v3480, %v3725
      %v3735 = vmul.f32 %v3483, %v3730
      %v3736 = vpack.c.bf16 %v3733, %v3732
      %v3737 = vpack.c.bf16 %v3735, %v3734
      %3738 = vst.msk [vmem:[#allocation3 + $0x18] sm:$0xff] %vm1084, %v3736
      %3739 = vst.msk [vmem:[#allocation3 + $0x40] sm:$0xff] %vm1084, %v3737
      %s3740 = scalar_lea.vmem %s22, 224
      %v3741 = vld [vmem:[%s3740] sm:$0xff]
      %v3742 = vld [vmem:[%s3740 + $0x8] sm:$0xff]
      %v3743 = vld [vmem:[%s3740 + $0x10] sm:$0xff]
      %v3744 = vld [vmem:[%s3740 + $0x18] sm:$0xff]
      %3746 = vset.pattern.permute.xlu0 0
      %3747 = vperm.xlu0 %3746, %v3741
      %v3748 = vpop.permute.xlu0 %3747
      %3751 = vset.pattern.permute.xlu0 0
      %3752 = vperm.xlu0 %3751, %v3742
      %v3753 = vpop.permute.xlu0 %3752
      %3756 = vset.pattern.permute.xlu0 0
      %3757 = vperm.xlu0 %3756, %v3743
      %v3758 = vpop.permute.xlu0 %3757
      %3761 = vset.pattern.permute.xlu0 0
      %3762 = vperm.xlu0 %3761, %v3744
      %v3763 = vpop.permute.xlu0 %3762
      %v3765 = vmul.f32 %v3472, %v3748
      %v3766 = vmul.f32 %v3475, %v3753
      %v3767 = vmul.f32 %v3480, %v3758
      %v3768 = vmul.f32 %v3483, %v3763
      %v3769 = vpack.c.bf16 %v3766, %v3765
      %v3770 = vpack.c.bf16 %v3768, %v3767
      %3773 = vrot.lane.b32.xlu0 %v3769, 64
      %v3774 = vpop.permute.xlu0 %3773
      %3775 = vrot.lane.b32.xlu0 %v3770, 64
      %v3776 = vpop.permute.xlu0 %3775
      %3779 = vst.msk [vmem:[#allocation3 + $0x18] sm:$0xff] %vm1166, %v3774
      %3780 = vst.msk [vmem:[#allocation3 + $0x40] sm:$0xff] %vm1166, %v3776
      %s3781 = scalar_lea.vmem %s22, 256
      %v3782 = vld [vmem:[%s3781] sm:$0xff]
      %v3783 = vld [vmem:[%s3781 + $0x8] sm:$0xff]
      %v3784 = vld [vmem:[%s3781 + $0x10] sm:$0xff]
      %v3785 = vld [vmem:[%s3781 + $0x18] sm:$0xff]
      %3787 = vset.pattern.permute.xlu0 0
      %3788 = vperm.xlu0 %3787, %v3782
      %v3789 = vpop.permute.xlu0 %3788
      %3792 = vset.pattern.permute.xlu0 0
      %3793 = vperm.xlu0 %3792, %v3783
      %v3794 = vpop.permute.xlu0 %3793
      %3797 = vset.pattern.permute.xlu0 0
      %3798 = vperm.xlu0 %3797, %v3784
      %v3799 = vpop.permute.xlu0 %3798
      %3802 = vset.pattern.permute.xlu0 0
      %3803 = vperm.xlu0 %3802, %v3785
      %v3804 = vpop.permute.xlu0 %3803
      %v3806 = vmul.f32 %v3472, %v3789
      %v3807 = vmul.f32 %v3475, %v3794
      %v3808 = vmul.f32 %v3480, %v3799
      %v3809 = vmul.f32 %v3483, %v3804
      %v3810 = vpack.c.bf16 %v3807, %v3806
      %v3811 = vpack.c.bf16 %v3809, %v3808
      %3812 = vst.msk [vmem:[#allocation3 + $0x20] sm:$0xff] %vm1084, %v3810
      %3813 = vst.msk [vmem:[#allocation3 + $0x48] sm:$0xff] %vm1084, %v3811
      %v3814 = vld [vmem:[#allocation3] sm:$0xff]
      %v3815 = vld [vmem:[#allocation3 + $0x8] sm:$0xff]
      %v3816 = vld [vmem:[#allocation3 + $0x10] sm:$0xff]
      %v3817 = vld [vmem:[#allocation3 + $0x18] sm:$0xff]
      %v3818 = vld [vmem:[#allocation3 + $0x20] sm:$0xff]
      %v3819 = vld [vmem:[#allocation3 + $0x28] sm:$0xff]
      %v3820 = vld [vmem:[#allocation3 + $0x30] sm:$0xff]
      %v3821 = vld [vmem:[#allocation3 + $0x38] sm:$0xff]
      %v3822 = vld [vmem:[#allocation3 + $0x40] sm:$0xff]
      %v3823 = vld [vmem:[#allocation3 + $0x48] sm:$0xff]
      %v3824 = vld [vmem:[%s23] sm:$0xff]
      %v3825 = vld [vmem:[%s23 + $0x8] sm:$0xff]
      %v3826 = vld [vmem:[%s23 + $0x10] sm:$0xff]
      %v3827 = vld [vmem:[%s23 + $0x18] sm:$0xff]
      %3829 = vset.pattern.permute.xlu0 0
      %3830 = vperm.xlu0 %3829, %v3824
      %v3831 = vpop.permute.xlu0 %3830
      %3834 = vset.pattern.permute.xlu0 0
      %3835 = vperm.xlu0 %3834, %v3825
      %v3836 = vpop.permute.xlu0 %3835
      %3839 = vset.pattern.permute.xlu0 0
      %3840 = vperm.xlu0 %3839, %v3826
      %v3841 = vpop.permute.xlu0 %3840
      %3844 = vset.pattern.permute.xlu0 0
      %3845 = vperm.xlu0 %3844, %v3827
      %v3846 = vpop.permute.xlu0 %3845
      %v3849 = vsel %vm1084, %v3818, 0
      %v3852 = vsel %vm1084, %v3823, 0
      %3854 = vmatprep.subr.bf16.mxu0 0
      %3855 = vmatpush1.bf16.msra.mxu0 %v1886
      %3856 = vmatprep.subr.bf16.mxu0 0
      %3857 = vmatpush1.bf16.msra.mxu0 %v1887
      %3858 = vmatprep.subr.bf16.mxu0 0
      %3859 = vmatpush1.bf16.msra.mxu0 %v1888
      %3860 = vmatprep.subr.bf16.mxu0 0
      %3861 = vmatpush1.bf16.msra.mxu0 %v1889
      %3862 = vmatprep.subr.bf16.mxu0 0
      %3863 = vmatpush1.bf16.msra.mxu0 %v1890
      %3864 = vmatprep.subr.bf16.mxu0 0
      %3865 = vmatpush1.bf16.msra.mxu0 %v1891
      %3866 = vmatprep.subr.bf16.mxu0 0
      %3867 = vmatpush1.bf16.msra.mxu0 %v1892
      %3868 = vmatprep.subr.bf16.mxu0 0
      %3869 = vmatpush1.bf16.msra.mxu0 %v1893
      %3870 = vmatprep.subr.bf16.mxu0 0
      %3871 = vmatpush1.bf16.msra.mxu0 %v1894
      %3872 = vmatprep.subr.bf16.mxu0 0
      %3873 = vmatpush1.bf16.msra.mxu0 %v1895
      %3874 = vmatprep.subr.bf16.mxu0 0
      %3875 = vmatpush1.bf16.msra.mxu0 %v1896
      %3876 = vmatprep.subr.bf16.mxu0 0
      %3877 = vmatpush1.bf16.msra.mxu0 %v1897
      %3878 = vmatprep.subr.bf16.mxu0 0
      %3879 = vmatpush1.bf16.msra.mxu0 %v1898
      %3880 = vmatprep.subr.bf16.mxu0 0
      %3881 = vmatpush1.bf16.msra.mxu0 %v1899
      %3882 = vmatprep.subr.bf16.mxu0 0
      %3883 = vmatpush1.bf16.msra.mxu0 %v1900
      %3884 = vmatprep.subr.bf16.mxu0 0
      %3885 = vmatpush1.bf16.msra.mxu0 %v1901
      %3886 = vmatprep.mubr.bf16.mxu0 %v3815
      %3887 = vmatmul.mubr.bf16.gmra.mrb[0].mxu0 %v3814
      %v3888 = vpop.f32.mrb[0].mxu0
      %v3889 = vadd.f32 %v3831, %v3888
      %v3890 = vpop.f32.mrb[0].mxu0
      %v3891 = vpop.f32.mrb[0].mxu0
      %v3892 = vadd.f32 %v3836, %v3891
      %v3893 = vpop.f32.mrb[0].mxu0
      %3894 = vmatprep.mubr.bf16.mxu0 %v3820
      %3895 = vmatmul.mubr.bf16.gmra.mrb[0].mxu0 %v3819
      %v3896 = vpop.f32.mrb[0].mxu0
      %v3897 = vadd.f32 %v3841, %v3896
      %v3898 = vpop.f32.mrb[0].mxu0
      %v3899 = vpop.f32.mrb[0].mxu0
      %v3900 = vadd.f32 %v3846, %v3899
      %v3901 = vpop.f32.mrb[0].mxu0
      %3902 = vdwg.mxu0
      %3903 = vmatprep.subr.bf16.mxu0 0
      %3904 = vmatpush1.bf16.msra.mxu0 %v1902
      %3905 = vmatprep.subr.bf16.mxu0 0
      %3906 = vmatpush1.bf16.msra.mxu0 %v1903
      %3907 = vmatprep.subr.bf16.mxu0 0
      %3908 = vmatpush1.bf16.msra.mxu0 %v1904
      %3909 = vmatprep.subr.bf16.mxu0 0
      %3910 = vmatpush1.bf16.msra.mxu0 %v1905
      %3911 = vmatprep.subr.bf16.mxu0 0
      %3912 = vmatpush1.bf16.msra.mxu0 %v1906
      %3913 = vmatprep.subr.bf16.mxu0 0
      %3914 = vmatpush1.bf16.msra.mxu0 %v1907
      %3915 = vmatprep.subr.bf16.mxu0 0
      %3916 = vmatpush1.bf16.msra.mxu0 %v1908
      %3917 = vmatprep.subr.bf16.mxu0 0
      %3918 = vmatpush1.bf16.msra.mxu0 %v1909
      %3919 = vmatprep.subr.bf16.mxu0 0
      %3920 = vmatpush1.bf16.msra.mxu0 %v1910
      %3921 = vmatprep.subr.bf16.mxu0 0
      %3922 = vmatpush1.bf16.msra.mxu0 %v1911
      %3923 = vmatprep.subr.bf16.mxu0 0
      %3924 = vmatpush1.bf16.msra.mxu0 %v1912
      %3925 = vmatprep.subr.bf16.mxu0 0
      %3926 = vmatpush1.bf16.msra.mxu0 %v1913
      %3927 = vmatprep.subr.bf16.mxu0 0
      %3928 = vmatpush1.bf16.msra.mxu0 %v1914
      %3929 = vmatprep.subr.bf16.mxu0 0
      %3930 = vmatpush1.bf16.msra.mxu0 %v1915
      %3931 = vmatprep.subr.bf16.mxu0 0
      %3932 = vmatpush1.bf16.msra.mxu0 %v1916
      %3933 = vmatprep.subr.bf16.mxu0 0
      %3934 = vmatpush1.bf16.msra.mxu0 %v1917
      %3935 = vmatprep.mubr.bf16.mxu0 %v3817
      %3936 = vmatmul.mubr.bf16.gmra.mrb[0].mxu0 %v3816
      %v3937 = vpop.f32.mrb[0].mxu0
      %v3938 = vadd.f32 %v3889, %v3937
      %v3939 = vpop.f32.mrb[0].mxu0
      %v3940 = vpop.f32.mrb[0].mxu0
      %v3941 = vadd.f32 %v3892, %v3940
      %v3942 = vpop.f32.mrb[0].mxu0
      %3943 = vmatprep.mubr.bf16.mxu0 %v3822
      %3944 = vmatmul.mubr.bf16.gmra.mrb[0].mxu0 %v3821
      %v3945 = vpop.f32.mrb[0].mxu0
      %v3946 = vadd.f32 %v3897, %v3945
      %v3947 = vpop.f32.mrb[0].mxu0
      %v3948 = vpop.f32.mrb[0].mxu0
      %v3949 = vadd.f32 %v3900, %v3948
      %v3950 = vpop.f32.mrb[0].mxu0
      %3951 = vdwg.mxu0
      %3952 = vmatprep.subr.bf16.mxu0 0
      %3953 = vmatpush1.bf16.msra.mxu0 %v1918
      %3954 = vmatprep.subr.bf16.mxu0 0
      %3955 = vmatpush1.bf16.msra.mxu0 %v1919
      %3956 = vmatprep.subr.bf16.mxu0 0
      %3957 = vmatpush1.bf16.msra.mxu0 %v1920
      %3958 = vmatprep.subr.bf16.mxu0 0
      %3959 = vmatpush1.bf16.msra.mxu0 %v1921
      %3960 = vmatprep.subr.bf16.mxu0 0
      %3961 = vmatpush1.bf16.msra.mxu0 0
      %3962 = vmatprep.subr.bf16.mxu0 0
      %3963 = vmatpush1.bf16.msra.mxu0 0
      %3964 = vmatprep.subr.bf16.mxu0 0
      %3965 = vmatpush1.bf16.msra.mxu0 0
      %3966 = vmatprep.subr.bf16.mxu0 0
      %3967 = vmatpush1.bf16.msra.mxu0 0
      %3968 = vmatprep.subr.bf16.mxu0 0
      %3969 = vmatpush1.bf16.msra.mxu0 0
      %3970 = vmatprep.subr.bf16.mxu0 0
      %3971 = vmatpush1.bf16.msra.mxu0 0
      %3972 = vmatprep.subr.bf16.mxu0 0
      %3973 = vmatpush1.bf16.msra.mxu0 0
      %3974 = vmatprep.subr.bf16.mxu0 0
      %3975 = vmatpush1.bf16.msra.mxu0 0
      %3976 = vmatprep.subr.bf16.mxu0 0
      %3977 = vmatpush1.bf16.msra.mxu0 0
      %3978 = vmatprep.subr.bf16.mxu0 0
      %3979 = vmatpush1.bf16.msra.mxu0 0
      %3980 = vmatprep.subr.bf16.mxu0 0
      %3981 = vmatpush1.bf16.msra.mxu0 0
      %3982 = vmatprep.subr.bf16.mxu0 0
      %3983 = vmatpush1.bf16.msra.mxu0 0
      %3984 = vmatprep.mubr.bf16.mxu0 0
      %3985 = vmatmul.mubr.bf16.gmra.mrb[0].mxu0 %v3849
      %v3986 = vpop.f32.mrb[0].mxu0
      %v3987 = vadd.f32 %v3938, %v3986
      %v3988 = vpop.f32.mrb[0].mxu0
      %v3989 = vpop.f32.mrb[0].mxu0
      %v3990 = vadd.f32 %v3941, %v3989
      %v3991 = vpop.f32.mrb[0].mxu0
      %3992 = vmatprep.mubr.bf16.mxu0 0
      %3993 = vmatmul.mubr.bf16.gmra.mrb[0].mxu0 %v3852
      %v3994 = vpop.f32.mrb[0].mxu0
      %v3995 = vadd.f32 %v3946, %v3994
      %v3996 = vpop.f32.mrb[0].mxu0
      %v3997 = vpop.f32.mrb[0].mxu0
      %v3998 = vadd.f32 %v3949, %v3997
      %v3999 = vpop.f32.mrb[0].mxu0
      %4000 = vdwg.mxu0
      %v4001 = vmax.f32 %v3987, 0.0
      %v4002 = vmax.f32 %v3990, 0.0
      %v4003 = vmax.f32 %v3995, 0.0
      %v4004 = vmax.f32 %v3998, 0.0
      %v4005 = vld [vmem:[%s24] sm:$0xf]
      %v4006 = vld [vmem:[%s24 + $0x4] sm:$0xf]
      %v4007 = vpack.c.bf16 %v4002, %v4001
      %v4008 = vpack.c.bf16 %v4004, %v4003
      %v4011 = vunpack.c.l.b16 %v4005
      %v4012 = vunpack.c.l.b16 %v4006
      %v4013 = vpack.c.b16 %v4012, %v4011
      %v4015 = vsel %vm2807, %v4013, 0
      %4017 = vmatprep.subr.bf16.mxu0 0
      %4018 = vmatpush1.bf16.msra.mxu0 %v4007
      %4019 = vmatprep.subr.bf16.mxu0 0
      %4020 = vmatpush1.bf16.msra.mxu0 %v4008
      %4021 = vmatprep.subr.bf16.mxu0 0
      %4022 = vmatpush1.bf16.msra.mxu0 0
      %4023 = vmatprep.subr.bf16.mxu0 0
      %4024 = vmatpush1.bf16.msra.mxu0 0
      %4025 = vmatprep.subr.bf16.mxu0 0
      %4026 = vmatpush1.bf16.msra.mxu0 0
      %4027 = vmatprep.subr.bf16.mxu0 0
      %4028 = vmatpush1.bf16.msra.mxu0 0
      %4029 = vmatprep.subr.bf16.mxu0 0
      %4030 = vmatpush1.bf16.msra.mxu0 0
      %4031 = vmatprep.subr.bf16.mxu0 0
      %4032 = vmatpush1.bf16.msra.mxu0 0
      %4033 = vmatprep.subr.bf16.mxu0 0
      %4034 = vmatpush1.bf16.msra.mxu0 0
      %4035 = vmatprep.subr.bf16.mxu0 0
      %4036 = vmatpush1.bf16.msra.mxu0 0
      %4037 = vmatprep.subr.bf16.mxu0 0
      %4038 = vmatpush1.bf16.msra.mxu0 0
      %4039 = vmatprep.subr.bf16.mxu0 0
      %4040 = vmatpush1.bf16.msra.mxu0 0
      %4041 = vmatprep.subr.bf16.mxu0 0
      %4042 = vmatpush1.bf16.msra.mxu0 0
      %4043 = vmatprep.subr.bf16.mxu0 0
      %4044 = vmatpush1.bf16.msra.mxu0 0
      %4045 = vmatprep.subr.bf16.mxu0 0
      %4046 = vmatpush1.bf16.msra.mxu0 0
      %4047 = vmatprep.subr.bf16.mxu0 0
      %4048 = vmatpush1.bf16.msra.mxu0 0
      %4049 = vmatprep.mubr.bf16.mxu0 0
      %4050 = vmatmul.mubr.bf16.gmra.mrb[0].mxu0 %v4015
      %v4051 = vpop.f32.mrb[0].mxu0
      %v4052 = vadd.f32 0.0, %v4051
      %v4053 = vpop.f32.mrb[0].mxu0
      %v4054 = vpop.f32.mrb[0].mxu0
      %v4055 = vadd.f32 0.0, %v4054
      %v4056 = vpop.f32.mrb[0].mxu0
      %4057 = vdwg.mxu0
      %v4058 = vadd.f32 %v3390, %v4052
      %v4059 = vadd.f32 %v3391, %v4055
      %v4060 = vld [vmem:[%s25] sm:$0xff]
      %v4061 = vld [vmem:[%s25 + $0x8] sm:$0xff]
      %4063 = vset.pattern.permute.xlu0 0
      %4064 = vperm.xlu0 %4063, %v4060
      %v4065 = vpop.permute.xlu0 %4064
      %4068 = vset.pattern.permute.xlu0 0
      %4069 = vperm.xlu0 %4068, %v4061
      %v4070 = vpop.permute.xlu0 %4069
      %v4072 = vadd.f32 %v4058, %v4065
      %v4073 = vadd.f32 %v4059, %v4070
      %4074 = vst.msk [vmem:[%s791] sm:$0xff] %vm1084, %v4072
      %4075 = vst.msk [vmem:[%s791 + $0x8] sm:$0xff] %vm1084, %v4073
      %p4076 = scmp.lt.s32.totalorder %s37, 1
      %s4077 = scalar_select %p4076, %s37, 1
      %s4078 = smul.addr %s4077, 2
      %s4079 = smul.addr %s4078, 8
      %s4080 = scalar_lea.vmem %s26, %s4079
      // Predicated region
      $region125: #{block_forward.1} parent=123 // pred_check
        %p4081 = pneg %p606
      $region126: #{block_forward.1} parent=123 // pred_check_branch
        %4083 = sbr.rel (%p4081) target = $region128
      $region127: #{block_forward.1} parent=123 // pred_region
        _
      $region128: #{block_forward.1} parent=123 // pred_fallthru
        _
    $region124: #{block_forward.1} parent=5 // pred_fallthru
      _
    %p4084 = scmp.le.s32.totalorder 2, %s32
    // Predicated region
    $region129: #{block_forward.1} parent=5 // pred_check
      %p4085 = pneg %p4084
    $region130: #{block_forward.1} parent=5 // pred_check_branch
      %4087 = sbr.rel (%p4085) target = $region132
    $region131: #{block_forward.1} parent=5 // pred_region
      %s4088 = ssub.s32 %s32, 2
      // Predicated region
      $region133: #{block_forward.1} parent=131 // pred_check
        %p4089 = pneg %p612
      $region134: #{block_forward.1} parent=131 // pred_check_branch
        %4091 = sbr.rel (%p4089) target = $region136
      $region135: #{block_forward.1} parent=131 // pred_region
        %p4092 = scmp.lt.s32.totalorder %s38, 1
        %s4093 = scalar_select %p4092, %s38, 1
        %s4094 = smul.addr %s4093, 2
        %s4095 = smul.addr %s4094, 8
        %s4096 = scalar_lea.vmem %s26, %s4095
      $region136: #{block_forward.1} parent=131 // pred_fallthru
        _
    $region132: #{block_forward.1} parent=5 // pred_fallthru
      _
  $region6: #{block_forward.1} parent=0 // loop_footer
    %s36 = sadd.s32 1, %s32
  $region7: #{block_forward.1} parent=0 // loop_footer_branch
    %31 = sbr.rel target = $region3
  $region8: #{block_forward.1} parent=0 // loop_exit
    _

</llo_original>
